<compile_context>
chip_gen: v7x
topology: tpu7x:2x2x1
jax: 0.10.0
libtpu: 0.0.40
codegen_flags: <defaults>
</compile_context>

<pallas_src>
import math
import jax
import jax.numpy as jnp
from jax.experimental import pallas as pl
from jax.experimental.pallas import tpu as pltpu


def make_gru_kernel(T, Hp, L):
    """GRU kernel for static T (timesteps), Hp (padded hidden), L (layers)."""
    TC = 8                      # time chunk: one (8, 128) tile of outputs
    n_chunks = T // TC
    tail = T % TC

    def gates(xp, hp, bhn, h_prev):
        # PyTorch gate order: r, z, n. All slices land on 128-lane boundaries.
        # Gate math kept in f32 (v5e VPU/EUP have no bf16 path).
        r = jax.nn.sigmoid(xp[:, 0:Hp] + hp[:, 0:Hp])
        z = jax.nn.sigmoid(xp[:, Hp:2 * Hp] + hp[:, Hp:2 * Hp])
        n = jnp.tanh(xp[:, 2 * Hp:3 * Hp] + r * (hp[:, 2 * Hp:3 * Hp] + bhn))
        return (1.0 - z) * n + z * h_prev

    def gru_kernel(x_ref, wihT_ref, whhT_ref, bih_ref, bhn_ref,
                   hid_ref, seq_scr, xproj_scr):
        finals = []
        for layer in range(L):          # static python loop over layers
            wihT = wihT_ref[layer]      # (Hp, 3Hp) bf16
            whhT = whhT_ref[layer]      # (Hp, 3Hp) bf16
            bih = bih_ref[layer]        # (1, 3Hp)  f32 (b_hr/b_hz folded in)
            bhn = bhn_ref[layer]        # (1, Hp)   f32 (b_hn, stays in r*(...))

            # Input projections for every timestep: one big MXU matmul (bf16
            # in, f32 accumulate). Layer 0 reads embeddings straight from x_ref.
            layer_in = x_ref[...] if layer == 0 else seq_scr[...]
            xproj_scr[...] = (
                jnp.dot(layer_in, wihT, preferred_element_type=jnp.float32)
                + bih)

            store_seq = layer < (L - 1)   # last layer's sequence isn't needed

            def steps(xp_block, h, n_steps):
                # n_steps is static; hidden state h stays in vregs (f32).
                outs = []
                for s in range(n_steps):
                    xp = xp_block[s:s + 1, :]
                    hp = jnp.dot(h.astype(jnp.bfloat16), whhT,
                                 preferred_element_type=jnp.float32)
                    h = gates(xp, hp, bhn, h)
                    outs.append(h)
                return h, outs

            def chunk_body(c, h):
                base = pl.multiple_of(c * TC, TC)
                xp_block = xproj_scr[pl.ds(base, TC), :]       # (8, 3Hp)
                h, outs = steps(xp_block, h, TC)
                if store_seq:
                    # One (8, 128) tile store per 8 timesteps.
                    seq_scr[pl.ds(base, TC), :] = (
                        jnp.concatenate(outs, axis=0).astype(seq_scr.dtype))
                return h

            h = jnp.zeros((1, Hp), jnp.float32)
            if n_chunks > 0:
                # Cap unroll at 2: the TC=8 inner unroll already exposes
                # cross-step overlap; deeper unroll would spill vregs onto the
                # dependency-bound serial chain.
                h = jax.lax.fori_loop(0, n_chunks, chunk_body, h,
                                      unroll=min(2, n_chunks))
            if tail > 0:
                base = T - tail
                xp_block = xproj_scr[pl.ds(base, tail), :]
                h, outs = steps(xp_block, h, tail)
                if store_seq:
                    seq_scr[pl.ds(base, tail), :] = (
                        jnp.concatenate(outs, axis=0).astype(seq_scr.dtype))

            finals.append(h)

        # Single batched store of all layers' final hidden states.
        hid_ref[...] = jnp.stack(finals, axis=0)

    return gru_kernel


def _pad_gates_T(w, H, Hp):
    """(L, 3H, H) gate weights -> transposed, gate-wise zero-padded (L, Hp, 3Hp)."""
    L = w.shape[0]
    w = w.reshape(L, 3, H, H).astype(jnp.float32)
    w = jnp.pad(w, ((0, 0), (0, 0), (0, Hp - H), (0, Hp - H)))
    return jnp.transpose(w, (0, 3, 1, 2)).reshape(L, Hp, 3 * Hp)


def _pad_gate_bias3(b3, H, Hp):
    """(L, 3, H) gate biases -> gate-wise zero-padded (L, 1, 3Hp)."""
    L = b3.shape[0]
    b3 = jnp.pad(b3.astype(jnp.float32), ((0, 0), (0, 0), (0, Hp - H)))
    return b3.reshape(L, 1, 3 * Hp)


def rnn_encoder_forward(ids, emb, w_ih, w_hh, b_ih, b_hh):
    """ids: int array of any shape. Returns hidden: (nlayers, 1, hidden)."""
    H = emb.shape[1]
    L = w_ih.shape[0]
    Hp = max(128, ((H + 127) // 128) * 128)   # pad hidden to a lane multiple

    # Embedding lookup (JAX glue) + flatten to (T, Hp): same as
    # embedding(input).view(-1, 1, H) with batch = 1.
    x = jnp.take(emb.astype(jnp.float32), ids.reshape(-1), axis=0)   # (T, H)
    T = x.shape[0]
    x = jnp.pad(x, ((0, 0), (0, Hp - H))).astype(jnp.bfloat16)       # (T, Hp)

    # Gate-wise padded / transposed weights — both in bf16 (MXU-native inputs,
    # f32 accumulation inside the kernel).
    wihT = _pad_gates_T(w_ih, H, Hp).astype(jnp.bfloat16)   # (L, Hp, 3Hp)
    whhT = _pad_gates_T(w_hh, H, Hp).astype(jnp.bfloat16)   # (L, Hp, 3Hp)

    # Bias prep: fold b_hr / b_hz into the input-projection bias (they are just
    # additive), keep b_hn separate (must stay inside the r * (...) term).
    bi3 = b_ih.reshape(L, 3, H).astype(jnp.float32)
    bh3 = b_hh.reshape(L, 3, H).astype(jnp.float32)
    bih_comb = jnp.concatenate([bi3[:, 0:2] + bh3[:, 0:2], bi3[:, 2:3]], axis=1)
    bih = _pad_gate_bias3(bih_comb, H, Hp)                              # (L,1,3Hp)
    bhn = jnp.pad(bh3[:, 2], ((0, 0), (0, Hp - H))).reshape(L, 1, Hp)   # (L,1,Hp)

    flops = 2 * (2 * T * Hp * 3 * Hp * L)   # xproj + recurrent matmuls
    bytes_accessed = (x.size * 2 + wihT.size * 2 + whhT.size * 2
                      + bih.size * 4 + bhn.size * 4 + L * Hp * 4)

    # Explicit VMEM budget: inputs/outputs double-buffered by BlockSpec plus
    # the two scratch buffers; capped at 48 MiB so it is safe on v7x (64 MiB
    # physical VMEM) as well as v5e/v6e (128 MiB).
    est_vmem = (2 * (x.size * 2 + wihT.size * 2 + whhT.size * 2
                     + bih.size * 4 + bhn.size * 4 + L * Hp * 4)
                + T * Hp * 2 + T * 3 * Hp * 4)
    vmem_limit = int(min(max(2 * est_vmem, 8 << 20), 48 << 20))

    hidden_p = pl.pallas_call(
        make_gru_kernel(T, Hp, L),
        out_shape=jax.ShapeDtypeStruct((L, 1, Hp), jnp.float32),
        grid=(1,),
        in_specs=[
            pl.BlockSpec((T, Hp), lambda i: (0, 0)),
            pl.BlockSpec((L, Hp, 3 * Hp), lambda i: (0, 0, 0)),
            pl.BlockSpec((L, Hp, 3 * Hp), lambda i: (0, 0, 0)),
            pl.BlockSpec((L, 1, 3 * Hp), lambda i: (0, 0, 0)),
            pl.BlockSpec((L, 1, Hp), lambda i: (0, 0, 0)),
        ],
        out_specs=pl.BlockSpec((L, 1, Hp), lambda i: (0, 0, 0)),
        scratch_shapes=[
            pltpu.VMEM((T, Hp), jnp.bfloat16),      # current layer's outputs
            pltpu.VMEM((T, 3 * Hp), jnp.float32),   # precomputed x-projections
        ],
        compiler_params=pltpu.CompilerParams(
            dimension_semantics=("arbitrary",),
            vmem_limit_bytes=vmem_limit),
        cost_estimate=pl.CostEstimate(
            flops=int(flops),
            transcendentals=int(3 * T * Hp * L),
            bytes_accessed=int(bytes_accessed)),
    )(x, wihT, whhT, bih, bhn)

    return hidden_p[:, :, :H]   # drop lane padding -> (nlayers, 1, hidden)


def rnn_encoder_reference(ids, emb, w_ih, w_hh, b_ih, b_hh):
    """Pure-JAX f32 reference mirroring torch.nn.GRU (eval mode)."""
    H = emb.shape[1]
    L = w_ih.shape[0]
    x = jnp.take(emb, ids.reshape(-1), axis=0).astype(jnp.float32)
    hiddens = []
    for layer in range(L):
        wih, whh = w_ih[layer], w_hh[layer]
        bih, bhh = b_ih[layer], b_hh[layer]
        h = jnp.zeros((H,), jnp.float32)
        outs = []
        for t in range(x.shape[0]):
            xp = x[t] @ wih.T + bih
            hp = h @ whh.T + bhh
            r = jax.nn.sigmoid(xp[0:H] + hp[0:H])
            z = jax.nn.sigmoid(xp[H:2 * H] + hp[H:2 * H])
            n = jnp.tanh(xp[2 * H:3 * H] + r * hp[2 * H:3 * H])
            h = (1.0 - z) * n + z * h
            outs.append(h)
        x = jnp.stack(outs, axis=0)
        hiddens.append(h)
    return jnp.stack(hiddens, axis=0)[:, None, :]


if __name__ == "__main__":
    # Module config (small): vocab/input_size=16, hidden_size=32, nlayers=2.
    input_size = 16
    hidden_size = 32
    nlayers = 2

    key = jax.random.PRNGKey(0)
    k_emb, k_ih, k_hh, k_bih, k_bhh, k_ids = jax.random.split(key, 6)

    # Deterministic parameter init (PyTorch GRU uses U(-1/sqrt(H), 1/sqrt(H))).
    bound = 1.0 / math.sqrt(hidden_size)
    emb = jax.random.normal(k_emb, (input_size, hidden_size), jnp.float32)
    w_ih = jax.random.uniform(k_ih, (nlayers, 3 * hidden_size, hidden_size),
                              jnp.float32, -bound, bound)
    w_hh = jax.random.uniform(k_hh, (nlayers, 3 * hidden_size, hidden_size),
                              jnp.float32, -bound, bound)
    b_ih = jax.random.uniform(k_bih, (nlayers, 3 * hidden_size),
                              jnp.float32, -bound, bound)
    b_hh = jax.random.uniform(k_bhh, (nlayers, 3 * hidden_size),
                              jnp.float32, -bound, bound)

    # Example token input: shape (2, 4) -> T = 8 timesteps, batch = 1.
    ids = jax.random.randint(k_ids, (2, 4), 0, input_size, jnp.int32)

    hidden = rnn_encoder_forward(ids, emb, w_ih, w_hh, b_ih, b_hh)
    hidden = jax.block_until_ready(hidden)

    ref = jax.block_until_ready(
        rnn_encoder_reference(ids, emb, w_ih, w_hh, b_ih, b_hh))
    assert hidden.shape == (nlayers, 1, hidden_size)
    # Tolerance accounts for bf16 embeddings / input-projection / recurrent
    # weights (accumulation is f32; gate math is f32).
    assert jnp.allclose(hidden, ref, rtol=2e-2, atol=2e-2), "mismatch vs reference"

    print("KERNEL_OK")
</pallas_src>

<mosaic_0001>
module attributes {stable_mosaic.version = 11 : i64} {
  func.func @gru_kernel(%arg0: i32, %arg1: memref<8x128xbf16, #tpu.memory_space<vmem>>, %arg2: memref<2x128x384xbf16, #tpu.memory_space<vmem>>, %arg3: memref<2x128x384xbf16, #tpu.memory_space<vmem>>, %arg4: memref<2x1x384xf32, #tpu.memory_space<vmem>>, %arg5: memref<2x1x128xf32, #tpu.memory_space<vmem>>, %arg6: memref<2x1x128xf32, #tpu.memory_space<vmem>>, %arg7: memref<8x128xbf16, #tpu.memory_space<vmem>>, %arg8: memref<8x384xf32, #tpu.memory_space<vmem>>) attributes {dimension_semantics = [#tpu.dimension_semantics<arbitrary>], iteration_bounds = array<i64: 1>, scalar_prefetch = 0 : i64, scratch_operands = 2 : i64, tpu.core_type = #tpu.core_type<tc>, window_params = [{pipeline_mode = #tpu.pipeline_mode<synchronous>, transform_indices = @transform_0, window_bounds = array<i64: 8, 128>}, {pipeline_mode = #tpu.pipeline_mode<synchronous>, transform_indices = @transform_1, window_bounds = array<i64: 2, 128, 384>}, {pipeline_mode = #tpu.pipeline_mode<synchronous>, transform_indices = @transform_2, window_bounds = array<i64: 2, 128, 384>}, {pipeline_mode = #tpu.pipeline_mode<synchronous>, transform_indices = @transform_3, window_bounds = array<i64: 2, 1, 384>}, {pipeline_mode = #tpu.pipeline_mode<synchronous>, transform_indices = @transform_4, window_bounds = array<i64: 2, 1, 128>}, {pipeline_mode = #tpu.pipeline_mode<synchronous>, transform_indices = @transform_5, window_bounds = array<i64: 2, 1, 128>}]} {
    %c0 = arith.constant 0 : index
    %c0_0 = arith.constant 0 : index
    %c0_1 = arith.constant 0 : index
    %0 = vector.load %arg2[%c0, %c0_0, %c0_1] : memref<2x128x384xbf16, #tpu.memory_space<vmem>>, vector<1x128x384xbf16>
    %1 = vector.shape_cast %0 : vector<1x128x384xbf16> to vector<128x384xbf16>
    %c0_2 = arith.constant 0 : index
    %c0_3 = arith.constant 0 : index
    %c0_4 = arith.constant 0 : index
    %2 = vector.load %arg3[%c0_2, %c0_3, %c0_4] : memref<2x128x384xbf16, #tpu.memory_space<vmem>>, vector<1x128x384xbf16>
    %3 = vector.shape_cast %2 : vector<1x128x384xbf16> to vector<128x384xbf16>
    %c0_5 = arith.constant 0 : index
    %c0_6 = arith.constant 0 : index
    %c0_7 = arith.constant 0 : index
    %4 = vector.load %arg4[%c0_5, %c0_6, %c0_7] : memref<2x1x384xf32, #tpu.memory_space<vmem>>, vector<1x1x384xf32>
    %5 = vector.shape_cast %4 : vector<1x1x384xf32> to vector<1x384xf32>
    %c0_8 = arith.constant 0 : index
    %c0_9 = arith.constant 0 : index
    %c0_10 = arith.constant 0 : index
    %6 = vector.load %arg5[%c0_8, %c0_9, %c0_10] : memref<2x1x128xf32, #tpu.memory_space<vmem>>, vector<1x1x128xf32>
    %7 = vector.shape_cast %6 : vector<1x1x128xf32> to vector<1x128xf32>
    %c0_11 = arith.constant 0 : index
    %c0_12 = arith.constant 0 : index
    %8 = vector.load %arg1[%c0_11, %c0_12] : memref<8x128xbf16, #tpu.memory_space<vmem>>, vector<8x128xbf16>
    %cst = arith.constant dense<0.000000e+00> : vector<8x384xf32>
    %9 = tpu.matmul %8, %1, %cst {dimension_numbers = #tpu.dot_dimension_numbers<[1], [0], [0], [1], [0, 0, 1, 1], [], []>} : vector<8x128xbf16>, vector<128x384xbf16>, vector<8x384xf32> -> vector<8x384xf32>
    %10 = vector.broadcast %5 : vector<1x384xf32> to vector<8x384xf32>
    %11 = arith.addf %9, %10 : vector<8x384xf32>
    %c0_13 = arith.constant 0 : index
    %c0_14 = arith.constant 0 : index
    %12 = vector.load %arg8[%c0_13, %c0_14] : memref<8x384xf32, #tpu.memory_space<vmem>>, vector<8x384xf32>
    tpu.vector_store %arg8[%c0_13, %c0_14], %11 {strides = array<i32>} : memref<8x384xf32, #tpu.memory_space<vmem>>, vector<8x384xf32>,
    %cst_15 = arith.constant 0.000000e+00 : f32
    %13 = vector.broadcast %cst_15 : f32 to vector<1x128xf32>
    %c0_i32 = arith.constant 0 : i32
    %c8_i32 = arith.constant 8 : i32
    %14 = arith.muli %c0_i32, %c8_i32 : i32
    %15 = tpu.assume_multiple %14, 8 : i32
    %16 = arith.index_cast %15 : i32 to index
    %c0_16 = arith.constant 0 : index
    %17 = vector.load %arg8[%16, %c0_16] : memref<8x384xf32, #tpu.memory_space<vmem>>, vector<8x384xf32>
    %18 = vector.extract_strided_slice %17 {offsets = [0, 0], sizes = [1, 384], strides = [1, 1]} : vector<8x384xf32> to vector<1x384xf32>
    %19 = arith.truncf %13 : vector<1x128xf32> to vector<1x128xbf16>
    %cst_17 = arith.constant dense<0.000000e+00> : vector<1x384xf32>
    %20 = tpu.matmul %19, %3, %cst_17 {dimension_numbers = #tpu.dot_dimension_numbers<[1], [0], [0], [1], [0, 0, 1, 1], [], []>} : vector<1x128xbf16>, vector<128x384xbf16>, vector<1x384xf32> -> vector<1x384xf32>
    %21 = vector.extract_strided_slice %18 {offsets = [0, 0], sizes = [1, 128], strides = [1, 1]} : vector<1x384xf32> to vector<1x128xf32>
    %22 = vector.extract_strided_slice %20 {offsets = [0, 0], sizes = [1, 128], strides = [1, 1]} : vector<1x384xf32> to vector<1x128xf32>
    %23 = arith.addf %21, %22 : vector<1x128xf32>
    %24 = arith.negf %23 : vector<1x128xf32>
    %25 = math.exp %24 : vector<1x128xf32>
    %cst_18 = arith.constant 1.000000e+00 : f32
    %26 = vector.broadcast %cst_18 : f32 to vector<1x128xf32>
    %27 = arith.addf %26, %25 : vector<1x128xf32>
    %28 = arith.divf %26, %27 : vector<1x128xf32>
    %29 = vector.extract_strided_slice %18 {offsets = [0, 128], sizes = [1, 128], strides = [1, 1]} : vector<1x384xf32> to vector<1x128xf32>
    %30 = vector.extract_strided_slice %20 {offsets = [0, 128], sizes = [1, 128], strides = [1, 1]} : vector<1x384xf32> to vector<1x128xf32>
    %31 = arith.addf %29, %30 : vector<1x128xf32>
    %32 = arith.negf %31 : vector<1x128xf32>
    %33 = math.exp %32 : vector<1x128xf32>
    %cst_19 = arith.constant 1.000000e+00 : f32
    %34 = vector.broadcast %cst_19 : f32 to vector<1x128xf32>
    %35 = arith.addf %34, %33 : vector<1x128xf32>
    %36 = arith.divf %34, %35 : vector<1x128xf32>
    %37 = vector.extract_strided_slice %18 {offsets = [0, 256], sizes = [1, 128], strides = [1, 1]} : vector<1x384xf32> to vector<1x128xf32>
    %38 = vector.extract_strided_slice %20 {offsets = [0, 256], sizes = [1, 128], strides = [1, 1]} : vector<1x384xf32> to vector<1x128xf32>
    %39 = arith.addf %38, %7 : vector<1x128xf32>
    %40 = arith.mulf %28, %39 : vector<1x128xf32>
    %41 = arith.addf %37, %40 : vector<1x128xf32>
    %42 = math.tanh %41 : vector<1x128xf32>
    %cst_20 = arith.constant 1.000000e+00 : f32
    %43 = vector.broadcast %cst_20 : f32 to vector<1x128xf32>
    %44 = arith.subf %43, %36 : vector<1x128xf32>
    %45 = arith.mulf %44, %42 : vector<1x128xf32>
    %46 = arith.mulf %36, %13 : vector<1x128xf32>
    %47 = arith.addf %45, %46 : vector<1x128xf32>
    %48 = vector.extract_strided_slice %17 {offsets = [1, 0], sizes = [1, 384], strides = [1, 1]} : vector<8x384xf32> to vector<1x384xf32>
    %49 = arith.truncf %47 : vector<1x128xf32> to vector<1x128xbf16>
    %cst_21 = arith.constant dense<0.000000e+00> : vector<1x384xf32>
    %50 = tpu.matmul %49, %3, %cst_21 {dimension_numbers = #tpu.dot_dimension_numbers<[1], [0], [0], [1], [0, 0, 1, 1], [], []>} : vector<1x128xbf16>, vector<128x384xbf16>, vector<1x384xf32> -> vector<1x384xf32>
    %51 = vector.extract_strided_slice %48 {offsets = [0, 0], sizes = [1, 128], strides = [1, 1]} : vector<1x384xf32> to vector<1x128xf32>
    %52 = vector.extract_strided_slice %50 {offsets = [0, 0], sizes = [1, 128], strides = [1, 1]} : vector<1x384xf32> to vector<1x128xf32>
    %53 = arith.addf %51, %52 : vector<1x128xf32>
    %54 = arith.negf %53 : vector<1x128xf32>
    %55 = math.exp %54 : vector<1x128xf32>
    %cst_22 = arith.constant 1.000000e+00 : f32
    %56 = vector.broadcast %cst_22 : f32 to vector<1x128xf32>
    %57 = arith.addf %56, %55 : vector<1x128xf32>
    %58 = arith.divf %56, %57 : vector<1x128xf32>
    %59 = vector.extract_strided_slice %48 {offsets = [0, 128], sizes = [1, 128], strides = [1, 1]} : vector<1x384xf32> to vector<1x128xf32>
    %60 = vector.extract_strided_slice %50 {offsets = [0, 128], sizes = [1, 128], strides = [1, 1]} : vector<1x384xf32> to vector<1x128xf32>
    %61 = arith.addf %59, %60 : vector<1x128xf32>
    %62 = arith.negf %61 : vector<1x128xf32>
    %63 = math.exp %62 : vector<1x128xf32>
    %cst_23 = arith.constant 1.000000e+00 : f32
    %64 = vector.broadcast %cst_23 : f32 to vector<1x128xf32>
    %65 = arith.addf %64, %63 : vector<1x128xf32>
    %66 = arith.divf %64, %65 : vector<1x128xf32>
    %67 = vector.extract_strided_slice %48 {offsets = [0, 256], sizes = [1, 128], strides = [1, 1]} : vector<1x384xf32> to vector<1x128xf32>
    %68 = vector.extract_strided_slice %50 {offsets = [0, 256], sizes = [1, 128], strides = [1, 1]} : vector<1x384xf32> to vector<1x128xf32>
    %69 = arith.addf %68, %7 : vector<1x128xf32>
    %70 = arith.mulf %58, %69 : vector<1x128xf32>
    %71 = arith.addf %67, %70 : vector<1x128xf32>
    %72 = math.tanh %71 : vector<1x128xf32>
    %cst_24 = arith.constant 1.000000e+00 : f32
    %73 = vector.broadcast %cst_24 : f32 to vector<1x128xf32>
    %74 = arith.subf %73, %66 : vector<1x128xf32>
    %75 = arith.mulf %74, %72 : vector<1x128xf32>
    %76 = arith.mulf %66, %47 : vector<1x128xf32>
    %77 = arith.addf %75, %76 : vector<1x128xf32>
    %78 = vector.extract_strided_slice %17 {offsets = [2, 0], sizes = [1, 384], strides = [1, 1]} : vector<8x384xf32> to vector<1x384xf32>
    %79 = arith.truncf %77 : vector<1x128xf32> to vector<1x128xbf16>
    %cst_25 = arith.constant dense<0.000000e+00> : vector<1x384xf32>
    %80 = tpu.matmul %79, %3, %cst_25 {dimension_numbers = #tpu.dot_dimension_numbers<[1], [0], [0], [1], [0, 0, 1, 1], [], []>} : vector<1x128xbf16>, vector<128x384xbf16>, vector<1x384xf32> -> vector<1x384xf32>
    %81 = vector.extract_strided_slice %78 {offsets = [0, 0], sizes = [1, 128], strides = [1, 1]} : vector<1x384xf32> to vector<1x128xf32>
    %82 = vector.extract_strided_slice %80 {offsets = [0, 0], sizes = [1, 128], strides = [1, 1]} : vector<1x384xf32> to vector<1x128xf32>
    %83 = arith.addf %81, %82 : vector<1x128xf32>
    %84 = arith.negf %83 : vector<1x128xf32>
    %85 = math.exp %84 : vector<1x128xf32>
    %cst_26 = arith.constant 1.000000e+00 : f32
    %86 = vector.broadcast %cst_26 : f32 to vector<1x128xf32>
    %87 = arith.addf %86, %85 : vector<1x128xf32>
    %88 = arith.divf %86, %87 : vector<1x128xf32>
    %89 = vector.extract_strided_slice %78 {offsets = [0, 128], sizes = [1, 128], strides = [1, 1]} : vector<1x384xf32> to vector<1x128xf32>
    %90 = vector.extract_strided_slice %80 {offsets = [0, 128], sizes = [1, 128], strides = [1, 1]} : vector<1x384xf32> to vector<1x128xf32>
    %91 = arith.addf %89, %90 : vector<1x128xf32>
    %92 = arith.negf %91 : vector<1x128xf32>
    %93 = math.exp %92 : vector<1x128xf32>
    %cst_27 = arith.constant 1.000000e+00 : f32
    %94 = vector.broadcast %cst_27 : f32 to vector<1x128xf32>
    %95 = arith.addf %94, %93 : vector<1x128xf32>
    %96 = arith.divf %94, %95 : vector<1x128xf32>
    %97 = vector.extract_strided_slice %78 {offsets = [0, 256], sizes = [1, 128], strides = [1, 1]} : vector<1x384xf32> to vector<1x128xf32>
    %98 = vector.extract_strided_slice %80 {offsets = [0, 256], sizes = [1, 128], strides = [1, 1]} : vector<1x384xf32> to vector<1x128xf32>
    %99 = arith.addf %98, %7 : vector<1x128xf32>
    %100 = arith.mulf %88, %99 : vector<1x128xf32>
    %101 = arith.addf %97, %100 : vector<1x128xf32>
    %102 = math.tanh %101 : vector<1x128xf32>
    %cst_28 = arith.constant 1.000000e+00 : f32
    %103 = vector.broadcast %cst_28 : f32 to vector<1x128xf32>
    %104 = arith.subf %103, %96 : vector<1x128xf32>
    %105 = arith.mulf %104, %102 : vector<1x128xf32>
    %106 = arith.mulf %96, %77 : vector<1x128xf32>
    %107 = arith.addf %105, %106 : vector<1x128xf32>
    %108 = vector.extract_strided_slice %17 {offsets = [3, 0], sizes = [1, 384], strides = [1, 1]} : vector<8x384xf32> to vector<1x384xf32>
    %109 = arith.truncf %107 : vector<1x128xf32> to vector<1x128xbf16>
    %cst_29 = arith.constant dense<0.000000e+00> : vector<1x384xf32>
    %110 = tpu.matmul %109, %3, %cst_29 {dimension_numbers = #tpu.dot_dimension_numbers<[1], [0], [0], [1], [0, 0, 1, 1], [], []>} : vector<1x128xbf16>, vector<128x384xbf16>, vector<1x384xf32> -> vector<1x384xf32>
    %111 = vector.extract_strided_slice %108 {offsets = [0, 0], sizes = [1, 128], strides = [1, 1]} : vector<1x384xf32> to vector<1x128xf32>
    %112 = vector.extract_strided_slice %110 {offsets = [0, 0], sizes = [1, 128], strides = [1, 1]} : vector<1x384xf32> to vector<1x128xf32>
    %113 = arith.addf %111, %112 : vector<1x128xf32>
    %114 = arith.negf %113 : vector<1x128xf32>
    %115 = math.exp %114 : vector<1x128xf32>
    %cst_30 = arith.constant 1.000000e+00 : f32
    %116 = vector.broadcast %cst_30 : f32 to vector<1x128xf32>
    %117 = arith.addf %116, %115 : vector<1x128xf32>
    %118 = arith.divf %116, %117 : vector<1x128xf32>
    %119 = vector.extract_strided_slice %108 {offsets = [0, 128], sizes = [1, 128], strides = [1, 1]} : vector<1x384xf32> to vector<1x128xf32>
    %120 = vector.extract_strided_slice %110 {offsets = [0, 128], sizes = [1, 128], strides = [1, 1]} : vector<1x384xf32> to vector<1x128xf32>
    %121 = arith.addf %119, %120 : vector<1x128xf32>
    %122 = arith.negf %121 : vector<1x128xf32>
    %123 = math.exp %122 : vector<1x128xf32>
    %cst_31 = arith.constant 1.000000e+00 : f32
    %124 = vector.broadcast %cst_31 : f32 to vector<1x128xf32>
    %125 = arith.addf %124, %123 : vector<1x128xf32>
    %126 = arith.divf %124, %125 : vector<1x128xf32>
    %127 = vector.extract_strided_slice %108 {offsets = [0, 256], sizes = [1, 128], strides = [1, 1]} : vector<1x384xf32> to vector<1x128xf32>
    %128 = vector.extract_strided_slice %110 {offsets = [0, 256], sizes = [1, 128], strides = [1, 1]} : vector<1x384xf32> to vector<1x128xf32>
    %129 = arith.addf %128, %7 : vector<1x128xf32>
    %130 = arith.mulf %118, %129 : vector<1x128xf32>
    %131 = arith.addf %127, %130 : vector<1x128xf32>
    %132 = math.tanh %131 : vector<1x128xf32>
    %cst_32 = arith.constant 1.000000e+00 : f32
    %133 = vector.broadcast %cst_32 : f32 to vector<1x128xf32>
    %134 = arith.subf %133, %126 : vector<1x128xf32>
    %135 = arith.mulf %134, %132 : vector<1x128xf32>
    %136 = arith.mulf %126, %107 : vector<1x128xf32>
    %137 = arith.addf %135, %136 : vector<1x128xf32>
    %138 = vector.extract_strided_slice %17 {offsets = [4, 0], sizes = [1, 384], strides = [1, 1]} : vector<8x384xf32> to vector<1x384xf32>
    %139 = arith.truncf %137 : vector<1x128xf32> to vector<1x128xbf16>
    %cst_33 = arith.constant dense<0.000000e+00> : vector<1x384xf32>
    %140 = tpu.matmul %139, %3, %cst_33 {dimension_numbers = #tpu.dot_dimension_numbers<[1], [0], [0], [1], [0, 0, 1, 1], [], []>} : vector<1x128xbf16>, vector<128x384xbf16>, vector<1x384xf32> -> vector<1x384xf32>
    %141 = vector.extract_strided_slice %138 {offsets = [0, 0], sizes = [1, 128], strides = [1, 1]} : vector<1x384xf32> to vector<1x128xf32>
    %142 = vector.extract_strided_slice %140 {offsets = [0, 0], sizes = [1, 128], strides = [1, 1]} : vector<1x384xf32> to vector<1x128xf32>
    %143 = arith.addf %141, %142 : vector<1x128xf32>
    %144 = arith.negf %143 : vector<1x128xf32>
    %145 = math.exp %144 : vector<1x128xf32>
    %cst_34 = arith.constant 1.000000e+00 : f32
    %146 = vector.broadcast %cst_34 : f32 to vector<1x128xf32>
    %147 = arith.addf %146, %145 : vector<1x128xf32>
    %148 = arith.divf %146, %147 : vector<1x128xf32>
    %149 = vector.extract_strided_slice %138 {offsets = [0, 128], sizes = [1, 128], strides = [1, 1]} : vector<1x384xf32> to vector<1x128xf32>
    %150 = vector.extract_strided_slice %140 {offsets = [0, 128], sizes = [1, 128], strides = [1, 1]} : vector<1x384xf32> to vector<1x128xf32>
    %151 = arith.addf %149, %150 : vector<1x128xf32>
    %152 = arith.negf %151 : vector<1x128xf32>
    %153 = math.exp %152 : vector<1x128xf32>
    %cst_35 = arith.constant 1.000000e+00 : f32
    %154 = vector.broadcast %cst_35 : f32 to vector<1x128xf32>
    %155 = arith.addf %154, %153 : vector<1x128xf32>
    %156 = arith.divf %154, %155 : vector<1x128xf32>
    %157 = vector.extract_strided_slice %138 {offsets = [0, 256], sizes = [1, 128], strides = [1, 1]} : vector<1x384xf32> to vector<1x128xf32>
    %158 = vector.extract_strided_slice %140 {offsets = [0, 256], sizes = [1, 128], strides = [1, 1]} : vector<1x384xf32> to vector<1x128xf32>
    %159 = arith.addf %158, %7 : vector<1x128xf32>
    %160 = arith.mulf %148, %159 : vector<1x128xf32>
    %161 = arith.addf %157, %160 : vector<1x128xf32>
    %162 = math.tanh %161 : vector<1x128xf32>
    %cst_36 = arith.constant 1.000000e+00 : f32
    %163 = vector.broadcast %cst_36 : f32 to vector<1x128xf32>
    %164 = arith.subf %163, %156 : vector<1x128xf32>
    %165 = arith.mulf %164, %162 : vector<1x128xf32>
    %166 = arith.mulf %156, %137 : vector<1x128xf32>
    %167 = arith.addf %165, %166 : vector<1x128xf32>
    %168 = vector.extract_strided_slice %17 {offsets = [5, 0], sizes = [1, 384], strides = [1, 1]} : vector<8x384xf32> to vector<1x384xf32>
    %169 = arith.truncf %167 : vector<1x128xf32> to vector<1x128xbf16>
    %cst_37 = arith.constant dense<0.000000e+00> : vector<1x384xf32>
    %170 = tpu.matmul %169, %3, %cst_37 {dimension_numbers = #tpu.dot_dimension_numbers<[1], [0], [0], [1], [0, 0, 1, 1], [], []>} : vector<1x128xbf16>, vector<128x384xbf16>, vector<1x384xf32> -> vector<1x384xf32>
    %171 = vector.extract_strided_slice %168 {offsets = [0, 0], sizes = [1, 128], strides = [1, 1]} : vector<1x384xf32> to vector<1x128xf32>
    %172 = vector.extract_strided_slice %170 {offsets = [0, 0], sizes = [1, 128], strides = [1, 1]} : vector<1x384xf32> to vector<1x128xf32>
    %173 = arith.addf %171, %172 : vector<1x128xf32>
    %174 = arith.negf %173 : vector<1x128xf32>
    %175 = math.exp %174 : vector<1x128xf32>
    %cst_38 = arith.constant 1.000000e+00 : f32
    %176 = vector.broadcast %cst_38 : f32 to vector<1x128xf32>
    %177 = arith.addf %176, %175 : vector<1x128xf32>
    %178 = arith.divf %176, %177 : vector<1x128xf32>
    %179 = vector.extract_strided_slice %168 {offsets = [0, 128], sizes = [1, 128], strides = [1, 1]} : vector<1x384xf32> to vector<1x128xf32>
    %180 = vector.extract_strided_slice %170 {offsets = [0, 128], sizes = [1, 128], strides = [1, 1]} : vector<1x384xf32> to vector<1x128xf32>
    %181 = arith.addf %179, %180 : vector<1x128xf32>
    %182 = arith.negf %181 : vector<1x128xf32>
    %183 = math.exp %182 : vector<1x128xf32>
    %cst_39 = arith.constant 1.000000e+00 : f32
    %184 = vector.broadcast %cst_39 : f32 to vector<1x128xf32>
    %185 = arith.addf %184, %183 : vector<1x128xf32>
    %186 = arith.divf %184, %185 : vector<1x128xf32>
    %187 = vector.extract_strided_slice %168 {offsets = [0, 256], sizes = [1, 128], strides = [1, 1]} : vector<1x384xf32> to vector<1x128xf32>
    %188 = vector.extract_strided_slice %170 {offsets = [0, 256], sizes = [1, 128], strides = [1, 1]} : vector<1x384xf32> to vector<1x128xf32>
    %189 = arith.addf %188, %7 : vector<1x128xf32>
    %190 = arith.mulf %178, %189 : vector<1x128xf32>
    %191 = arith.addf %187, %190 : vector<1x128xf32>
    %192 = math.tanh %191 : vector<1x128xf32>
    %cst_40 = arith.constant 1.000000e+00 : f32
    %193 = vector.broadcast %cst_40 : f32 to vector<1x128xf32>
    %194 = arith.subf %193, %186 : vector<1x128xf32>
    %195 = arith.mulf %194, %192 : vector<1x128xf32>
    %196 = arith.mulf %186, %167 : vector<1x128xf32>
    %197 = arith.addf %195, %196 : vector<1x128xf32>
    %198 = vector.extract_strided_slice %17 {offsets = [6, 0], sizes = [1, 384], strides = [1, 1]} : vector<8x384xf32> to vector<1x384xf32>
    %199 = arith.truncf %197 : vector<1x128xf32> to vector<1x128xbf16>
    %cst_41 = arith.constant dense<0.000000e+00> : vector<1x384xf32>
    %200 = tpu.matmul %199, %3, %cst_41 {dimension_numbers = #tpu.dot_dimension_numbers<[1], [0], [0], [1], [0, 0, 1, 1], [], []>} : vector<1x128xbf16>, vector<128x384xbf16>, vector<1x384xf32> -> vector<1x384xf32>
    %201 = vector.extract_strided_slice %198 {offsets = [0, 0], sizes = [1, 128], strides = [1, 1]} : vector<1x384xf32> to vector<1x128xf32>
    %202 = vector.extract_strided_slice %200 {offsets = [0, 0], sizes = [1, 128], strides = [1, 1]} : vector<1x384xf32> to vector<1x128xf32>
    %203 = arith.addf %201, %202 : vector<1x128xf32>
    %204 = arith.negf %203 : vector<1x128xf32>
    %205 = math.exp %204 : vector<1x128xf32>
    %cst_42 = arith.constant 1.000000e+00 : f32
    %206 = vector.broadcast %cst_42 : f32 to vector<1x128xf32>
    %207 = arith.addf %206, %205 : vector<1x128xf32>
    %208 = arith.divf %206, %207 : vector<1x128xf32>
    %209 = vector.extract_strided_slice %198 {offsets = [0, 128], sizes = [1, 128], strides = [1, 1]} : vector<1x384xf32> to vector<1x128xf32>
    %210 = vector.extract_strided_slice %200 {offsets = [0, 128], sizes = [1, 128], strides = [1, 1]} : vector<1x384xf32> to vector<1x128xf32>
    %211 = arith.addf %209, %210 : vector<1x128xf32>
    %212 = arith.negf %211 : vector<1x128xf32>
    %213 = math.exp %212 : vector<1x128xf32>
    %cst_43 = arith.constant 1.000000e+00 : f32
    %214 = vector.broadcast %cst_43 : f32 to vector<1x128xf32>
    %215 = arith.addf %214, %213 : vector<1x128xf32>
    %216 = arith.divf %214, %215 : vector<1x128xf32>
    %217 = vector.extract_strided_slice %198 {offsets = [0, 256], sizes = [1, 128], strides = [1, 1]} : vector<1x384xf32> to vector<1x128xf32>
    %218 = vector.extract_strided_slice %200 {offsets = [0, 256], sizes = [1, 128], strides = [1, 1]} : vector<1x384xf32> to vector<1x128xf32>
    %219 = arith.addf %218, %7 : vector<1x128xf32>
    %220 = arith.mulf %208, %219 : vector<1x128xf32>
    %221 = arith.addf %217, %220 : vector<1x128xf32>
    %222 = math.tanh %221 : vector<1x128xf32>
    %cst_44 = arith.constant 1.000000e+00 : f32
    %223 = vector.broadcast %cst_44 : f32 to vector<1x128xf32>
    %224 = arith.subf %223, %216 : vector<1x128xf32>
    %225 = arith.mulf %224, %222 : vector<1x128xf32>
    %226 = arith.mulf %216, %197 : vector<1x128xf32>
    %227 = arith.addf %225, %226 : vector<1x128xf32>
    %228 = vector.extract_strided_slice %17 {offsets = [7, 0], sizes = [1, 384], strides = [1, 1]} : vector<8x384xf32> to vector<1x384xf32>
    %229 = arith.truncf %227 : vector<1x128xf32> to vector<1x128xbf16>
    %cst_45 = arith.constant dense<0.000000e+00> : vector<1x384xf32>
    %230 = tpu.matmul %229, %3, %cst_45 {dimension_numbers = #tpu.dot_dimension_numbers<[1], [0], [0], [1], [0, 0, 1, 1], [], []>} : vector<1x128xbf16>, vector<128x384xbf16>, vector<1x384xf32> -> vector<1x384xf32>
    %231 = vector.extract_strided_slice %228 {offsets = [0, 0], sizes = [1, 128], strides = [1, 1]} : vector<1x384xf32> to vector<1x128xf32>
    %232 = vector.extract_strided_slice %230 {offsets = [0, 0], sizes = [1, 128], strides = [1, 1]} : vector<1x384xf32> to vector<1x128xf32>
    %233 = arith.addf %231, %232 : vector<1x128xf32>
    %234 = arith.negf %233 : vector<1x128xf32>
    %235 = math.exp %234 : vector<1x128xf32>
    %cst_46 = arith.constant 1.000000e+00 : f32
    %236 = vector.broadcast %cst_46 : f32 to vector<1x128xf32>
    %237 = arith.addf %236, %235 : vector<1x128xf32>
    %238 = arith.divf %236, %237 : vector<1x128xf32>
    %239 = vector.extract_strided_slice %228 {offsets = [0, 128], sizes = [1, 128], strides = [1, 1]} : vector<1x384xf32> to vector<1x128xf32>
    %240 = vector.extract_strided_slice %230 {offsets = [0, 128], sizes = [1, 128], strides = [1, 1]} : vector<1x384xf32> to vector<1x128xf32>
    %241 = arith.addf %239, %240 : vector<1x128xf32>
    %242 = arith.negf %241 : vector<1x128xf32>
    %243 = math.exp %242 : vector<1x128xf32>
    %cst_47 = arith.constant 1.000000e+00 : f32
    %244 = vector.broadcast %cst_47 : f32 to vector<1x128xf32>
    %245 = arith.addf %244, %243 : vector<1x128xf32>
    %246 = arith.divf %244, %245 : vector<1x128xf32>
    %247 = vector.extract_strided_slice %228 {offsets = [0, 256], sizes = [1, 128], strides = [1, 1]} : vector<1x384xf32> to vector<1x128xf32>
    %248 = vector.extract_strided_slice %230 {offsets = [0, 256], sizes = [1, 128], strides = [1, 1]} : vector<1x384xf32> to vector<1x128xf32>
    %249 = arith.addf %248, %7 : vector<1x128xf32>
    %250 = arith.mulf %238, %249 : vector<1x128xf32>
    %251 = arith.addf %247, %250 : vector<1x128xf32>
    %252 = math.tanh %251 : vector<1x128xf32>
    %cst_48 = arith.constant 1.000000e+00 : f32
    %253 = vector.broadcast %cst_48 : f32 to vector<1x128xf32>
    %254 = arith.subf %253, %246 : vector<1x128xf32>
    %255 = arith.mulf %254, %252 : vector<1x128xf32>
    %256 = arith.mulf %246, %227 : vector<1x128xf32>
    %257 = arith.addf %255, %256 : vector<1x128xf32>
    %258 = tpu.concatenate %47, %77, %107, %137, %167, %197, %227, %257 in 0 : vector<1x128xf32>, vector<1x128xf32>, vector<1x128xf32>, vector<1x128xf32>, vector<1x128xf32>, vector<1x128xf32>, vector<1x128xf32>, vector<1x128xf32> -> vector<8x128xf32>
    %259 = arith.truncf %258 : vector<8x128xf32> to vector<8x128xbf16>
    %260 = arith.index_cast %15 : i32 to index
    %c0_49 = arith.constant 0 : index
    %261 = vector.load %arg7[%260, %c0_49] : memref<8x128xbf16, #tpu.memory_space<vmem>>, vector<8x128xbf16>
    tpu.vector_store %arg7[%260, %c0_49], %259 {strides = array<i32>} : memref<8x128xbf16, #tpu.memory_space<vmem>>, vector<8x128xbf16>,
    %c1_i32 = arith.constant 1 : i32
    %c1 = arith.constant 1 : index
    %c0_50 = arith.constant 0 : index
    %c0_51 = arith.constant 0 : index
    %262 = vector.load %arg2[%c1, %c0_50, %c0_51] : memref<2x128x384xbf16, #tpu.memory_space<vmem>>, vector<1x128x384xbf16>
    %263 = vector.shape_cast %262 : vector<1x128x384xbf16> to vector<128x384xbf16>
    %c1_52 = arith.constant 1 : index
    %c0_53 = arith.constant 0 : index
    %c0_54 = arith.constant 0 : index
    %264 = vector.load %arg3[%c1_52, %c0_53, %c0_54] : memref<2x128x384xbf16, #tpu.memory_space<vmem>>, vector<1x128x384xbf16>
    %265 = vector.shape_cast %264 : vector<1x128x384xbf16> to vector<128x384xbf16>
    %c1_55 = arith.constant 1 : index
    %c0_56 = arith.constant 0 : index
    %c0_57 = arith.constant 0 : index
    %266 = vector.load %arg4[%c1_55, %c0_56, %c0_57] : memref<2x1x384xf32, #tpu.memory_space<vmem>>, vector<1x1x384xf32>
    %267 = vector.shape_cast %266 : vector<1x1x384xf32> to vector<1x384xf32>
    %c1_58 = arith.constant 1 : index
    %c0_59 = arith.constant 0 : index
    %c0_60 = arith.constant 0 : index
    %268 = vector.load %arg5[%c1_58, %c0_59, %c0_60] : memref<2x1x128xf32, #tpu.memory_space<vmem>>, vector<1x1x128xf32>
    %269 = vector.shape_cast %268 : vector<1x1x128xf32> to vector<1x128xf32>
    %c0_61 = arith.constant 0 : index
    %c0_62 = arith.constant 0 : index
    %270 = vector.load %arg7[%c0_61, %c0_62] : memref<8x128xbf16, #tpu.memory_space<vmem>>, vector<8x128xbf16>
    %cst_63 = arith.constant dense<0.000000e+00> : vector<8x384xf32>
    %271 = tpu.matmul %270, %263, %cst_63 {dimension_numbers = #tpu.dot_dimension_numbers<[1], [0], [0], [1], [0, 0, 1, 1], [], []>} : vector<8x128xbf16>, vector<128x384xbf16>, vector<8x384xf32> -> vector<8x384xf32>
    %272 = vector.broadcast %267 : vector<1x384xf32> to vector<8x384xf32>
    %273 = arith.addf %271, %272 : vector<8x384xf32>
    %c0_64 = arith.constant 0 : index
    %c0_65 = arith.constant 0 : index
    %274 = vector.load %arg8[%c0_64, %c0_65] : memref<8x384xf32, #tpu.memory_space<vmem>>, vector<8x384xf32>
    tpu.vector_store %arg8[%c0_64, %c0_65], %273 {strides = array<i32>} : memref<8x384xf32, #tpu.memory_space<vmem>>, vector<8x384xf32>,
    %cst_66 = arith.constant 0.000000e+00 : f32
    %275 = vector.broadcast %cst_66 : f32 to vector<1x128xf32>
    %c0_i32_67 = arith.constant 0 : i32
    %c8_i32_68 = arith.constant 8 : i32
    %276 = arith.muli %c0_i32_67, %c8_i32_68 : i32
    %277 = tpu.assume_multiple %276, 8 : i32
    %278 = arith.index_cast %277 : i32 to index
    %c0_69 = arith.constant 0 : index
    %279 = vector.load %arg8[%278, %c0_69] : memref<8x384xf32, #tpu.memory_space<vmem>>, vector<8x384xf32>
    %280 = vector.extract_strided_slice %279 {offsets = [0, 0], sizes = [1, 384], strides = [1, 1]} : vector<8x384xf32> to vector<1x384xf32>
    %281 = arith.truncf %275 : vector<1x128xf32> to vector<1x128xbf16>
    %cst_70 = arith.constant dense<0.000000e+00> : vector<1x384xf32>
    %282 = tpu.matmul %281, %265, %cst_70 {dimension_numbers = #tpu.dot_dimension_numbers<[1], [0], [0], [1], [0, 0, 1, 1], [], []>} : vector<1x128xbf16>, vector<128x384xbf16>, vector<1x384xf32> -> vector<1x384xf32>
    %283 = vector.extract_strided_slice %280 {offsets = [0, 0], sizes = [1, 128], strides = [1, 1]} : vector<1x384xf32> to vector<1x128xf32>
    %284 = vector.extract_strided_slice %282 {offsets = [0, 0], sizes = [1, 128], strides = [1, 1]} : vector<1x384xf32> to vector<1x128xf32>
    %285 = arith.addf %283, %284 : vector<1x128xf32>
    %286 = arith.negf %285 : vector<1x128xf32>
    %287 = math.exp %286 : vector<1x128xf32>
    %cst_71 = arith.constant 1.000000e+00 : f32
    %288 = vector.broadcast %cst_71 : f32 to vector<1x128xf32>
    %289 = arith.addf %288, %287 : vector<1x128xf32>
    %290 = arith.divf %288, %289 : vector<1x128xf32>
    %291 = vector.extract_strided_slice %280 {offsets = [0, 128], sizes = [1, 128], strides = [1, 1]} : vector<1x384xf32> to vector<1x128xf32>
    %292 = vector.extract_strided_slice %282 {offsets = [0, 128], sizes = [1, 128], strides = [1, 1]} : vector<1x384xf32> to vector<1x128xf32>
    %293 = arith.addf %291, %292 : vector<1x128xf32>
    %294 = arith.negf %293 : vector<1x128xf32>
    %295 = math.exp %294 : vector<1x128xf32>
    %cst_72 = arith.constant 1.000000e+00 : f32
    %296 = vector.broadcast %cst_72 : f32 to vector<1x128xf32>
    %297 = arith.addf %296, %295 : vector<1x128xf32>
    %298 = arith.divf %296, %297 : vector<1x128xf32>
    %299 = vector.extract_strided_slice %280 {offsets = [0, 256], sizes = [1, 128], strides = [1, 1]} : vector<1x384xf32> to vector<1x128xf32>
    %300 = vector.extract_strided_slice %282 {offsets = [0, 256], sizes = [1, 128], strides = [1, 1]} : vector<1x384xf32> to vector<1x128xf32>
    %301 = arith.addf %300, %269 : vector<1x128xf32>
    %302 = arith.mulf %290, %301 : vector<1x128xf32>
    %303 = arith.addf %299, %302 : vector<1x128xf32>
    %304 = math.tanh %303 : vector<1x128xf32>
    %cst_73 = arith.constant 1.000000e+00 : f32
    %305 = vector.broadcast %cst_73 : f32 to vector<1x128xf32>
    %306 = arith.subf %305, %298 : vector<1x128xf32>
    %307 = arith.mulf %306, %304 : vector<1x128xf32>
    %308 = arith.mulf %298, %275 : vector<1x128xf32>
    %309 = arith.addf %307, %308 : vector<1x128xf32>
    %310 = vector.extract_strided_slice %279 {offsets = [1, 0], sizes = [1, 384], strides = [1, 1]} : vector<8x384xf32> to vector<1x384xf32>
    %311 = arith.truncf %309 : vector<1x128xf32> to vector<1x128xbf16>
    %cst_74 = arith.constant dense<0.000000e+00> : vector<1x384xf32>
    %312 = tpu.matmul %311, %265, %cst_74 {dimension_numbers = #tpu.dot_dimension_numbers<[1], [0], [0], [1], [0, 0, 1, 1], [], []>} : vector<1x128xbf16>, vector<128x384xbf16>, vector<1x384xf32> -> vector<1x384xf32>
    %313 = vector.extract_strided_slice %310 {offsets = [0, 0], sizes = [1, 128], strides = [1, 1]} : vector<1x384xf32> to vector<1x128xf32>
    %314 = vector.extract_strided_slice %312 {offsets = [0, 0], sizes = [1, 128], strides = [1, 1]} : vector<1x384xf32> to vector<1x128xf32>
    %315 = arith.addf %313, %314 : vector<1x128xf32>
    %316 = arith.negf %315 : vector<1x128xf32>
    %317 = math.exp %316 : vector<1x128xf32>
    %cst_75 = arith.constant 1.000000e+00 : f32
    %318 = vector.broadcast %cst_75 : f32 to vector<1x128xf32>
    %319 = arith.addf %318, %317 : vector<1x128xf32>
    %320 = arith.divf %318, %319 : vector<1x128xf32>
    %321 = vector.extract_strided_slice %310 {offsets = [0, 128], sizes = [1, 128], strides = [1, 1]} : vector<1x384xf32> to vector<1x128xf32>
    %322 = vector.extract_strided_slice %312 {offsets = [0, 128], sizes = [1, 128], strides = [1, 1]} : vector<1x384xf32> to vector<1x128xf32>
    %323 = arith.addf %321, %322 : vector<1x128xf32>
    %324 = arith.negf %323 : vector<1x128xf32>
    %325 = math.exp %324 : vector<1x128xf32>
    %cst_76 = arith.constant 1.000000e+00 : f32
    %326 = vector.broadcast %cst_76 : f32 to vector<1x128xf32>
    %327 = arith.addf %326, %325 : vector<1x128xf32>
    %328 = arith.divf %326, %327 : vector<1x128xf32>
    %329 = vector.extract_strided_slice %310 {offsets = [0, 256], sizes = [1, 128], strides = [1, 1]} : vector<1x384xf32> to vector<1x128xf32>
    %330 = vector.extract_strided_slice %312 {offsets = [0, 256], sizes = [1, 128], strides = [1, 1]} : vector<1x384xf32> to vector<1x128xf32>
    %331 = arith.addf %330, %269 : vector<1x128xf32>
    %332 = arith.mulf %320, %331 : vector<1x128xf32>
    %333 = arith.addf %329, %332 : vector<1x128xf32>
    %334 = math.tanh %333 : vector<1x128xf32>
    %cst_77 = arith.constant 1.000000e+00 : f32
    %335 = vector.broadcast %cst_77 : f32 to vector<1x128xf32>
    %336 = arith.subf %335, %328 : vector<1x128xf32>
    %337 = arith.mulf %336, %334 : vector<1x128xf32>
    %338 = arith.mulf %328, %309 : vector<1x128xf32>
    %339 = arith.addf %337, %338 : vector<1x128xf32>
    %340 = vector.extract_strided_slice %279 {offsets = [2, 0], sizes = [1, 384], strides = [1, 1]} : vector<8x384xf32> to vector<1x384xf32>
    %341 = arith.truncf %339 : vector<1x128xf32> to vector<1x128xbf16>
    %cst_78 = arith.constant dense<0.000000e+00> : vector<1x384xf32>
    %342 = tpu.matmul %341, %265, %cst_78 {dimension_numbers = #tpu.dot_dimension_numbers<[1], [0], [0], [1], [0, 0, 1, 1], [], []>} : vector<1x128xbf16>, vector<128x384xbf16>, vector<1x384xf32> -> vector<1x384xf32>
    %343 = vector.extract_strided_slice %340 {offsets = [0, 0], sizes = [1, 128], strides = [1, 1]} : vector<1x384xf32> to vector<1x128xf32>
    %344 = vector.extract_strided_slice %342 {offsets = [0, 0], sizes = [1, 128], strides = [1, 1]} : vector<1x384xf32> to vector<1x128xf32>
    %345 = arith.addf %343, %344 : vector<1x128xf32>
    %346 = arith.negf %345 : vector<1x128xf32>
    %347 = math.exp %346 : vector<1x128xf32>
    %cst_79 = arith.constant 1.000000e+00 : f32
    %348 = vector.broadcast %cst_79 : f32 to vector<1x128xf32>
    %349 = arith.addf %348, %347 : vector<1x128xf32>
    %350 = arith.divf %348, %349 : vector<1x128xf32>
    %351 = vector.extract_strided_slice %340 {offsets = [0, 128], sizes = [1, 128], strides = [1, 1]} : vector<1x384xf32> to vector<1x128xf32>
    %352 = vector.extract_strided_slice %342 {offsets = [0, 128], sizes = [1, 128], strides = [1, 1]} : vector<1x384xf32> to vector<1x128xf32>
    %353 = arith.addf %351, %352 : vector<1x128xf32>
    %354 = arith.negf %353 : vector<1x128xf32>
    %355 = math.exp %354 : vector<1x128xf32>
    %cst_80 = arith.constant 1.000000e+00 : f32
    %356 = vector.broadcast %cst_80 : f32 to vector<1x128xf32>
    %357 = arith.addf %356, %355 : vector<1x128xf32>
    %358 = arith.divf %356, %357 : vector<1x128xf32>
    %359 = vector.extract_strided_slice %340 {offsets = [0, 256], sizes = [1, 128], strides = [1, 1]} : vector<1x384xf32> to vector<1x128xf32>
    %360 = vector.extract_strided_slice %342 {offsets = [0, 256], sizes = [1, 128], strides = [1, 1]} : vector<1x384xf32> to vector<1x128xf32>
    %361 = arith.addf %360, %269 : vector<1x128xf32>
    %362 = arith.mulf %350, %361 : vector<1x128xf32>
    %363 = arith.addf %359, %362 : vector<1x128xf32>
    %364 = math.tanh %363 : vector<1x128xf32>
    %cst_81 = arith.constant 1.000000e+00 : f32
    %365 = vector.broadcast %cst_81 : f32 to vector<1x128xf32>
    %366 = arith.subf %365, %358 : vector<1x128xf32>
    %367 = arith.mulf %366, %364 : vector<1x128xf32>
    %368 = arith.mulf %358, %339 : vector<1x128xf32>
    %369 = arith.addf %367, %368 : vector<1x128xf32>
    %370 = vector.extract_strided_slice %279 {offsets = [3, 0], sizes = [1, 384], strides = [1, 1]} : vector<8x384xf32> to vector<1x384xf32>
    %371 = arith.truncf %369 : vector<1x128xf32> to vector<1x128xbf16>
    %cst_82 = arith.constant dense<0.000000e+00> : vector<1x384xf32>
    %372 = tpu.matmul %371, %265, %cst_82 {dimension_numbers = #tpu.dot_dimension_numbers<[1], [0], [0], [1], [0, 0, 1, 1], [], []>} : vector<1x128xbf16>, vector<128x384xbf16>, vector<1x384xf32> -> vector<1x384xf32>
    %373 = vector.extract_strided_slice %370 {offsets = [0, 0], sizes = [1, 128], strides = [1, 1]} : vector<1x384xf32> to vector<1x128xf32>
    %374 = vector.extract_strided_slice %372 {offsets = [0, 0], sizes = [1, 128], strides = [1, 1]} : vector<1x384xf32> to vector<1x128xf32>
    %375 = arith.addf %373, %374 : vector<1x128xf32>
    %376 = arith.negf %375 : vector<1x128xf32>
    %377 = math.exp %376 : vector<1x128xf32>
    %cst_83 = arith.constant 1.000000e+00 : f32
    %378 = vector.broadcast %cst_83 : f32 to vector<1x128xf32>
    %379 = arith.addf %378, %377 : vector<1x128xf32>
    %380 = arith.divf %378, %379 : vector<1x128xf32>
    %381 = vector.extract_strided_slice %370 {offsets = [0, 128], sizes = [1, 128], strides = [1, 1]} : vector<1x384xf32> to vector<1x128xf32>
    %382 = vector.extract_strided_slice %372 {offsets = [0, 128], sizes = [1, 128], strides = [1, 1]} : vector<1x384xf32> to vector<1x128xf32>
    %383 = arith.addf %381, %382 : vector<1x128xf32>
    %384 = arith.negf %383 : vector<1x128xf32>
    %385 = math.exp %384 : vector<1x128xf32>
    %cst_84 = arith.constant 1.000000e+00 : f32
    %386 = vector.broadcast %cst_84 : f32 to vector<1x128xf32>
    %387 = arith.addf %386, %385 : vector<1x128xf32>
    %388 = arith.divf %386, %387 : vector<1x128xf32>
    %389 = vector.extract_strided_slice %370 {offsets = [0, 256], sizes = [1, 128], strides = [1, 1]} : vector<1x384xf32> to vector<1x128xf32>
    %390 = vector.extract_strided_slice %372 {offsets = [0, 256], sizes = [1, 128], strides = [1, 1]} : vector<1x384xf32> to vector<1x128xf32>
    %391 = arith.addf %390, %269 : vector<1x128xf32>
    %392 = arith.mulf %380, %391 : vector<1x128xf32>
    %393 = arith.addf %389, %392 : vector<1x128xf32>
    %394 = math.tanh %393 : vector<1x128xf32>
    %cst_85 = arith.constant 1.000000e+00 : f32
    %395 = vector.broadcast %cst_85 : f32 to vector<1x128xf32>
    %396 = arith.subf %395, %388 : vector<1x128xf32>
    %397 = arith.mulf %396, %394 : vector<1x128xf32>
    %398 = arith.mulf %388, %369 : vector<1x128xf32>
    %399 = arith.addf %397, %398 : vector<1x128xf32>
    %400 = vector.extract_strided_slice %279 {offsets = [4, 0], sizes = [1, 384], strides = [1, 1]} : vector<8x384xf32> to vector<1x384xf32>
    %401 = arith.truncf %399 : vector<1x128xf32> to vector<1x128xbf16>
    %cst_86 = arith.constant dense<0.000000e+00> : vector<1x384xf32>
    %402 = tpu.matmul %401, %265, %cst_86 {dimension_numbers = #tpu.dot_dimension_numbers<[1], [0], [0], [1], [0, 0, 1, 1], [], []>} : vector<1x128xbf16>, vector<128x384xbf16>, vector<1x384xf32> -> vector<1x384xf32>
    %403 = vector.extract_strided_slice %400 {offsets = [0, 0], sizes = [1, 128], strides = [1, 1]} : vector<1x384xf32> to vector<1x128xf32>
    %404 = vector.extract_strided_slice %402 {offsets = [0, 0], sizes = [1, 128], strides = [1, 1]} : vector<1x384xf32> to vector<1x128xf32>
    %405 = arith.addf %403, %404 : vector<1x128xf32>
    %406 = arith.negf %405 : vector<1x128xf32>
    %407 = math.exp %406 : vector<1x128xf32>
    %cst_87 = arith.constant 1.000000e+00 : f32
    %408 = vector.broadcast %cst_87 : f32 to vector<1x128xf32>
    %409 = arith.addf %408, %407 : vector<1x128xf32>
    %410 = arith.divf %408, %409 : vector<1x128xf32>
    %411 = vector.extract_strided_slice %400 {offsets = [0, 128], sizes = [1, 128], strides = [1, 1]} : vector<1x384xf32> to vector<1x128xf32>
    %412 = vector.extract_strided_slice %402 {offsets = [0, 128], sizes = [1, 128], strides = [1, 1]} : vector<1x384xf32> to vector<1x128xf32>
    %413 = arith.addf %411, %412 : vector<1x128xf32>
    %414 = arith.negf %413 : vector<1x128xf32>
    %415 = math.exp %414 : vector<1x128xf32>
    %cst_88 = arith.constant 1.000000e+00 : f32
    %416 = vector.broadcast %cst_88 : f32 to vector<1x128xf32>
    %417 = arith.addf %416, %415 : vector<1x128xf32>
    %418 = arith.divf %416, %417 : vector<1x128xf32>
    %419 = vector.extract_strided_slice %400 {offsets = [0, 256], sizes = [1, 128], strides = [1, 1]} : vector<1x384xf32> to vector<1x128xf32>
    %420 = vector.extract_strided_slice %402 {offsets = [0, 256], sizes = [1, 128], strides = [1, 1]} : vector<1x384xf32> to vector<1x128xf32>
    %421 = arith.addf %420, %269 : vector<1x128xf32>
    %422 = arith.mulf %410, %421 : vector<1x128xf32>
    %423 = arith.addf %419, %422 : vector<1x128xf32>
    %424 = math.tanh %423 : vector<1x128xf32>
    %cst_89 = arith.constant 1.000000e+00 : f32
    %425 = vector.broadcast %cst_89 : f32 to vector<1x128xf32>
    %426 = arith.subf %425, %418 : vector<1x128xf32>
    %427 = arith.mulf %426, %424 : vector<1x128xf32>
    %428 = arith.mulf %418, %399 : vector<1x128xf32>
    %429 = arith.addf %427, %428 : vector<1x128xf32>
    %430 = vector.extract_strided_slice %279 {offsets = [5, 0], sizes = [1, 384], strides = [1, 1]} : vector<8x384xf32> to vector<1x384xf32>
    %431 = arith.truncf %429 : vector<1x128xf32> to vector<1x128xbf16>
    %cst_90 = arith.constant dense<0.000000e+00> : vector<1x384xf32>
    %432 = tpu.matmul %431, %265, %cst_90 {dimension_numbers = #tpu.dot_dimension_numbers<[1], [0], [0], [1], [0, 0, 1, 1], [], []>} : vector<1x128xbf16>, vector<128x384xbf16>, vector<1x384xf32> -> vector<1x384xf32>
    %433 = vector.extract_strided_slice %430 {offsets = [0, 0], sizes = [1, 128], strides = [1, 1]} : vector<1x384xf32> to vector<1x128xf32>
    %434 = vector.extract_strided_slice %432 {offsets = [0, 0], sizes = [1, 128], strides = [1, 1]} : vector<1x384xf32> to vector<1x128xf32>
    %435 = arith.addf %433, %434 : vector<1x128xf32>
    %436 = arith.negf %435 : vector<1x128xf32>
    %437 = math.exp %436 : vector<1x128xf32>
    %cst_91 = arith.constant 1.000000e+00 : f32
    %438 = vector.broadcast %cst_91 : f32 to vector<1x128xf32>
    %439 = arith.addf %438, %437 : vector<1x128xf32>
    %440 = arith.divf %438, %439 : vector<1x128xf32>
    %441 = vector.extract_strided_slice %430 {offsets = [0, 128], sizes = [1, 128], strides = [1, 1]} : vector<1x384xf32> to vector<1x128xf32>
    %442 = vector.extract_strided_slice %432 {offsets = [0, 128], sizes = [1, 128], strides = [1, 1]} : vector<1x384xf32> to vector<1x128xf32>
    %443 = arith.addf %441, %442 : vector<1x128xf32>
    %444 = arith.negf %443 : vector<1x128xf32>
    %445 = math.exp %444 : vector<1x128xf32>
    %cst_92 = arith.constant 1.000000e+00 : f32
    %446 = vector.broadcast %cst_92 : f32 to vector<1x128xf32>
    %447 = arith.addf %446, %445 : vector<1x128xf32>
    %448 = arith.divf %446, %447 : vector<1x128xf32>
    %449 = vector.extract_strided_slice %430 {offsets = [0, 256], sizes = [1, 128], strides = [1, 1]} : vector<1x384xf32> to vector<1x128xf32>
    %450 = vector.extract_strided_slice %432 {offsets = [0, 256], sizes = [1, 128], strides = [1, 1]} : vector<1x384xf32> to vector<1x128xf32>
    %451 = arith.addf %450, %269 : vector<1x128xf32>
    %452 = arith.mulf %440, %451 : vector<1x128xf32>
    %453 = arith.addf %449, %452 : vector<1x128xf32>
    %454 = math.tanh %453 : vector<1x128xf32>
    %cst_93 = arith.constant 1.000000e+00 : f32
    %455 = vector.broadcast %cst_93 : f32 to vector<1x128xf32>
    %456 = arith.subf %455, %448 : vector<1x128xf32>
    %457 = arith.mulf %456, %454 : vector<1x128xf32>
    %458 = arith.mulf %448, %429 : vector<1x128xf32>
    %459 = arith.addf %457, %458 : vector<1x128xf32>
    %460 = vector.extract_strided_slice %279 {offsets = [6, 0], sizes = [1, 384], strides = [1, 1]} : vector<8x384xf32> to vector<1x384xf32>
    %461 = arith.truncf %459 : vector<1x128xf32> to vector<1x128xbf16>
    %cst_94 = arith.constant dense<0.000000e+00> : vector<1x384xf32>
    %462 = tpu.matmul %461, %265, %cst_94 {dimension_numbers = #tpu.dot_dimension_numbers<[1], [0], [0], [1], [0, 0, 1, 1], [], []>} : vector<1x128xbf16>, vector<128x384xbf16>, vector<1x384xf32> -> vector<1x384xf32>
    %463 = vector.extract_strided_slice %460 {offsets = [0, 0], sizes = [1, 128], strides = [1, 1]} : vector<1x384xf32> to vector<1x128xf32>
    %464 = vector.extract_strided_slice %462 {offsets = [0, 0], sizes = [1, 128], strides = [1, 1]} : vector<1x384xf32> to vector<1x128xf32>
    %465 = arith.addf %463, %464 : vector<1x128xf32>
    %466 = arith.negf %465 : vector<1x128xf32>
    %467 = math.exp %466 : vector<1x128xf32>
    %cst_95 = arith.constant 1.000000e+00 : f32
    %468 = vector.broadcast %cst_95 : f32 to vector<1x128xf32>
    %469 = arith.addf %468, %467 : vector<1x128xf32>
    %470 = arith.divf %468, %469 : vector<1x128xf32>
    %471 = vector.extract_strided_slice %460 {offsets = [0, 128], sizes = [1, 128], strides = [1, 1]} : vector<1x384xf32> to vector<1x128xf32>
    %472 = vector.extract_strided_slice %462 {offsets = [0, 128], sizes = [1, 128], strides = [1, 1]} : vector<1x384xf32> to vector<1x128xf32>
    %473 = arith.addf %471, %472 : vector<1x128xf32>
    %474 = arith.negf %473 : vector<1x128xf32>
    %475 = math.exp %474 : vector<1x128xf32>
    %cst_96 = arith.constant 1.000000e+00 : f32
    %476 = vector.broadcast %cst_96 : f32 to vector<1x128xf32>
    %477 = arith.addf %476, %475 : vector<1x128xf32>
    %478 = arith.divf %476, %477 : vector<1x128xf32>
    %479 = vector.extract_strided_slice %460 {offsets = [0, 256], sizes = [1, 128], strides = [1, 1]} : vector<1x384xf32> to vector<1x128xf32>
    %480 = vector.extract_strided_slice %462 {offsets = [0, 256], sizes = [1, 128], strides = [1, 1]} : vector<1x384xf32> to vector<1x128xf32>
    %481 = arith.addf %480, %269 : vector<1x128xf32>
    %482 = arith.mulf %470, %481 : vector<1x128xf32>
    %483 = arith.addf %479, %482 : vector<1x128xf32>
    %484 = math.tanh %483 : vector<1x128xf32>
    %cst_97 = arith.constant 1.000000e+00 : f32
    %485 = vector.broadcast %cst_97 : f32 to vector<1x128xf32>
    %486 = arith.subf %485, %478 : vector<1x128xf32>
    %487 = arith.mulf %486, %484 : vector<1x128xf32>
    %488 = arith.mulf %478, %459 : vector<1x128xf32>
    %489 = arith.addf %487, %488 : vector<1x128xf32>
    %490 = vector.extract_strided_slice %279 {offsets = [7, 0], sizes = [1, 384], strides = [1, 1]} : vector<8x384xf32> to vector<1x384xf32>
    %491 = arith.truncf %489 : vector<1x128xf32> to vector<1x128xbf16>
    %cst_98 = arith.constant dense<0.000000e+00> : vector<1x384xf32>
    %492 = tpu.matmul %491, %265, %cst_98 {dimension_numbers = #tpu.dot_dimension_numbers<[1], [0], [0], [1], [0, 0, 1, 1], [], []>} : vector<1x128xbf16>, vector<128x384xbf16>, vector<1x384xf32> -> vector<1x384xf32>
    %493 = vector.extract_strided_slice %490 {offsets = [0, 0], sizes = [1, 128], strides = [1, 1]} : vector<1x384xf32> to vector<1x128xf32>
    %494 = vector.extract_strided_slice %492 {offsets = [0, 0], sizes = [1, 128], strides = [1, 1]} : vector<1x384xf32> to vector<1x128xf32>
    %495 = arith.addf %493, %494 : vector<1x128xf32>
    %496 = arith.negf %495 : vector<1x128xf32>
    %497 = math.exp %496 : vector<1x128xf32>
    %cst_99 = arith.constant 1.000000e+00 : f32
    %498 = vector.broadcast %cst_99 : f32 to vector<1x128xf32>
    %499 = arith.addf %498, %497 : vector<1x128xf32>
    %500 = arith.divf %498, %499 : vector<1x128xf32>
    %501 = vector.extract_strided_slice %490 {offsets = [0, 128], sizes = [1, 128], strides = [1, 1]} : vector<1x384xf32> to vector<1x128xf32>
    %502 = vector.extract_strided_slice %492 {offsets = [0, 128], sizes = [1, 128], strides = [1, 1]} : vector<1x384xf32> to vector<1x128xf32>
    %503 = arith.addf %501, %502 : vector<1x128xf32>
    %504 = arith.negf %503 : vector<1x128xf32>
    %505 = math.exp %504 : vector<1x128xf32>
    %cst_100 = arith.constant 1.000000e+00 : f32
    %506 = vector.broadcast %cst_100 : f32 to vector<1x128xf32>
    %507 = arith.addf %506, %505 : vector<1x128xf32>
    %508 = arith.divf %506, %507 : vector<1x128xf32>
    %509 = vector.extract_strided_slice %490 {offsets = [0, 256], sizes = [1, 128], strides = [1, 1]} : vector<1x384xf32> to vector<1x128xf32>
    %510 = vector.extract_strided_slice %492 {offsets = [0, 256], sizes = [1, 128], strides = [1, 1]} : vector<1x384xf32> to vector<1x128xf32>
    %511 = arith.addf %510, %269 : vector<1x128xf32>
    %512 = arith.mulf %500, %511 : vector<1x128xf32>
    %513 = arith.addf %509, %512 : vector<1x128xf32>
    %514 = math.tanh %513 : vector<1x128xf32>
    %cst_101 = arith.constant 1.000000e+00 : f32
    %515 = vector.broadcast %cst_101 : f32 to vector<1x128xf32>
    %516 = arith.subf %515, %508 : vector<1x128xf32>
    %517 = arith.mulf %516, %514 : vector<1x128xf32>
    %518 = arith.mulf %508, %489 : vector<1x128xf32>
    %519 = arith.addf %517, %518 : vector<1x128xf32>
    %c1_i32_102 = arith.constant 1 : i32
    %520 = vector.shape_cast %257 : vector<1x128xf32> to vector<1x1x128xf32>
    %521 = vector.shape_cast %519 : vector<1x128xf32> to vector<1x1x128xf32>
    %522 = tpu.concatenate %520, %521 in 0 : vector<1x1x128xf32>, vector<1x1x128xf32> -> vector<2x1x128xf32>
    %c0_103 = arith.constant 0 : index
    %c0_104 = arith.constant 0 : index
    %c0_105 = arith.constant 0 : index
    %523 = vector.load %arg6[%c0_103, %c0_104, %c0_105] : memref<2x1x128xf32, #tpu.memory_space<vmem>>, vector<2x1x128xf32>
    tpu.vector_store %arg6[%c0_103, %c0_104, %c0_105], %522 {strides = array<i32>} : memref<2x1x128xf32, #tpu.memory_space<vmem>>, vector<2x1x128xf32>,
    return
  }
  func.func @transform_0(%arg0: i32) -> (i32, i32) {
    %c0_i32 = arith.constant 0 : i32
    %c0_i32_0 = arith.constant 0 : i32
    %c0_i32_1 = arith.constant 0 : i32
    return %c0_i32, %c0_i32_0 : i32, i32
  }
  func.func @transform_1(%arg0: i32) -> (i32, i32, i32) {
    %c0_i32 = arith.constant 0 : i32
    %c0_i32_0 = arith.constant 0 : i32
    %c0_i32_1 = arith.constant 0 : i32
    %c0_i32_2 = arith.constant 0 : i32
    return %c0_i32, %c0_i32_0, %c0_i32_1 : i32, i32, i32
  }
  func.func @transform_2(%arg0: i32) -> (i32, i32, i32) {
    %c0_i32 = arith.constant 0 : i32
    %c0_i32_0 = arith.constant 0 : i32
    %c0_i32_1 = arith.constant 0 : i32
    %c0_i32_2 = arith.constant 0 : i32
    return %c0_i32, %c0_i32_0, %c0_i32_1 : i32, i32, i32
  }
  func.func @transform_3(%arg0: i32) -> (i32, i32, i32) {
    %c0_i32 = arith.constant 0 : i32
    %c0_i32_0 = arith.constant 0 : i32
    %c0_i32_1 = arith.constant 0 : i32
    %c0_i32_2 = arith.constant 0 : i32
    return %c0_i32, %c0_i32_0, %c0_i32_1 : i32, i32, i32
  }
  func.func @transform_4(%arg0: i32) -> (i32, i32, i32) {
    %c0_i32 = arith.constant 0 : i32
    %c0_i32_0 = arith.constant 0 : i32
    %c0_i32_1 = arith.constant 0 : i32
    %c0_i32_2 = arith.constant 0 : i32
    return %c0_i32, %c0_i32_0, %c0_i32_1 : i32, i32, i32
  }
  func.func @transform_5(%arg0: i32) -> (i32, i32, i32) {
    %c0_i32 = arith.constant 0 : i32
    %c0_i32_0 = arith.constant 0 : i32
    %c0_i32_1 = arith.constant 0 : i32
    %c0_i32_2 = arith.constant 0 : i32
    return %c0_i32, %c0_i32_0, %c0_i32_1 : i32, i32, i32
  }
}

</mosaic_0001>

<llo_original>
// kernel: tpu_custom_call.1
$region0: #{tpu_custom_call.1}
  #allocation0 [shape = 'u32[]', space=smem, size = 0x4, offset = 0x4, fixed_abs, tag = 'smem constant byte address 0x4 - core index']
  #allocation1 [shape = 'u32[144,128]{1,0:T(1,128)}', space=vmem, size = 0x12000, scoped, tag = 'internal scratch']
  #allocation2 [shape = 'bf16[8,128]{1,0:T(8,128)(2,1)}', space=vmem, size = 0x800, scoped, tag = 'scratch operand']
  #allocation3 [shape = 'f32[8,384]{1,0:T(8,128)}', space=vmem, size = 0x3000, scoped, tag = 'scratch operand']
  %s0 = inlined_call_operand.hbm [shape: bf16[8,128], index: 0, kind: input, shape index: {}]
  %s1 = inlined_call_operand.hbm [shape: bf16[2,128,384], index: 1, kind: input, shape index: {}]
  %s2 = inlined_call_operand.hbm [shape: bf16[2,128,384], index: 2, kind: input, shape index: {}]
  %s3 = inlined_call_operand.vmem [shape: f32[2,1,384], index: 3, kind: input, shape index: {}]
  %s4 = inlined_call_operand.vmem [shape: f32[2,1,128], index: 4, kind: input, shape index: {}]
  %s5 = inlined_call_operand.hbm [shape: f32[2,1,128], index: 5, kind: output, shape index: {}]
  %s6 = sld [smem:[#allocation0]]
  $region42: #{tpu_custom_call.1} parent=0
    _
  %s8 = ssub.s32 1, %s6
  %s9 = scalar_select 0, %s8, %s6
  $region1: #{tpu_custom_call.1} parent=0
    #allocation4 [shape = 'u8[2048]{0}', space=vmem, size = 0x800, scoped, tag = 'input window, operand 0, single buffered']
    #allocation5 [shape = 's32[1]{0}', space=sflag, size = 0x4, scoped, tag = 'scoped memory for tpu_custom_call.1']
    #allocation6 [shape = 's32[1]{0}', space=sflag, size = 0x4, scoped, tag = 'scoped memory for tpu_custom_call.1']
    #allocation7 [shape = 'u8[196608]{0}', space=vmem, size = 0x30000, scoped, tag = 'input window, operand 1, single buffered']
    #allocation8 [shape = 's32[1]{0}', space=sflag, size = 0x4, scoped, tag = 'scoped memory for tpu_custom_call.1']
    #allocation9 [shape = 'u8[196608]{0}', space=vmem, size = 0x30000, scoped, tag = 'input window, operand 2, single buffered']
    #allocation10 [shape = 'u8[1024]{0}', space=vmem, size = 0x400, scoped, tag = 'output window, operand 0, single buffered']
    %10 = vsyncpa [#allocation5], 0
    %11 = vsyncpa [#allocation8], 0
    %12 = vsyncpa [#allocation6], 0
    // Predicated region
    $region2: #{tpu_custom_call.1} parent=1 // pred_check
      _
    $region3: #{tpu_custom_call.1} parent=1 // pred_check_branch
      %14 = sbr.rel (0) target = $region5
    $region4: #{tpu_custom_call.1} parent=1 // pred_region
      %s16 = ssub.s32 64, 64
      %17 = vsyncadd [#allocation5], %s16
      %s19 = sshll.u32 [#allocation4], 4
      %s20 = int_to_ptr.vmem [resolvable:$true] %s19
      %22 = dma.hbm_to_vmem [thread:$0]  %s0, 64, %s20, [#allocation5]
    $region5: #{tpu_custom_call.1} parent=1 // pred_fallthru
      _
    // Predicated region
    $region6: #{tpu_custom_call.1} parent=1 // pred_check
      _
    $region7: #{tpu_custom_call.1} parent=1 // pred_check_branch
      %24 = sbr.rel (0) target = $region9
    $region8: #{tpu_custom_call.1} parent=1 // pred_region
      %s26 = ssub.s32 6144, 6144
      %27 = vsyncadd [#allocation8], %s26
      %s28 = sshll.u32 [#allocation7], 4
      %s29 = int_to_ptr.vmem [resolvable:$true] %s28
      %34 = dma.hbm_to_vmem [thread:$0]  %s1, 6144, %s29, [#allocation8], 192, 192, 12
    $region9: #{tpu_custom_call.1} parent=1 // pred_fallthru
      _
    // Predicated region
    $region10: #{tpu_custom_call.1} parent=1 // pred_check
      _
    $region11: #{tpu_custom_call.1} parent=1 // pred_check_branch
      %36 = sbr.rel (0) target = $region13
    $region12: #{tpu_custom_call.1} parent=1 // pred_region
      %s38 = ssub.s32 6144, 6144
      %39 = vsyncadd [#allocation8], %s38
      %s40 = sshll.u32 [#allocation9], 4
      %s41 = int_to_ptr.vmem [resolvable:$true] %s40
      %46 = dma.hbm_to_vmem [thread:$0]  %s2, 6144, %s41, [#allocation8], 192, 192, 12
    $region13: #{tpu_custom_call.1} parent=1 // pred_fallthru
      _
    // Predicated region
    $region14: #{tpu_custom_call.1} parent=1 // pred_check
      _
    $region15: #{tpu_custom_call.1} parent=1 // pred_check_branch
      %48 = sbr.rel (0) target = $region17
    $region16: #{tpu_custom_call.1} parent=1 // pred_region
      _
    $region17: #{tpu_custom_call.1} parent=1 // pred_fallthru
      _
    // Predicated region
    $region18: #{tpu_custom_call.1} parent=1 // pred_check
      _
    $region19: #{tpu_custom_call.1} parent=1 // pred_check_branch
      %50 = sbr.rel (0) target = $region21
    $region20: #{tpu_custom_call.1} parent=1 // pred_region
      _
    $region21: #{tpu_custom_call.1} parent=1 // pred_fallthru
      _
    // Predicated region
    $region22: #{tpu_custom_call.1} parent=1 // pred_check
      _
    $region23: #{tpu_custom_call.1} parent=1 // pred_check_branch
      %52 = sbr.rel (0) target = $region25
    $region24: #{tpu_custom_call.1} parent=1 // pred_region
      %53 = dma.done [#allocation5], 64
    $region25: #{tpu_custom_call.1} parent=1 // pred_fallthru
      _
    // Predicated region
    $region26: #{tpu_custom_call.1} parent=1 // pred_check
      _
    $region27: #{tpu_custom_call.1} parent=1 // pred_check_branch
      %55 = sbr.rel (0) target = $region29
    $region28: #{tpu_custom_call.1} parent=1 // pred_region
      %56 = dma.done [#allocation8], 6144
    $region29: #{tpu_custom_call.1} parent=1 // pred_fallthru
      _
    // Predicated region
    $region30: #{tpu_custom_call.1} parent=1 // pred_check
      _
    $region31: #{tpu_custom_call.1} parent=1 // pred_check_branch
      %58 = sbr.rel (0) target = $region33
    $region32: #{tpu_custom_call.1} parent=1 // pred_region
      %59 = dma.done [#allocation8], 6144
    $region33: #{tpu_custom_call.1} parent=1 // pred_fallthru
      _
    %v61 = vld [vmem:[#allocation7] sm:$0xff]
    %v62 = vld [vmem:[#allocation7 + $0x8] sm:$0xf]
    %v63 = vld [vmem:[#allocation7 + $0xc] sm:$0xff]
    %v64 = vld [vmem:[#allocation7 + $0x14] sm:$0xf]
    %v65 = vld [vmem:[#allocation7 + $0x18] sm:$0xff]
    %v66 = vld [vmem:[#allocation7 + $0x20] sm:$0xf]
    %v67 = vld [vmem:[#allocation7 + $0x24] sm:$0xff]
    %v68 = vld [vmem:[#allocation7 + $0x2c] sm:$0xf]
    %v69 = vld [vmem:[#allocation7 + $0x30] sm:$0xff]
    %v70 = vld [vmem:[#allocation7 + $0x38] sm:$0xf]
    %v71 = vld [vmem:[#allocation7 + $0x3c] sm:$0xff]
    %v72 = vld [vmem:[#allocation7 + $0x44] sm:$0xf]
    %v73 = vld [vmem:[#allocation7 + $0x48] sm:$0xff]
    %v74 = vld [vmem:[#allocation7 + $0x50] sm:$0xf]
    %v75 = vld [vmem:[#allocation7 + $0x54] sm:$0xff]
    %v76 = vld [vmem:[#allocation7 + $0x5c] sm:$0xf]
    %v77 = vld [vmem:[#allocation7 + $0x60] sm:$0xff]
    %v78 = vld [vmem:[#allocation7 + $0x68] sm:$0xf]
    %v79 = vld [vmem:[#allocation7 + $0x6c] sm:$0xff]
    %v80 = vld [vmem:[#allocation7 + $0x74] sm:$0xf]
    %v81 = vld [vmem:[#allocation7 + $0x78] sm:$0xff]
    %v82 = vld [vmem:[#allocation7 + $0x80] sm:$0xf]
    %v83 = vld [vmem:[#allocation7 + $0x84] sm:$0xff]
    %v84 = vld [vmem:[#allocation7 + $0x8c] sm:$0xf]
    %v85 = vld [vmem:[#allocation7 + $0x90] sm:$0xff]
    %v86 = vld [vmem:[#allocation7 + $0x98] sm:$0xf]
    %v87 = vld [vmem:[#allocation7 + $0x9c] sm:$0xff]
    %v88 = vld [vmem:[#allocation7 + $0xa4] sm:$0xf]
    %v89 = vld [vmem:[#allocation7 + $0xa8] sm:$0xff]
    %v90 = vld [vmem:[#allocation7 + $0xb0] sm:$0xf]
    %v91 = vld [vmem:[#allocation7 + $0xb4] sm:$0xff]
    %v92 = vld [vmem:[#allocation7 + $0xbc] sm:$0xf]
    %v93 = vld [vmem:[#allocation9] sm:$0xff]
    %v94 = vld [vmem:[#allocation9 + $0x8] sm:$0xf]
    %v95 = vld [vmem:[#allocation9 + $0xc] sm:$0xff]
    %v96 = vld [vmem:[#allocation9 + $0x14] sm:$0xf]
    %v97 = vld [vmem:[#allocation9 + $0x18] sm:$0xff]
    %v98 = vld [vmem:[#allocation9 + $0x20] sm:$0xf]
    %v99 = vld [vmem:[#allocation9 + $0x24] sm:$0xff]
    %v100 = vld [vmem:[#allocation9 + $0x2c] sm:$0xf]
    %v101 = vld [vmem:[#allocation9 + $0x30] sm:$0xff]
    %v102 = vld [vmem:[#allocation9 + $0x38] sm:$0xf]
    %v103 = vld [vmem:[#allocation9 + $0x3c] sm:$0xff]
    %v104 = vld [vmem:[#allocation9 + $0x44] sm:$0xf]
    %v105 = vld [vmem:[#allocation9 + $0x48] sm:$0xff]
    %v106 = vld [vmem:[#allocation9 + $0x50] sm:$0xf]
    %v107 = vld [vmem:[#allocation9 + $0x54] sm:$0xff]
    %v108 = vld [vmem:[#allocation9 + $0x5c] sm:$0xf]
    %v109 = vld [vmem:[#allocation9 + $0x60] sm:$0xff]
    %v110 = vld [vmem:[#allocation9 + $0x68] sm:$0xf]
    %v111 = vld [vmem:[#allocation9 + $0x6c] sm:$0xff]
    %v112 = vld [vmem:[#allocation9 + $0x74] sm:$0xf]
    %v113 = vld [vmem:[#allocation9 + $0x78] sm:$0xff]
    %v114 = vld [vmem:[#allocation9 + $0x80] sm:$0xf]
    %v115 = vld [vmem:[#allocation9 + $0x84] sm:$0xff]
    %v116 = vld [vmem:[#allocation9 + $0x8c] sm:$0xf]
    %v117 = vld [vmem:[#allocation9 + $0x90] sm:$0xff]
    %v118 = vld [vmem:[#allocation9 + $0x98] sm:$0xf]
    %v119 = vld [vmem:[#allocation9 + $0x9c] sm:$0xff]
    %v120 = vld [vmem:[#allocation9 + $0xa4] sm:$0xf]
    %v121 = vld [vmem:[#allocation9 + $0xa8] sm:$0xff]
    %v122 = vld [vmem:[#allocation9 + $0xb0] sm:$0xf]
    %v123 = vld [vmem:[#allocation9 + $0xb4] sm:$0xff]
    %v124 = vld [vmem:[#allocation9 + $0xbc] sm:$0xf]
    %v125 = vld [vmem:[%s3] sm:$0x7]
    %v126 = vld [vmem:[%s4] sm:$0x1]
    %v127 = vld [vmem:[#allocation4] sm:$0xf]
    %v129 = vlaneseq
    %v130 = vshrl.u32 %v129, 7
    %v131 = vsub.s32 0, %v130
    %v132 = vrot.slane %v125, %v131
    %v133 = vlaneseq
    %v134 = vshrl.u32 %v133, 7
    %v135 = vsub.s32 1, %v134
    %v136 = vrot.slane %v125, %v135
    %v137 = vlaneseq
    %v138 = vshrl.u32 %v137, 7
    %v139 = vsub.s32 2, %v138
    %v140 = vrot.slane %v125, %v139
    %v176 = vunpack.c.l.b16 %v61
    %v177 = vunpack.c.h.b16 %v61
    %v178 = vunpack.c.l.b16 %v62
    %v179 = vunpack.c.l.b16 %v63
    %v180 = vunpack.c.h.b16 %v63
    %v181 = vunpack.c.l.b16 %v64
    %v182 = vunpack.c.l.b16 %v65
    %v183 = vunpack.c.h.b16 %v65
    %v184 = vunpack.c.l.b16 %v66
    %v185 = vunpack.c.l.b16 %v67
    %v186 = vunpack.c.h.b16 %v67
    %v187 = vunpack.c.l.b16 %v68
    %v188 = vunpack.c.l.b16 %v69
    %v189 = vunpack.c.h.b16 %v69
    %v190 = vunpack.c.l.b16 %v70
    %v191 = vunpack.c.l.b16 %v71
    %v192 = vunpack.c.h.b16 %v71
    %v193 = vunpack.c.l.b16 %v72
    %v194 = vunpack.c.l.b16 %v73
    %v195 = vunpack.c.h.b16 %v73
    %v196 = vunpack.c.l.b16 %v74
    %v197 = vunpack.c.l.b16 %v75
    %v198 = vunpack.c.h.b16 %v75
    %v199 = vunpack.c.l.b16 %v76
    %v200 = vunpack.c.l.b16 %v77
    %v201 = vunpack.c.h.b16 %v77
    %v202 = vunpack.c.l.b16 %v78
    %v203 = vunpack.c.l.b16 %v79
    %v204 = vunpack.c.h.b16 %v79
    %v205 = vunpack.c.l.b16 %v80
    %v206 = vunpack.c.l.b16 %v81
    %v207 = vunpack.c.h.b16 %v81
    %v208 = vunpack.c.l.b16 %v82
    %v209 = vunpack.c.l.b16 %v83
    %v210 = vunpack.c.h.b16 %v83
    %v211 = vunpack.c.l.b16 %v84
    %v212 = vunpack.c.l.b16 %v85
    %v213 = vunpack.c.h.b16 %v85
    %v214 = vunpack.c.l.b16 %v86
    %v215 = vunpack.c.l.b16 %v87
    %v216 = vunpack.c.h.b16 %v87
    %v217 = vunpack.c.l.b16 %v88
    %v218 = vunpack.c.l.b16 %v89
    %v219 = vunpack.c.h.b16 %v89
    %v220 = vunpack.c.l.b16 %v90
    %v221 = vunpack.c.l.b16 %v91
    %v222 = vunpack.c.h.b16 %v91
    %v223 = vunpack.c.l.b16 %v92
    %v224 = vpack.c.b16 %v179, %v176
    %v225 = vpack.c.b16 %v180, %v177
    %v226 = vpack.c.b16 %v181, %v178
    %v227 = vpack.c.b16 %v185, %v182
    %v228 = vpack.c.b16 %v186, %v183
    %v229 = vpack.c.b16 %v187, %v184
    %v230 = vpack.c.b16 %v191, %v188
    %v231 = vpack.c.b16 %v192, %v189
    %v232 = vpack.c.b16 %v193, %v190
    %v233 = vpack.c.b16 %v197, %v194
    %v234 = vpack.c.b16 %v198, %v195
    %v235 = vpack.c.b16 %v199, %v196
    %v236 = vpack.c.b16 %v203, %v200
    %v237 = vpack.c.b16 %v204, %v201
    %v238 = vpack.c.b16 %v205, %v202
    %v239 = vpack.c.b16 %v209, %v206
    %v240 = vpack.c.b16 %v210, %v207
    %v241 = vpack.c.b16 %v211, %v208
    %v242 = vpack.c.b16 %v215, %v212
    %v243 = vpack.c.b16 %v216, %v213
    %v244 = vpack.c.b16 %v217, %v214
    %v245 = vpack.c.b16 %v221, %v218
    %v246 = vpack.c.b16 %v222, %v219
    %v247 = vpack.c.b16 %v223, %v220
    %272 = vmatprep.subr.bf16.mxu0 %v225
    %273 = vmatpush1.bf16.msra.mxu0 %v224
    %274 = vmatprep.subr.bf16.mxu0 %v228
    %275 = vmatpush1.bf16.msra.mxu0 %v227
    %276 = vmatprep.subr.bf16.mxu0 %v231
    %277 = vmatpush1.bf16.msra.mxu0 %v230
    %278 = vmatprep.subr.bf16.mxu0 %v234
    %279 = vmatpush1.bf16.msra.mxu0 %v233
    %280 = vmatprep.subr.bf16.mxu0 %v237
    %281 = vmatpush1.bf16.msra.mxu0 %v236
    %282 = vmatprep.subr.bf16.mxu0 %v240
    %283 = vmatpush1.bf16.msra.mxu0 %v239
    %284 = vmatprep.subr.bf16.mxu0 %v243
    %285 = vmatpush1.bf16.msra.mxu0 %v242
    %286 = vmatprep.subr.bf16.mxu0 %v246
    %287 = vmatpush1.bf16.msra.mxu0 %v245
    %288 = vmatprep.subr.bf16.mxu0 0
    %289 = vmatpush1.bf16.msra.mxu0 0
    %290 = vmatprep.subr.bf16.mxu0 0
    %291 = vmatpush1.bf16.msra.mxu0 0
    %292 = vmatprep.subr.bf16.mxu0 0
    %293 = vmatpush1.bf16.msra.mxu0 0
    %294 = vmatprep.subr.bf16.mxu0 0
    %295 = vmatpush1.bf16.msra.mxu0 0
    %296 = vmatprep.subr.bf16.mxu0 0
    %297 = vmatpush1.bf16.msra.mxu0 0
    %298 = vmatprep.subr.bf16.mxu0 0
    %299 = vmatpush1.bf16.msra.mxu0 0
    %300 = vmatprep.subr.bf16.mxu0 0
    %301 = vmatpush1.bf16.msra.mxu0 0
    %302 = vmatprep.subr.bf16.mxu0 0
    %303 = vmatpush1.bf16.msra.mxu0 0
    %304 = vmatprep.mubr.bf16.mxu0 0
    %305 = vmatmul.mubr.bf16.gmra.mrb[0].mxu0 %v127
    %v306 = vpop.f32.mrb[0].mxu0
    %v307 = vadd.f32 %v132, %v306
    %v308 = vpop.f32.mrb[0].mxu0
    %v309 = vadd.f32 %v136, %v308
    %v310 = vpop.f32.mrb[0].mxu0
    %v311 = vpop.f32.mrb[0].mxu0
    %312 = vdwg.mxu0
    %313 = vmatprep.subr.bf16.mxu0 0
    %314 = vmatpush1.bf16.msra.mxu0 %v226
    %315 = vmatprep.subr.bf16.mxu0 0
    %316 = vmatpush1.bf16.msra.mxu0 %v229
    %317 = vmatprep.subr.bf16.mxu0 0
    %318 = vmatpush1.bf16.msra.mxu0 %v232
    %319 = vmatprep.subr.bf16.mxu0 0
    %320 = vmatpush1.bf16.msra.mxu0 %v235
    %321 = vmatprep.subr.bf16.mxu0 0
    %322 = vmatpush1.bf16.msra.mxu0 %v238
    %323 = vmatprep.subr.bf16.mxu0 0
    %324 = vmatpush1.bf16.msra.mxu0 %v241
    %325 = vmatprep.subr.bf16.mxu0 0
    %326 = vmatpush1.bf16.msra.mxu0 %v244
    %327 = vmatprep.subr.bf16.mxu0 0
    %328 = vmatpush1.bf16.msra.mxu0 %v247
    %329 = vmatprep.subr.bf16.mxu0 0
    %330 = vmatpush1.bf16.msra.mxu0 0
    %331 = vmatprep.subr.bf16.mxu0 0
    %332 = vmatpush1.bf16.msra.mxu0 0
    %333 = vmatprep.subr.bf16.mxu0 0
    %334 = vmatpush1.bf16.msra.mxu0 0
    %335 = vmatprep.subr.bf16.mxu0 0
    %336 = vmatpush1.bf16.msra.mxu0 0
    %337 = vmatprep.subr.bf16.mxu0 0
    %338 = vmatpush1.bf16.msra.mxu0 0
    %339 = vmatprep.subr.bf16.mxu0 0
    %340 = vmatpush1.bf16.msra.mxu0 0
    %341 = vmatprep.subr.bf16.mxu0 0
    %342 = vmatpush1.bf16.msra.mxu0 0
    %343 = vmatprep.subr.bf16.mxu0 0
    %344 = vmatpush1.bf16.msra.mxu0 0
    %345 = vmatprep.mubr.bf16.mxu0 0
    %346 = vmatmul.mubr.bf16.gmra.mrb[0].mxu0 %v127
    %v347 = vpop.f32.mrb[0].mxu0
    %v348 = vadd.f32 %v140, %v347
    %v349 = vpop.f32.mrb[0].mxu0
    %v350 = vpop.f32.mrb[0].mxu0
    %v351 = vpop.f32.mrb[0].mxu0
    %352 = vdwg.mxu0
    %353 = vst [vmem:[#allocation3] sm:$0xff] %v307
    %354 = vst [vmem:[#allocation3 + $0x8] sm:$0xff] %v309
    %355 = vst [vmem:[#allocation3 + $0x10] sm:$0xff] %v348
    %s356 = smul.u32 0, 3
    %s357 = smul.addr %s356, 8
    %s358 = scalar_lea.vmem [#allocation3], %s357
    %v359 = vld [vmem:[%s358] sm:$0xff]
    %v360 = vld [vmem:[%s358 + $0x8] sm:$0xff]
    %v361 = vld [vmem:[%s358 + $0x10] sm:$0xff]
    %v394 = vunpack.c.l.b16 %v93
    %v395 = vunpack.c.h.b16 %v93
    %v396 = vunpack.c.l.b16 %v94
    %v397 = vunpack.c.l.b16 %v95
    %v398 = vunpack.c.h.b16 %v95
    %v399 = vunpack.c.l.b16 %v96
    %v400 = vunpack.c.l.b16 %v97
    %v401 = vunpack.c.h.b16 %v97
    %v402 = vunpack.c.l.b16 %v98
    %v403 = vunpack.c.l.b16 %v99
    %v404 = vunpack.c.h.b16 %v99
    %v405 = vunpack.c.l.b16 %v100
    %v406 = vunpack.c.l.b16 %v101
    %v407 = vunpack.c.h.b16 %v101
    %v408 = vunpack.c.l.b16 %v102
    %v409 = vunpack.c.l.b16 %v103
    %v410 = vunpack.c.h.b16 %v103
    %v411 = vunpack.c.l.b16 %v104
    %v412 = vunpack.c.l.b16 %v105
    %v413 = vunpack.c.h.b16 %v105
    %v414 = vunpack.c.l.b16 %v106
    %v415 = vunpack.c.l.b16 %v107
    %v416 = vunpack.c.h.b16 %v107
    %v417 = vunpack.c.l.b16 %v108
    %v418 = vunpack.c.l.b16 %v109
    %v419 = vunpack.c.h.b16 %v109
    %v420 = vunpack.c.l.b16 %v110
    %v421 = vunpack.c.l.b16 %v111
    %v422 = vunpack.c.h.b16 %v111
    %v423 = vunpack.c.l.b16 %v112
    %v424 = vunpack.c.l.b16 %v113
    %v425 = vunpack.c.h.b16 %v113
    %v426 = vunpack.c.l.b16 %v114
    %v427 = vunpack.c.l.b16 %v115
    %v428 = vunpack.c.h.b16 %v115
    %v429 = vunpack.c.l.b16 %v116
    %v430 = vunpack.c.l.b16 %v117
    %v431 = vunpack.c.h.b16 %v117
    %v432 = vunpack.c.l.b16 %v118
    %v433 = vunpack.c.l.b16 %v119
    %v434 = vunpack.c.h.b16 %v119
    %v435 = vunpack.c.l.b16 %v120
    %v436 = vunpack.c.l.b16 %v121
    %v437 = vunpack.c.h.b16 %v121
    %v438 = vunpack.c.l.b16 %v122
    %v439 = vunpack.c.l.b16 %v123
    %v440 = vunpack.c.h.b16 %v123
    %v441 = vunpack.c.l.b16 %v124
    %v442 = vpack.c.b16 %v397, %v394
    %v443 = vpack.c.b16 %v398, %v395
    %v444 = vpack.c.b16 %v399, %v396
    %v445 = vpack.c.b16 %v403, %v400
    %v446 = vpack.c.b16 %v404, %v401
    %v447 = vpack.c.b16 %v405, %v402
    %v448 = vpack.c.b16 %v409, %v406
    %v449 = vpack.c.b16 %v410, %v407
    %v450 = vpack.c.b16 %v411, %v408
    %v451 = vpack.c.b16 %v415, %v412
    %v452 = vpack.c.b16 %v416, %v413
    %v453 = vpack.c.b16 %v417, %v414
    %v454 = vpack.c.b16 %v421, %v418
    %v455 = vpack.c.b16 %v422, %v419
    %v456 = vpack.c.b16 %v423, %v420
    %v457 = vpack.c.b16 %v427, %v424
    %v458 = vpack.c.b16 %v428, %v425
    %v459 = vpack.c.b16 %v429, %v426
    %v460 = vpack.c.b16 %v433, %v430
    %v461 = vpack.c.b16 %v434, %v431
    %v462 = vpack.c.b16 %v435, %v432
    %v463 = vpack.c.b16 %v439, %v436
    %v464 = vpack.c.b16 %v440, %v437
    %v465 = vpack.c.b16 %v441, %v438
    %490 = vmatprep.subr.bf16.mxu0 %v443
    %491 = vmatpush1.bf16.msra.mxu0 %v442
    %492 = vmatprep.subr.bf16.mxu0 %v446
    %493 = vmatpush1.bf16.msra.mxu0 %v445
    %494 = vmatprep.subr.bf16.mxu0 %v449
    %495 = vmatpush1.bf16.msra.mxu0 %v448
    %496 = vmatprep.subr.bf16.mxu0 %v452
    %497 = vmatpush1.bf16.msra.mxu0 %v451
    %498 = vmatprep.subr.bf16.mxu0 %v455
    %499 = vmatpush1.bf16.msra.mxu0 %v454
    %500 = vmatprep.subr.bf16.mxu0 %v458
    %501 = vmatpush1.bf16.msra.mxu0 %v457
    %502 = vmatprep.subr.bf16.mxu0 %v461
    %503 = vmatpush1.bf16.msra.mxu0 %v460
    %504 = vmatprep.subr.bf16.mxu0 %v464
    %505 = vmatpush1.bf16.msra.mxu0 %v463
    %506 = vmatprep.subr.bf16.mxu0 0
    %507 = vmatpush1.bf16.msra.mxu0 0
    %508 = vmatprep.subr.bf16.mxu0 0
    %509 = vmatpush1.bf16.msra.mxu0 0
    %510 = vmatprep.subr.bf16.mxu0 0
    %511 = vmatpush1.bf16.msra.mxu0 0
    %512 = vmatprep.subr.bf16.mxu0 0
    %513 = vmatpush1.bf16.msra.mxu0 0
    %514 = vmatprep.subr.bf16.mxu0 0
    %515 = vmatpush1.bf16.msra.mxu0 0
    %516 = vmatprep.subr.bf16.mxu0 0
    %517 = vmatpush1.bf16.msra.mxu0 0
    %518 = vmatprep.subr.bf16.mxu0 0
    %519 = vmatpush1.bf16.msra.mxu0 0
    %520 = vmatprep.subr.bf16.mxu0 0
    %521 = vmatpush1.bf16.msra.mxu0 0
    %522 = vmatprep.mubr.bf16.mxu0 0
    %523 = vmatmul.mubr.bf16.gmra.mrb[0].mxu0 0
    %v524 = vpop.f32.mrb[0].mxu0
    %v525 = vadd.f32 0.0, %v524
    %v526 = vpop.f32.mrb[0].mxu0
    %v527 = vadd.f32 0.0, %v526
    %v528 = vpop.f32.mrb[0].mxu0
    %v529 = vpop.f32.mrb[0].mxu0
    %530 = vdwg.mxu0
    %531 = vmatprep.subr.bf16.mxu0 0
    %532 = vmatpush1.bf16.msra.mxu0 %v444
    %533 = vmatprep.subr.bf16.mxu0 0
    %534 = vmatpush1.bf16.msra.mxu0 %v447
    %535 = vmatprep.subr.bf16.mxu0 0
    %536 = vmatpush1.bf16.msra.mxu0 %v450
    %537 = vmatprep.subr.bf16.mxu0 0
    %538 = vmatpush1.bf16.msra.mxu0 %v453
    %539 = vmatprep.subr.bf16.mxu0 0
    %540 = vmatpush1.bf16.msra.mxu0 %v456
    %541 = vmatprep.subr.bf16.mxu0 0
    %542 = vmatpush1.bf16.msra.mxu0 %v459
    %543 = vmatprep.subr.bf16.mxu0 0
    %544 = vmatpush1.bf16.msra.mxu0 %v462
    %545 = vmatprep.subr.bf16.mxu0 0
    %546 = vmatpush1.bf16.msra.mxu0 %v465
    %547 = vmatprep.subr.bf16.mxu0 0
    %548 = vmatpush1.bf16.msra.mxu0 0
    %549 = vmatprep.subr.bf16.mxu0 0
    %550 = vmatpush1.bf16.msra.mxu0 0
    %551 = vmatprep.subr.bf16.mxu0 0
    %552 = vmatpush1.bf16.msra.mxu0 0
    %553 = vmatprep.subr.bf16.mxu0 0
    %554 = vmatpush1.bf16.msra.mxu0 0
    %555 = vmatprep.subr.bf16.mxu0 0
    %556 = vmatpush1.bf16.msra.mxu0 0
    %557 = vmatprep.subr.bf16.mxu0 0
    %558 = vmatpush1.bf16.msra.mxu0 0
    %559 = vmatprep.subr.bf16.mxu0 0
    %560 = vmatpush1.bf16.msra.mxu0 0
    %561 = vmatprep.subr.bf16.mxu0 0
    %562 = vmatpush1.bf16.msra.mxu0 0
    %563 = vmatprep.mubr.bf16.mxu0 0
    %564 = vmatmul.mubr.bf16.gmra.mrb[0].mxu0 0
    %v565 = vpop.f32.mrb[0].mxu0
    %v566 = vadd.f32 0.0, %v565
    %v567 = vpop.f32.mrb[0].mxu0
    %v568 = vpop.f32.mrb[0].mxu0
    %v569 = vpop.f32.mrb[0].mxu0
    %570 = vdwg.mxu0
    %v571 = vadd.f32 %v359, %v525
    %v572 = vxor.u32 %v571, 2147483648
    %v573 = vmul.f32 %v572, 1.442695
    %v574 = vpow.pop %v573
    %v575 = vadd.f32 %v574, 1.0
    %v576 = vrcp.pop %v575
    %v577 = vmul.f32 1.0, %v576
    %v578 = vadd.f32 %v360, %v527
    %v579 = vxor.u32 %v578, 2147483648
    %v580 = vmul.f32 %v579, 1.442695
    %v581 = vpow.pop %v580
    %v582 = vadd.f32 %v581, 1.0
    %v583 = vrcp.pop %v582
    %v584 = vmul.f32 1.0, %v583
    %v585 = vadd.f32 %v566, %v126
    %v586 = vmul.f32 %v577, %v585
    %v587 = vadd.f32 %v361, %v586
    %v588 = vtanh.pop %v587
    %v589 = vsub.f32 1.0, %v584
    %v590 = vmul.f32 %v589, %v588
    %v591 = vmul.f32 %v584, 0.0
    %v592 = vadd.f32 %v590, %v591
    %v593 = vpack.c.bf16 %v592, %v592
    %594 = vmatprep.subr.bf16.mxu0 %v443
    %595 = vmatpush1.bf16.msra.mxu0 %v442
    %596 = vmatprep.subr.bf16.mxu0 %v446
    %597 = vmatpush1.bf16.msra.mxu0 %v445
    %598 = vmatprep.subr.bf16.mxu0 %v449
    %599 = vmatpush1.bf16.msra.mxu0 %v448
    %600 = vmatprep.subr.bf16.mxu0 %v452
    %601 = vmatpush1.bf16.msra.mxu0 %v451
    %602 = vmatprep.subr.bf16.mxu0 %v455
    %603 = vmatpush1.bf16.msra.mxu0 %v454
    %604 = vmatprep.subr.bf16.mxu0 %v458
    %605 = vmatpush1.bf16.msra.mxu0 %v457
    %606 = vmatprep.subr.bf16.mxu0 %v461
    %607 = vmatpush1.bf16.msra.mxu0 %v460
    %608 = vmatprep.subr.bf16.mxu0 %v464
    %609 = vmatpush1.bf16.msra.mxu0 %v463
    %610 = vmatprep.subr.bf16.mxu0 0
    %611 = vmatpush1.bf16.msra.mxu0 0
    %612 = vmatprep.subr.bf16.mxu0 0
    %613 = vmatpush1.bf16.msra.mxu0 0
    %614 = vmatprep.subr.bf16.mxu0 0
    %615 = vmatpush1.bf16.msra.mxu0 0
    %616 = vmatprep.subr.bf16.mxu0 0
    %617 = vmatpush1.bf16.msra.mxu0 0
    %618 = vmatprep.subr.bf16.mxu0 0
    %619 = vmatpush1.bf16.msra.mxu0 0
    %620 = vmatprep.subr.bf16.mxu0 0
    %621 = vmatpush1.bf16.msra.mxu0 0
    %622 = vmatprep.subr.bf16.mxu0 0
    %623 = vmatpush1.bf16.msra.mxu0 0
    %624 = vmatprep.subr.bf16.mxu0 0
    %625 = vmatpush1.bf16.msra.mxu0 0
    %626 = vmatprep.mubr.bf16.mxu0 0
    %627 = vmatmul.mubr.bf16.gmra.mrb[0].mxu0 %v593
    %v628 = vpop.f32.mrb[0].mxu0
    %v629 = vadd.f32 0.0, %v628
    %v630 = vpop.f32.mrb[0].mxu0
    %v631 = vadd.f32 0.0, %v630
    %v632 = vpop.f32.mrb[0].mxu0
    %v633 = vpop.f32.mrb[0].mxu0
    %634 = vdwg.mxu0
    %635 = vmatprep.subr.bf16.mxu0 0
    %636 = vmatpush1.bf16.msra.mxu0 %v444
    %637 = vmatprep.subr.bf16.mxu0 0
    %638 = vmatpush1.bf16.msra.mxu0 %v447
    %639 = vmatprep.subr.bf16.mxu0 0
    %640 = vmatpush1.bf16.msra.mxu0 %v450
    %641 = vmatprep.subr.bf16.mxu0 0
    %642 = vmatpush1.bf16.msra.mxu0 %v453
    %643 = vmatprep.subr.bf16.mxu0 0
    %644 = vmatpush1.bf16.msra.mxu0 %v456
    %645 = vmatprep.subr.bf16.mxu0 0
    %646 = vmatpush1.bf16.msra.mxu0 %v459
    %647 = vmatprep.subr.bf16.mxu0 0
    %648 = vmatpush1.bf16.msra.mxu0 %v462
    %649 = vmatprep.subr.bf16.mxu0 0
    %650 = vmatpush1.bf16.msra.mxu0 %v465
    %651 = vmatprep.subr.bf16.mxu0 0
    %652 = vmatpush1.bf16.msra.mxu0 0
    %653 = vmatprep.subr.bf16.mxu0 0
    %654 = vmatpush1.bf16.msra.mxu0 0
    %655 = vmatprep.subr.bf16.mxu0 0
    %656 = vmatpush1.bf16.msra.mxu0 0
    %657 = vmatprep.subr.bf16.mxu0 0
    %658 = vmatpush1.bf16.msra.mxu0 0
    %659 = vmatprep.subr.bf16.mxu0 0
    %660 = vmatpush1.bf16.msra.mxu0 0
    %661 = vmatprep.subr.bf16.mxu0 0
    %662 = vmatpush1.bf16.msra.mxu0 0
    %663 = vmatprep.subr.bf16.mxu0 0
    %664 = vmatpush1.bf16.msra.mxu0 0
    %665 = vmatprep.subr.bf16.mxu0 0
    %666 = vmatpush1.bf16.msra.mxu0 0
    %667 = vmatprep.mubr.bf16.mxu0 0
    %668 = vmatmul.mubr.bf16.gmra.mrb[0].mxu0 %v593
    %v669 = vpop.f32.mrb[0].mxu0
    %v670 = vadd.f32 0.0, %v669
    %v671 = vpop.f32.mrb[0].mxu0
    %v672 = vpop.f32.mrb[0].mxu0
    %v673 = vpop.f32.mrb[0].mxu0
    %674 = vdwg.mxu0
    %v676 = vrot.slane %v629, 7
    %v678 = vadd.f32 %v359, %v676
    %v679 = vxor.u32 %v678, 2147483648
    %v680 = vmul.f32 %v679, 1.442695
    %v681 = vpow.pop %v680
    %v682 = vadd.f32 %v681, 1.0
    %v683 = vrcp.pop %v682
    %v684 = vmul.f32 1.0, %v683
    %v686 = vrot.slane %v631, 7
    %v688 = vadd.f32 %v360, %v686
    %v689 = vxor.u32 %v688, 2147483648
    %v690 = vmul.f32 %v689, 1.442695
    %v691 = vpow.pop %v690
    %v692 = vadd.f32 %v691, 1.0
    %v693 = vrcp.pop %v692
    %v694 = vmul.f32 1.0, %v693
    %v695 = vadd.f32 %v670, %v126
    %v697 = vrot.slane %v695, 7
    %v699 = vmul.f32 %v684, %v697
    %v700 = vadd.f32 %v361, %v699
    %v701 = vtanh.pop %v700
    %v702 = vsub.f32 1.0, %v694
    %v703 = vmul.f32 %v702, %v701
    %v705 = vrot.slane %v592, 7
    %v707 = vmul.f32 %v694, %v705
    %v708 = vadd.f32 %v703, %v707
    %v709 = vpack.c.bf16 %v708, %v708
    %v711 = vshrl.u32 %v709, 16
    %714 = vmatprep.subr.bf16.mxu0 %v443
    %715 = vmatpush1.bf16.msra.mxu0 %v442
    %716 = vmatprep.subr.bf16.mxu0 %v446
    %717 = vmatpush1.bf16.msra.mxu0 %v445
    %718 = vmatprep.subr.bf16.mxu0 %v449
    %719 = vmatpush1.bf16.msra.mxu0 %v448
    %720 = vmatprep.subr.bf16.mxu0 %v452
    %721 = vmatpush1.bf16.msra.mxu0 %v451
    %722 = vmatprep.subr.bf16.mxu0 %v455
    %723 = vmatpush1.bf16.msra.mxu0 %v454
    %724 = vmatprep.subr.bf16.mxu0 %v458
    %725 = vmatpush1.bf16.msra.mxu0 %v457
    %726 = vmatprep.subr.bf16.mxu0 %v461
    %727 = vmatpush1.bf16.msra.mxu0 %v460
    %728 = vmatprep.subr.bf16.mxu0 %v464
    %729 = vmatpush1.bf16.msra.mxu0 %v463
    %730 = vmatprep.subr.bf16.mxu0 0
    %731 = vmatpush1.bf16.msra.mxu0 0
    %732 = vmatprep.subr.bf16.mxu0 0
    %733 = vmatpush1.bf16.msra.mxu0 0
    %734 = vmatprep.subr.bf16.mxu0 0
    %735 = vmatpush1.bf16.msra.mxu0 0
    %736 = vmatprep.subr.bf16.mxu0 0
    %737 = vmatpush1.bf16.msra.mxu0 0
    %738 = vmatprep.subr.bf16.mxu0 0
    %739 = vmatpush1.bf16.msra.mxu0 0
    %740 = vmatprep.subr.bf16.mxu0 0
    %741 = vmatpush1.bf16.msra.mxu0 0
    %742 = vmatprep.subr.bf16.mxu0 0
    %743 = vmatpush1.bf16.msra.mxu0 0
    %744 = vmatprep.subr.bf16.mxu0 0
    %745 = vmatpush1.bf16.msra.mxu0 0
    %746 = vmatprep.mubr.bf16.mxu0 0
    %747 = vmatmul.mubr.bf16.gmra.mrb[0].mxu0 %v711
    %v748 = vpop.f32.mrb[0].mxu0
    %v749 = vadd.f32 0.0, %v748
    %v750 = vpop.f32.mrb[0].mxu0
    %v751 = vadd.f32 0.0, %v750
    %v752 = vpop.f32.mrb[0].mxu0
    %v753 = vpop.f32.mrb[0].mxu0
    %754 = vdwg.mxu0
    %755 = vmatprep.subr.bf16.mxu0 0
    %756 = vmatpush1.bf16.msra.mxu0 %v444
    %757 = vmatprep.subr.bf16.mxu0 0
    %758 = vmatpush1.bf16.msra.mxu0 %v447
    %759 = vmatprep.subr.bf16.mxu0 0
    %760 = vmatpush1.bf16.msra.mxu0 %v450
    %761 = vmatprep.subr.bf16.mxu0 0
    %762 = vmatpush1.bf16.msra.mxu0 %v453
    %763 = vmatprep.subr.bf16.mxu0 0
    %764 = vmatpush1.bf16.msra.mxu0 %v456
    %765 = vmatprep.subr.bf16.mxu0 0
    %766 = vmatpush1.bf16.msra.mxu0 %v459
    %767 = vmatprep.subr.bf16.mxu0 0
    %768 = vmatpush1.bf16.msra.mxu0 %v462
    %769 = vmatprep.subr.bf16.mxu0 0
    %770 = vmatpush1.bf16.msra.mxu0 %v465
    %771 = vmatprep.subr.bf16.mxu0 0
    %772 = vmatpush1.bf16.msra.mxu0 0
    %773 = vmatprep.subr.bf16.mxu0 0
    %774 = vmatpush1.bf16.msra.mxu0 0
    %775 = vmatprep.subr.bf16.mxu0 0
    %776 = vmatpush1.bf16.msra.mxu0 0
    %777 = vmatprep.subr.bf16.mxu0 0
    %778 = vmatpush1.bf16.msra.mxu0 0
    %779 = vmatprep.subr.bf16.mxu0 0
    %780 = vmatpush1.bf16.msra.mxu0 0
    %781 = vmatprep.subr.bf16.mxu0 0
    %782 = vmatpush1.bf16.msra.mxu0 0
    %783 = vmatprep.subr.bf16.mxu0 0
    %784 = vmatpush1.bf16.msra.mxu0 0
    %785 = vmatprep.subr.bf16.mxu0 0
    %786 = vmatpush1.bf16.msra.mxu0 0
    %787 = vmatprep.mubr.bf16.mxu0 0
    %788 = vmatmul.mubr.bf16.gmra.mrb[0].mxu0 %v711
    %v789 = vpop.f32.mrb[0].mxu0
    %v790 = vadd.f32 0.0, %v789
    %v791 = vpop.f32.mrb[0].mxu0
    %v792 = vpop.f32.mrb[0].mxu0
    %v793 = vpop.f32.mrb[0].mxu0
    %794 = vdwg.mxu0
    %v796 = vrot.slane %v749, 6
    %v798 = vadd.f32 %v359, %v796
    %v799 = vxor.u32 %v798, 2147483648
    %v800 = vmul.f32 %v799, 1.442695
    %v801 = vpow.pop %v800
    %v802 = vadd.f32 %v801, 1.0
    %v803 = vrcp.pop %v802
    %v804 = vmul.f32 1.0, %v803
    %v806 = vrot.slane %v751, 6
    %v808 = vadd.f32 %v360, %v806
    %v809 = vxor.u32 %v808, 2147483648
    %v810 = vmul.f32 %v809, 1.442695
    %v811 = vpow.pop %v810
    %v812 = vadd.f32 %v811, 1.0
    %v813 = vrcp.pop %v812
    %v814 = vmul.f32 1.0, %v813
    %v815 = vadd.f32 %v790, %v126
    %v817 = vrot.slane %v815, 6
    %v819 = vmul.f32 %v804, %v817
    %v820 = vadd.f32 %v361, %v819
    %v821 = vtanh.pop %v820
    %v822 = vsub.f32 1.0, %v814
    %v823 = vmul.f32 %v822, %v821
    %v825 = vrot.slane %v708, 7
    %v827 = vmul.f32 %v814, %v825
    %v828 = vadd.f32 %v823, %v827
    %v829 = vpack.c.bf16 %v828, %v828
    %v831 = vrot.slane %v829, 1
    %833 = vmatprep.subr.bf16.mxu0 %v443
    %834 = vmatpush1.bf16.msra.mxu0 %v442
    %835 = vmatprep.subr.bf16.mxu0 %v446
    %836 = vmatpush1.bf16.msra.mxu0 %v445
    %837 = vmatprep.subr.bf16.mxu0 %v449
    %838 = vmatpush1.bf16.msra.mxu0 %v448
    %839 = vmatprep.subr.bf16.mxu0 %v452
    %840 = vmatpush1.bf16.msra.mxu0 %v451
    %841 = vmatprep.subr.bf16.mxu0 %v455
    %842 = vmatpush1.bf16.msra.mxu0 %v454
    %843 = vmatprep.subr.bf16.mxu0 %v458
    %844 = vmatpush1.bf16.msra.mxu0 %v457
    %845 = vmatprep.subr.bf16.mxu0 %v461
    %846 = vmatpush1.bf16.msra.mxu0 %v460
    %847 = vmatprep.subr.bf16.mxu0 %v464
    %848 = vmatpush1.bf16.msra.mxu0 %v463
    %849 = vmatprep.subr.bf16.mxu0 0
    %850 = vmatpush1.bf16.msra.mxu0 0
    %851 = vmatprep.subr.bf16.mxu0 0
    %852 = vmatpush1.bf16.msra.mxu0 0
    %853 = vmatprep.subr.bf16.mxu0 0
    %854 = vmatpush1.bf16.msra.mxu0 0
    %855 = vmatprep.subr.bf16.mxu0 0
    %856 = vmatpush1.bf16.msra.mxu0 0
    %857 = vmatprep.subr.bf16.mxu0 0
    %858 = vmatpush1.bf16.msra.mxu0 0
    %859 = vmatprep.subr.bf16.mxu0 0
    %860 = vmatpush1.bf16.msra.mxu0 0
    %861 = vmatprep.subr.bf16.mxu0 0
    %862 = vmatpush1.bf16.msra.mxu0 0
    %863 = vmatprep.subr.bf16.mxu0 0
    %864 = vmatpush1.bf16.msra.mxu0 0
    %865 = vmatprep.mubr.bf16.mxu0 0
    %866 = vmatmul.mubr.bf16.gmra.mrb[0].mxu0 %v831
    %v867 = vpop.f32.mrb[0].mxu0
    %v868 = vadd.f32 0.0, %v867
    %v869 = vpop.f32.mrb[0].mxu0
    %v870 = vadd.f32 0.0, %v869
    %v871 = vpop.f32.mrb[0].mxu0
    %v872 = vpop.f32.mrb[0].mxu0
    %873 = vdwg.mxu0
    %874 = vmatprep.subr.bf16.mxu0 0
    %875 = vmatpush1.bf16.msra.mxu0 %v444
    %876 = vmatprep.subr.bf16.mxu0 0
    %877 = vmatpush1.bf16.msra.mxu0 %v447
    %878 = vmatprep.subr.bf16.mxu0 0
    %879 = vmatpush1.bf16.msra.mxu0 %v450
    %880 = vmatprep.subr.bf16.mxu0 0
    %881 = vmatpush1.bf16.msra.mxu0 %v453
    %882 = vmatprep.subr.bf16.mxu0 0
    %883 = vmatpush1.bf16.msra.mxu0 %v456
    %884 = vmatprep.subr.bf16.mxu0 0
    %885 = vmatpush1.bf16.msra.mxu0 %v459
    %886 = vmatprep.subr.bf16.mxu0 0
    %887 = vmatpush1.bf16.msra.mxu0 %v462
    %888 = vmatprep.subr.bf16.mxu0 0
    %889 = vmatpush1.bf16.msra.mxu0 %v465
    %890 = vmatprep.subr.bf16.mxu0 0
    %891 = vmatpush1.bf16.msra.mxu0 0
    %892 = vmatprep.subr.bf16.mxu0 0
    %893 = vmatpush1.bf16.msra.mxu0 0
    %894 = vmatprep.subr.bf16.mxu0 0
    %895 = vmatpush1.bf16.msra.mxu0 0
    %896 = vmatprep.subr.bf16.mxu0 0
    %897 = vmatpush1.bf16.msra.mxu0 0
    %898 = vmatprep.subr.bf16.mxu0 0
    %899 = vmatpush1.bf16.msra.mxu0 0
    %900 = vmatprep.subr.bf16.mxu0 0
    %901 = vmatpush1.bf16.msra.mxu0 0
    %902 = vmatprep.subr.bf16.mxu0 0
    %903 = vmatpush1.bf16.msra.mxu0 0
    %904 = vmatprep.subr.bf16.mxu0 0
    %905 = vmatpush1.bf16.msra.mxu0 0
    %906 = vmatprep.mubr.bf16.mxu0 0
    %907 = vmatmul.mubr.bf16.gmra.mrb[0].mxu0 %v831
    %v908 = vpop.f32.mrb[0].mxu0
    %v909 = vadd.f32 0.0, %v908
    %v910 = vpop.f32.mrb[0].mxu0
    %v911 = vpop.f32.mrb[0].mxu0
    %v912 = vpop.f32.mrb[0].mxu0
    %913 = vdwg.mxu0
    %v915 = vrot.slane %v868, 5
    %v917 = vadd.f32 %v359, %v915
    %v918 = vxor.u32 %v917, 2147483648
    %v919 = vmul.f32 %v918, 1.442695
    %v920 = vpow.pop %v919
    %v921 = vadd.f32 %v920, 1.0
    %v922 = vrcp.pop %v921
    %v923 = vmul.f32 1.0, %v922
    %v925 = vrot.slane %v870, 5
    %v927 = vadd.f32 %v360, %v925
    %v928 = vxor.u32 %v927, 2147483648
    %v929 = vmul.f32 %v928, 1.442695
    %v930 = vpow.pop %v929
    %v931 = vadd.f32 %v930, 1.0
    %v932 = vrcp.pop %v931
    %v933 = vmul.f32 1.0, %v932
    %v934 = vadd.f32 %v909, %v126
    %v936 = vrot.slane %v934, 5
    %v938 = vmul.f32 %v923, %v936
    %v939 = vadd.f32 %v361, %v938
    %v940 = vtanh.pop %v939
    %v941 = vsub.f32 1.0, %v933
    %v942 = vmul.f32 %v941, %v940
    %v944 = vrot.slane %v828, 7
    %v946 = vmul.f32 %v933, %v944
    %v947 = vadd.f32 %v942, %v946
    %v948 = vpack.c.bf16 %v947, %v947
    %v950 = vshrl.u32 %v948, 16
    %v952 = vrot.slane %v950, 1
    %954 = vmatprep.subr.bf16.mxu0 %v443
    %955 = vmatpush1.bf16.msra.mxu0 %v442
    %956 = vmatprep.subr.bf16.mxu0 %v446
    %957 = vmatpush1.bf16.msra.mxu0 %v445
    %958 = vmatprep.subr.bf16.mxu0 %v449
    %959 = vmatpush1.bf16.msra.mxu0 %v448
    %960 = vmatprep.subr.bf16.mxu0 %v452
    %961 = vmatpush1.bf16.msra.mxu0 %v451
    %962 = vmatprep.subr.bf16.mxu0 %v455
    %963 = vmatpush1.bf16.msra.mxu0 %v454
    %964 = vmatprep.subr.bf16.mxu0 %v458
    %965 = vmatpush1.bf16.msra.mxu0 %v457
    %966 = vmatprep.subr.bf16.mxu0 %v461
    %967 = vmatpush1.bf16.msra.mxu0 %v460
    %968 = vmatprep.subr.bf16.mxu0 %v464
    %969 = vmatpush1.bf16.msra.mxu0 %v463
    %970 = vmatprep.subr.bf16.mxu0 0
    %971 = vmatpush1.bf16.msra.mxu0 0
    %972 = vmatprep.subr.bf16.mxu0 0
    %973 = vmatpush1.bf16.msra.mxu0 0
    %974 = vmatprep.subr.bf16.mxu0 0
    %975 = vmatpush1.bf16.msra.mxu0 0
    %976 = vmatprep.subr.bf16.mxu0 0
    %977 = vmatpush1.bf16.msra.mxu0 0
    %978 = vmatprep.subr.bf16.mxu0 0
    %979 = vmatpush1.bf16.msra.mxu0 0
    %980 = vmatprep.subr.bf16.mxu0 0
    %981 = vmatpush1.bf16.msra.mxu0 0
    %982 = vmatprep.subr.bf16.mxu0 0
    %983 = vmatpush1.bf16.msra.mxu0 0
    %984 = vmatprep.subr.bf16.mxu0 0
    %985 = vmatpush1.bf16.msra.mxu0 0
    %986 = vmatprep.mubr.bf16.mxu0 0
    %987 = vmatmul.mubr.bf16.gmra.mrb[0].mxu0 %v952
    %v988 = vpop.f32.mrb[0].mxu0
    %v989 = vadd.f32 0.0, %v988
    %v990 = vpop.f32.mrb[0].mxu0
    %v991 = vadd.f32 0.0, %v990
    %v992 = vpop.f32.mrb[0].mxu0
    %v993 = vpop.f32.mrb[0].mxu0
    %994 = vdwg.mxu0
    %995 = vmatprep.subr.bf16.mxu0 0
    %996 = vmatpush1.bf16.msra.mxu0 %v444
    %997 = vmatprep.subr.bf16.mxu0 0
    %998 = vmatpush1.bf16.msra.mxu0 %v447
    %999 = vmatprep.subr.bf16.mxu0 0
    %1000 = vmatpush1.bf16.msra.mxu0 %v450
    %1001 = vmatprep.subr.bf16.mxu0 0
    %1002 = vmatpush1.bf16.msra.mxu0 %v453
    %1003 = vmatprep.subr.bf16.mxu0 0
    %1004 = vmatpush1.bf16.msra.mxu0 %v456
    %1005 = vmatprep.subr.bf16.mxu0 0
    %1006 = vmatpush1.bf16.msra.mxu0 %v459
    %1007 = vmatprep.subr.bf16.mxu0 0
    %1008 = vmatpush1.bf16.msra.mxu0 %v462
    %1009 = vmatprep.subr.bf16.mxu0 0
    %1010 = vmatpush1.bf16.msra.mxu0 %v465
    %1011 = vmatprep.subr.bf16.mxu0 0
    %1012 = vmatpush1.bf16.msra.mxu0 0
    %1013 = vmatprep.subr.bf16.mxu0 0
    %1014 = vmatpush1.bf16.msra.mxu0 0
    %1015 = vmatprep.subr.bf16.mxu0 0
    %1016 = vmatpush1.bf16.msra.mxu0 0
    %1017 = vmatprep.subr.bf16.mxu0 0
    %1018 = vmatpush1.bf16.msra.mxu0 0
    %1019 = vmatprep.subr.bf16.mxu0 0
    %1020 = vmatpush1.bf16.msra.mxu0 0
    %1021 = vmatprep.subr.bf16.mxu0 0
    %1022 = vmatpush1.bf16.msra.mxu0 0
    %1023 = vmatprep.subr.bf16.mxu0 0
    %1024 = vmatpush1.bf16.msra.mxu0 0
    %1025 = vmatprep.subr.bf16.mxu0 0
    %1026 = vmatpush1.bf16.msra.mxu0 0
    %1027 = vmatprep.mubr.bf16.mxu0 0
    %1028 = vmatmul.mubr.bf16.gmra.mrb[0].mxu0 %v952
    %v1029 = vpop.f32.mrb[0].mxu0
    %v1030 = vadd.f32 0.0, %v1029
    %v1031 = vpop.f32.mrb[0].mxu0
    %v1032 = vpop.f32.mrb[0].mxu0
    %v1033 = vpop.f32.mrb[0].mxu0
    %1034 = vdwg.mxu0
    %v1036 = vrot.slane %v989, 4
    %v1038 = vadd.f32 %v359, %v1036
    %v1039 = vxor.u32 %v1038, 2147483648
    %v1040 = vmul.f32 %v1039, 1.442695
    %v1041 = vpow.pop %v1040
    %v1042 = vadd.f32 %v1041, 1.0
    %v1043 = vrcp.pop %v1042
    %v1044 = vmul.f32 1.0, %v1043
    %v1046 = vrot.slane %v991, 4
    %v1048 = vadd.f32 %v360, %v1046
    %v1049 = vxor.u32 %v1048, 2147483648
    %v1050 = vmul.f32 %v1049, 1.442695
    %v1051 = vpow.pop %v1050
    %v1052 = vadd.f32 %v1051, 1.0
    %v1053 = vrcp.pop %v1052
    %v1054 = vmul.f32 1.0, %v1053
    %v1055 = vadd.f32 %v1030, %v126
    %v1057 = vrot.slane %v1055, 4
    %v1059 = vmul.f32 %v1044, %v1057
    %v1060 = vadd.f32 %v361, %v1059
    %v1061 = vtanh.pop %v1060
    %v1062 = vsub.f32 1.0, %v1054
    %v1063 = vmul.f32 %v1062, %v1061
    %v1065 = vrot.slane %v947, 7
    %v1067 = vmul.f32 %v1054, %v1065
    %v1068 = vadd.f32 %v1063, %v1067
    %v1069 = vpack.c.bf16 %v1068, %v1068
    %v1071 = vrot.slane %v1069, 2
    %1073 = vmatprep.subr.bf16.mxu0 %v443
    %1074 = vmatpush1.bf16.msra.mxu0 %v442
    %1075 = vmatprep.subr.bf16.mxu0 %v446
    %1076 = vmatpush1.bf16.msra.mxu0 %v445
    %1077 = vmatprep.subr.bf16.mxu0 %v449
    %1078 = vmatpush1.bf16.msra.mxu0 %v448
    %1079 = vmatprep.subr.bf16.mxu0 %v452
    %1080 = vmatpush1.bf16.msra.mxu0 %v451
    %1081 = vmatprep.subr.bf16.mxu0 %v455
    %1082 = vmatpush1.bf16.msra.mxu0 %v454
    %1083 = vmatprep.subr.bf16.mxu0 %v458
    %1084 = vmatpush1.bf16.msra.mxu0 %v457
    %1085 = vmatprep.subr.bf16.mxu0 %v461
    %1086 = vmatpush1.bf16.msra.mxu0 %v460
    %1087 = vmatprep.subr.bf16.mxu0 %v464
    %1088 = vmatpush1.bf16.msra.mxu0 %v463
    %1089 = vmatprep.subr.bf16.mxu0 0
    %1090 = vmatpush1.bf16.msra.mxu0 0
    %1091 = vmatprep.subr.bf16.mxu0 0
    %1092 = vmatpush1.bf16.msra.mxu0 0
    %1093 = vmatprep.subr.bf16.mxu0 0
    %1094 = vmatpush1.bf16.msra.mxu0 0
    %1095 = vmatprep.subr.bf16.mxu0 0
    %1096 = vmatpush1.bf16.msra.mxu0 0
    %1097 = vmatprep.subr.bf16.mxu0 0
    %1098 = vmatpush1.bf16.msra.mxu0 0
    %1099 = vmatprep.subr.bf16.mxu0 0
    %1100 = vmatpush1.bf16.msra.mxu0 0
    %1101 = vmatprep.subr.bf16.mxu0 0
    %1102 = vmatpush1.bf16.msra.mxu0 0
    %1103 = vmatprep.subr.bf16.mxu0 0
    %1104 = vmatpush1.bf16.msra.mxu0 0
    %1105 = vmatprep.mubr.bf16.mxu0 0
    %1106 = vmatmul.mubr.bf16.gmra.mrb[0].mxu0 %v1071
    %v1107 = vpop.f32.mrb[0].mxu0
    %v1108 = vadd.f32 0.0, %v1107
    %v1109 = vpop.f32.mrb[0].mxu0
    %v1110 = vadd.f32 0.0, %v1109
    %v1111 = vpop.f32.mrb[0].mxu0
    %v1112 = vpop.f32.mrb[0].mxu0
    %1113 = vdwg.mxu0
    %1114 = vmatprep.subr.bf16.mxu0 0
    %1115 = vmatpush1.bf16.msra.mxu0 %v444
    %1116 = vmatprep.subr.bf16.mxu0 0
    %1117 = vmatpush1.bf16.msra.mxu0 %v447
    %1118 = vmatprep.subr.bf16.mxu0 0
    %1119 = vmatpush1.bf16.msra.mxu0 %v450
    %1120 = vmatprep.subr.bf16.mxu0 0
    %1121 = vmatpush1.bf16.msra.mxu0 %v453
    %1122 = vmatprep.subr.bf16.mxu0 0
    %1123 = vmatpush1.bf16.msra.mxu0 %v456
    %1124 = vmatprep.subr.bf16.mxu0 0
    %1125 = vmatpush1.bf16.msra.mxu0 %v459
    %1126 = vmatprep.subr.bf16.mxu0 0
    %1127 = vmatpush1.bf16.msra.mxu0 %v462
    %1128 = vmatprep.subr.bf16.mxu0 0
    %1129 = vmatpush1.bf16.msra.mxu0 %v465
    %1130 = vmatprep.subr.bf16.mxu0 0
    %1131 = vmatpush1.bf16.msra.mxu0 0
    %1132 = vmatprep.subr.bf16.mxu0 0
    %1133 = vmatpush1.bf16.msra.mxu0 0
    %1134 = vmatprep.subr.bf16.mxu0 0
    %1135 = vmatpush1.bf16.msra.mxu0 0
    %1136 = vmatprep.subr.bf16.mxu0 0
    %1137 = vmatpush1.bf16.msra.mxu0 0
    %1138 = vmatprep.subr.bf16.mxu0 0
    %1139 = vmatpush1.bf16.msra.mxu0 0
    %1140 = vmatprep.subr.bf16.mxu0 0
    %1141 = vmatpush1.bf16.msra.mxu0 0
    %1142 = vmatprep.subr.bf16.mxu0 0
    %1143 = vmatpush1.bf16.msra.mxu0 0
    %1144 = vmatprep.subr.bf16.mxu0 0
    %1145 = vmatpush1.bf16.msra.mxu0 0
    %1146 = vmatprep.mubr.bf16.mxu0 0
    %1147 = vmatmul.mubr.bf16.gmra.mrb[0].mxu0 %v1071
    %v1148 = vpop.f32.mrb[0].mxu0
    %v1149 = vadd.f32 0.0, %v1148
    %v1150 = vpop.f32.mrb[0].mxu0
    %v1151 = vpop.f32.mrb[0].mxu0
    %v1152 = vpop.f32.mrb[0].mxu0
    %1153 = vdwg.mxu0
    %v1155 = vrot.slane %v1108, 3
    %v1157 = vadd.f32 %v359, %v1155
    %v1158 = vxor.u32 %v1157, 2147483648
    %v1159 = vmul.f32 %v1158, 1.442695
    %v1160 = vpow.pop %v1159
    %v1161 = vadd.f32 %v1160, 1.0
    %v1162 = vrcp.pop %v1161
    %v1163 = vmul.f32 1.0, %v1162
    %v1165 = vrot.slane %v1110, 3
    %v1167 = vadd.f32 %v360, %v1165
    %v1168 = vxor.u32 %v1167, 2147483648
    %v1169 = vmul.f32 %v1168, 1.442695
    %v1170 = vpow.pop %v1169
    %v1171 = vadd.f32 %v1170, 1.0
    %v1172 = vrcp.pop %v1171
    %v1173 = vmul.f32 1.0, %v1172
    %v1174 = vadd.f32 %v1149, %v126
    %v1176 = vrot.slane %v1174, 3
    %v1178 = vmul.f32 %v1163, %v1176
    %v1179 = vadd.f32 %v361, %v1178
    %v1180 = vtanh.pop %v1179
    %v1181 = vsub.f32 1.0, %v1173
    %v1182 = vmul.f32 %v1181, %v1180
    %v1184 = vrot.slane %v1068, 7
    %v1186 = vmul.f32 %v1173, %v1184
    %v1187 = vadd.f32 %v1182, %v1186
    %v1188 = vpack.c.bf16 %v1187, %v1187
    %v1190 = vshrl.u32 %v1188, 16
    %v1192 = vrot.slane %v1190, 2
    %1194 = vmatprep.subr.bf16.mxu0 %v443
    %1195 = vmatpush1.bf16.msra.mxu0 %v442
    %1196 = vmatprep.subr.bf16.mxu0 %v446
    %1197 = vmatpush1.bf16.msra.mxu0 %v445
    %1198 = vmatprep.subr.bf16.mxu0 %v449
    %1199 = vmatpush1.bf16.msra.mxu0 %v448
    %1200 = vmatprep.subr.bf16.mxu0 %v452
    %1201 = vmatpush1.bf16.msra.mxu0 %v451
    %1202 = vmatprep.subr.bf16.mxu0 %v455
    %1203 = vmatpush1.bf16.msra.mxu0 %v454
    %1204 = vmatprep.subr.bf16.mxu0 %v458
    %1205 = vmatpush1.bf16.msra.mxu0 %v457
    %1206 = vmatprep.subr.bf16.mxu0 %v461
    %1207 = vmatpush1.bf16.msra.mxu0 %v460
    %1208 = vmatprep.subr.bf16.mxu0 %v464
    %1209 = vmatpush1.bf16.msra.mxu0 %v463
    %1210 = vmatprep.subr.bf16.mxu0 0
    %1211 = vmatpush1.bf16.msra.mxu0 0
    %1212 = vmatprep.subr.bf16.mxu0 0
    %1213 = vmatpush1.bf16.msra.mxu0 0
    %1214 = vmatprep.subr.bf16.mxu0 0
    %1215 = vmatpush1.bf16.msra.mxu0 0
    %1216 = vmatprep.subr.bf16.mxu0 0
    %1217 = vmatpush1.bf16.msra.mxu0 0
    %1218 = vmatprep.subr.bf16.mxu0 0
    %1219 = vmatpush1.bf16.msra.mxu0 0
    %1220 = vmatprep.subr.bf16.mxu0 0
    %1221 = vmatpush1.bf16.msra.mxu0 0
    %1222 = vmatprep.subr.bf16.mxu0 0
    %1223 = vmatpush1.bf16.msra.mxu0 0
    %1224 = vmatprep.subr.bf16.mxu0 0
    %1225 = vmatpush1.bf16.msra.mxu0 0
    %1226 = vmatprep.mubr.bf16.mxu0 0
    %1227 = vmatmul.mubr.bf16.gmra.mrb[0].mxu0 %v1192
    %v1228 = vpop.f32.mrb[0].mxu0
    %v1229 = vadd.f32 0.0, %v1228
    %v1230 = vpop.f32.mrb[0].mxu0
    %v1231 = vadd.f32 0.0, %v1230
    %v1232 = vpop.f32.mrb[0].mxu0
    %v1233 = vpop.f32.mrb[0].mxu0
    %1234 = vdwg.mxu0
    %1235 = vmatprep.subr.bf16.mxu0 0
    %1236 = vmatpush1.bf16.msra.mxu0 %v444
    %1237 = vmatprep.subr.bf16.mxu0 0
    %1238 = vmatpush1.bf16.msra.mxu0 %v447
    %1239 = vmatprep.subr.bf16.mxu0 0
    %1240 = vmatpush1.bf16.msra.mxu0 %v450
    %1241 = vmatprep.subr.bf16.mxu0 0
    %1242 = vmatpush1.bf16.msra.mxu0 %v453
    %1243 = vmatprep.subr.bf16.mxu0 0
    %1244 = vmatpush1.bf16.msra.mxu0 %v456
    %1245 = vmatprep.subr.bf16.mxu0 0
    %1246 = vmatpush1.bf16.msra.mxu0 %v459
    %1247 = vmatprep.subr.bf16.mxu0 0
    %1248 = vmatpush1.bf16.msra.mxu0 %v462
    %1249 = vmatprep.subr.bf16.mxu0 0
    %1250 = vmatpush1.bf16.msra.mxu0 %v465
    %1251 = vmatprep.subr.bf16.mxu0 0
    %1252 = vmatpush1.bf16.msra.mxu0 0
    %1253 = vmatprep.subr.bf16.mxu0 0
    %1254 = vmatpush1.bf16.msra.mxu0 0
    %1255 = vmatprep.subr.bf16.mxu0 0
    %1256 = vmatpush1.bf16.msra.mxu0 0
    %1257 = vmatprep.subr.bf16.mxu0 0
    %1258 = vmatpush1.bf16.msra.mxu0 0
    %1259 = vmatprep.subr.bf16.mxu0 0
    %1260 = vmatpush1.bf16.msra.mxu0 0
    %1261 = vmatprep.subr.bf16.mxu0 0
    %1262 = vmatpush1.bf16.msra.mxu0 0
    %1263 = vmatprep.subr.bf16.mxu0 0
    %1264 = vmatpush1.bf16.msra.mxu0 0
    %1265 = vmatprep.subr.bf16.mxu0 0
    %1266 = vmatpush1.bf16.msra.mxu0 0
    %1267 = vmatprep.mubr.bf16.mxu0 0
    %1268 = vmatmul.mubr.bf16.gmra.mrb[0].mxu0 %v1192
    %v1269 = vpop.f32.mrb[0].mxu0
    %v1270 = vadd.f32 0.0, %v1269
    %v1271 = vpop.f32.mrb[0].mxu0
    %v1272 = vpop.f32.mrb[0].mxu0
    %v1273 = vpop.f32.mrb[0].mxu0
    %1274 = vdwg.mxu0
    %v1276 = vrot.slane %v1229, 2
    %v1278 = vadd.f32 %v359, %v1276
    %v1279 = vxor.u32 %v1278, 2147483648
    %v1280 = vmul.f32 %v1279, 1.442695
    %v1281 = vpow.pop %v1280
    %v1282 = vadd.f32 %v1281, 1.0
    %v1283 = vrcp.pop %v1282
    %v1284 = vmul.f32 1.0, %v1283
    %v1286 = vrot.slane %v1231, 2
    %v1288 = vadd.f32 %v360, %v1286
    %v1289 = vxor.u32 %v1288, 2147483648
    %v1290 = vmul.f32 %v1289, 1.442695
    %v1291 = vpow.pop %v1290
    %v1292 = vadd.f32 %v1291, 1.0
    %v1293 = vrcp.pop %v1292
    %v1294 = vmul.f32 1.0, %v1293
    %v1295 = vadd.f32 %v1270, %v126
    %v1297 = vrot.slane %v1295, 2
    %v1299 = vmul.f32 %v1284, %v1297
    %v1300 = vadd.f32 %v361, %v1299
    %v1301 = vtanh.pop %v1300
    %v1302 = vsub.f32 1.0, %v1294
    %v1303 = vmul.f32 %v1302, %v1301
    %v1305 = vrot.slane %v1187, 7
    %v1307 = vmul.f32 %v1294, %v1305
    %v1308 = vadd.f32 %v1303, %v1307
    %v1309 = vpack.c.bf16 %v1308, %v1308
    %v1311 = vrot.slane %v1309, 3
    %1313 = vmatprep.subr.bf16.mxu0 %v443
    %1314 = vmatpush1.bf16.msra.mxu0 %v442
    %1315 = vmatprep.subr.bf16.mxu0 %v446
    %1316 = vmatpush1.bf16.msra.mxu0 %v445
    %1317 = vmatprep.subr.bf16.mxu0 %v449
    %1318 = vmatpush1.bf16.msra.mxu0 %v448
    %1319 = vmatprep.subr.bf16.mxu0 %v452
    %1320 = vmatpush1.bf16.msra.mxu0 %v451
    %1321 = vmatprep.subr.bf16.mxu0 %v455
    %1322 = vmatpush1.bf16.msra.mxu0 %v454
    %1323 = vmatprep.subr.bf16.mxu0 %v458
    %1324 = vmatpush1.bf16.msra.mxu0 %v457
    %1325 = vmatprep.subr.bf16.mxu0 %v461
    %1326 = vmatpush1.bf16.msra.mxu0 %v460
    %1327 = vmatprep.subr.bf16.mxu0 %v464
    %1328 = vmatpush1.bf16.msra.mxu0 %v463
    %1329 = vmatprep.subr.bf16.mxu0 0
    %1330 = vmatpush1.bf16.msra.mxu0 0
    %1331 = vmatprep.subr.bf16.mxu0 0
    %1332 = vmatpush1.bf16.msra.mxu0 0
    %1333 = vmatprep.subr.bf16.mxu0 0
    %1334 = vmatpush1.bf16.msra.mxu0 0
    %1335 = vmatprep.subr.bf16.mxu0 0
    %1336 = vmatpush1.bf16.msra.mxu0 0
    %1337 = vmatprep.subr.bf16.mxu0 0
    %1338 = vmatpush1.bf16.msra.mxu0 0
    %1339 = vmatprep.subr.bf16.mxu0 0
    %1340 = vmatpush1.bf16.msra.mxu0 0
    %1341 = vmatprep.subr.bf16.mxu0 0
    %1342 = vmatpush1.bf16.msra.mxu0 0
    %1343 = vmatprep.subr.bf16.mxu0 0
    %1344 = vmatpush1.bf16.msra.mxu0 0
    %1345 = vmatprep.mubr.bf16.mxu0 0
    %1346 = vmatmul.mubr.bf16.gmra.mrb[0].mxu0 %v1311
    %v1347 = vpop.f32.mrb[0].mxu0
    %v1348 = vadd.f32 0.0, %v1347
    %v1349 = vpop.f32.mrb[0].mxu0
    %v1350 = vadd.f32 0.0, %v1349
    %v1351 = vpop.f32.mrb[0].mxu0
    %v1352 = vpop.f32.mrb[0].mxu0
    %1353 = vdwg.mxu0
    %1354 = vmatprep.subr.bf16.mxu0 0
    %1355 = vmatpush1.bf16.msra.mxu0 %v444
    %1356 = vmatprep.subr.bf16.mxu0 0
    %1357 = vmatpush1.bf16.msra.mxu0 %v447
    %1358 = vmatprep.subr.bf16.mxu0 0
    %1359 = vmatpush1.bf16.msra.mxu0 %v450
    %1360 = vmatprep.subr.bf16.mxu0 0
    %1361 = vmatpush1.bf16.msra.mxu0 %v453
    %1362 = vmatprep.subr.bf16.mxu0 0
    %1363 = vmatpush1.bf16.msra.mxu0 %v456
    %1364 = vmatprep.subr.bf16.mxu0 0
    %1365 = vmatpush1.bf16.msra.mxu0 %v459
    %1366 = vmatprep.subr.bf16.mxu0 0
    %1367 = vmatpush1.bf16.msra.mxu0 %v462
    %1368 = vmatprep.subr.bf16.mxu0 0
    %1369 = vmatpush1.bf16.msra.mxu0 %v465
    %1370 = vmatprep.subr.bf16.mxu0 0
    %1371 = vmatpush1.bf16.msra.mxu0 0
    %1372 = vmatprep.subr.bf16.mxu0 0
    %1373 = vmatpush1.bf16.msra.mxu0 0
    %1374 = vmatprep.subr.bf16.mxu0 0
    %1375 = vmatpush1.bf16.msra.mxu0 0
    %1376 = vmatprep.subr.bf16.mxu0 0
    %1377 = vmatpush1.bf16.msra.mxu0 0
    %1378 = vmatprep.subr.bf16.mxu0 0
    %1379 = vmatpush1.bf16.msra.mxu0 0
    %1380 = vmatprep.subr.bf16.mxu0 0
    %1381 = vmatpush1.bf16.msra.mxu0 0
    %1382 = vmatprep.subr.bf16.mxu0 0
    %1383 = vmatpush1.bf16.msra.mxu0 0
    %1384 = vmatprep.subr.bf16.mxu0 0
    %1385 = vmatpush1.bf16.msra.mxu0 0
    %1386 = vmatprep.mubr.bf16.mxu0 0
    %1387 = vmatmul.mubr.bf16.gmra.mrb[0].mxu0 %v1311
    %v1388 = vpop.f32.mrb[0].mxu0
    %v1389 = vadd.f32 0.0, %v1388
    %v1390 = vpop.f32.mrb[0].mxu0
    %v1391 = vpop.f32.mrb[0].mxu0
    %v1392 = vpop.f32.mrb[0].mxu0
    %1393 = vdwg.mxu0
    %v1395 = vrot.slane %v1348, 1
    %v1397 = vadd.f32 %v359, %v1395
    %v1398 = vxor.u32 %v1397, 2147483648
    %v1399 = vmul.f32 %v1398, 1.442695
    %v1400 = vpow.pop %v1399
    %v1401 = vadd.f32 %v1400, 1.0
    %v1402 = vrcp.pop %v1401
    %v1403 = vmul.f32 1.0, %v1402
    %v1405 = vrot.slane %v1350, 1
    %v1407 = vadd.f32 %v360, %v1405
    %v1408 = vxor.u32 %v1407, 2147483648
    %v1409 = vmul.f32 %v1408, 1.442695
    %v1410 = vpow.pop %v1409
    %v1411 = vadd.f32 %v1410, 1.0
    %v1412 = vrcp.pop %v1411
    %v1413 = vmul.f32 1.0, %v1412
    %v1414 = vadd.f32 %v1389, %v126
    %v1416 = vrot.slane %v1414, 1
    %v1418 = vmul.f32 %v1403, %v1416
    %v1419 = vadd.f32 %v361, %v1418
    %v1420 = vtanh.pop %v1419
    %v1421 = vsub.f32 1.0, %v1413
    %v1422 = vmul.f32 %v1421, %v1420
    %v1424 = vrot.slane %v1308, 7
    %v1426 = vmul.f32 %v1413, %v1424
    %v1427 = vadd.f32 %v1422, %v1426
    %vm1428 = vcmask 1040384
    %v1429 = vsel %vm1428, %v592, %v708
    %vm1430 = vcmask 1041408
    %v1431 = vsel %vm1430, %v1429, %v828
    %vm1432 = vcmask 1042432
    %v1433 = vsel %vm1432, %v1431, %v947
    %vm1434 = vcmask 1043456
    %v1435 = vsel %vm1434, %v1433, %v1068
    %vm1436 = vcmask 1044480
    %v1437 = vsel %vm1436, %v1435, %v1187
    %vm1438 = vcmask 1045504
    %v1439 = vsel %vm1438, %v1437, %v1308
    %vm1440 = vcmask 1046528
    %v1441 = vsel %vm1440, %v1439, %v1427
    %v1442 = vpack.c.bf16 %v1441, %v1441
    %1443 = vst [vmem:[#allocation2] sm:$0xf] %v1442
    %s1444 = scalar_lea.vmem [#allocation7], 192
    %v1445 = vld [vmem:[%s1444] sm:$0xff]
    %v1446 = vld [vmem:[%s1444 + $0x8] sm:$0xf]
    %v1447 = vld [vmem:[%s1444 + $0xc] sm:$0xff]
    %v1448 = vld [vmem:[%s1444 + $0x14] sm:$0xf]
    %v1449 = vld [vmem:[%s1444 + $0x18] sm:$0xff]
    %v1450 = vld [vmem:[%s1444 + $0x20] sm:$0xf]
    %v1451 = vld [vmem:[%s1444 + $0x24] sm:$0xff]
    %v1452 = vld [vmem:[%s1444 + $0x2c] sm:$0xf]
    %v1453 = vld [vmem:[%s1444 + $0x30] sm:$0xff]
    %v1454 = vld [vmem:[%s1444 + $0x38] sm:$0xf]
    %v1455 = vld [vmem:[%s1444 + $0x3c] sm:$0xff]
    %v1456 = vld [vmem:[%s1444 + $0x44] sm:$0xf]
    %v1457 = vld [vmem:[%s1444 + $0x48] sm:$0xff]
    %v1458 = vld [vmem:[%s1444 + $0x50] sm:$0xf]
    %v1459 = vld [vmem:[%s1444 + $0x54] sm:$0xff]
    %v1460 = vld [vmem:[%s1444 + $0x5c] sm:$0xf]
    %v1461 = vld [vmem:[%s1444 + $0x60] sm:$0xff]
    %v1462 = vld [vmem:[%s1444 + $0x68] sm:$0xf]
    %v1463 = vld [vmem:[%s1444 + $0x6c] sm:$0xff]
    %v1464 = vld [vmem:[%s1444 + $0x74] sm:$0xf]
    %v1465 = vld [vmem:[%s1444 + $0x78] sm:$0xff]
    %v1466 = vld [vmem:[%s1444 + $0x80] sm:$0xf]
    %v1467 = vld [vmem:[%s1444 + $0x84] sm:$0xff]
    %v1468 = vld [vmem:[%s1444 + $0x8c] sm:$0xf]
    %v1469 = vld [vmem:[%s1444 + $0x90] sm:$0xff]
    %v1470 = vld [vmem:[%s1444 + $0x98] sm:$0xf]
    %v1471 = vld [vmem:[%s1444 + $0x9c] sm:$0xff]
    %v1472 = vld [vmem:[%s1444 + $0xa4] sm:$0xf]
    %v1473 = vld [vmem:[%s1444 + $0xa8] sm:$0xff]
    %v1474 = vld [vmem:[%s1444 + $0xb0] sm:$0xf]
    %v1475 = vld [vmem:[%s1444 + $0xb4] sm:$0xff]
    %v1476 = vld [vmem:[%s1444 + $0xbc] sm:$0xf]
    %s1477 = scalar_lea.vmem [#allocation9], 192
    %v1478 = vld [vmem:[%s1477] sm:$0xff]
    %v1479 = vld [vmem:[%s1477 + $0x8] sm:$0xf]
    %v1480 = vld [vmem:[%s1477 + $0xc] sm:$0xff]
    %v1481 = vld [vmem:[%s1477 + $0x14] sm:$0xf]
    %v1482 = vld [vmem:[%s1477 + $0x18] sm:$0xff]
    %v1483 = vld [vmem:[%s1477 + $0x20] sm:$0xf]
    %v1484 = vld [vmem:[%s1477 + $0x24] sm:$0xff]
    %v1485 = vld [vmem:[%s1477 + $0x2c] sm:$0xf]
    %v1486 = vld [vmem:[%s1477 + $0x30] sm:$0xff]
    %v1487 = vld [vmem:[%s1477 + $0x38] sm:$0xf]
    %v1488 = vld [vmem:[%s1477 + $0x3c] sm:$0xff]
    %v1489 = vld [vmem:[%s1477 + $0x44] sm:$0xf]
    %v1490 = vld [vmem:[%s1477 + $0x48] sm:$0xff]
    %v1491 = vld [vmem:[%s1477 + $0x50] sm:$0xf]
    %v1492 = vld [vmem:[%s1477 + $0x54] sm:$0xff]
    %v1493 = vld [vmem:[%s1477 + $0x5c] sm:$0xf]
    %v1494 = vld [vmem:[%s1477 + $0x60] sm:$0xff]
    %v1495 = vld [vmem:[%s1477 + $0x68] sm:$0xf]
    %v1496 = vld [vmem:[%s1477 + $0x6c] sm:$0xff]
    %v1497 = vld [vmem:[%s1477 + $0x74] sm:$0xf]
    %v1498 = vld [vmem:[%s1477 + $0x78] sm:$0xff]
    %v1499 = vld [vmem:[%s1477 + $0x80] sm:$0xf]
    %v1500 = vld [vmem:[%s1477 + $0x84] sm:$0xff]
    %v1501 = vld [vmem:[%s1477 + $0x8c] sm:$0xf]
    %v1502 = vld [vmem:[%s1477 + $0x90] sm:$0xff]
    %v1503 = vld [vmem:[%s1477 + $0x98] sm:$0xf]
    %v1504 = vld [vmem:[%s1477 + $0x9c] sm:$0xff]
    %v1505 = vld [vmem:[%s1477 + $0xa4] sm:$0xf]
    %v1506 = vld [vmem:[%s1477 + $0xa8] sm:$0xff]
    %v1507 = vld [vmem:[%s1477 + $0xb0] sm:$0xf]
    %v1508 = vld [vmem:[%s1477 + $0xb4] sm:$0xff]
    %v1509 = vld [vmem:[%s1477 + $0xbc] sm:$0xf]
    %s1510 = scalar_lea.vmem %s3, 3
    %v1511 = vld [vmem:[%s1510] sm:$0x7]
    %s1512 = scalar_lea.vmem %s4, 1
    %v1513 = vld [vmem:[%s1512] sm:$0x1]
    %v1514 = vld [vmem:[#allocation2] sm:$0xf]
    %v1516 = vlaneseq
    %v1517 = vshrl.u32 %v1516, 7
    %v1518 = vsub.s32 0, %v1517
    %v1519 = vrot.slane %v1511, %v1518
    %v1520 = vlaneseq
    %v1521 = vshrl.u32 %v1520, 7
    %v1522 = vsub.s32 1, %v1521
    %v1523 = vrot.slane %v1511, %v1522
    %v1524 = vlaneseq
    %v1525 = vshrl.u32 %v1524, 7
    %v1526 = vsub.s32 2, %v1525
    %v1527 = vrot.slane %v1511, %v1526
    %v1563 = vunpack.c.l.b16 %v1445
    %v1564 = vunpack.c.h.b16 %v1445
    %v1565 = vunpack.c.l.b16 %v1446
    %v1566 = vunpack.c.l.b16 %v1447
    %v1567 = vunpack.c.h.b16 %v1447
    %v1568 = vunpack.c.l.b16 %v1448
    %v1569 = vunpack.c.l.b16 %v1449
    %v1570 = vunpack.c.h.b16 %v1449
    %v1571 = vunpack.c.l.b16 %v1450
    %v1572 = vunpack.c.l.b16 %v1451
    %v1573 = vunpack.c.h.b16 %v1451
    %v1574 = vunpack.c.l.b16 %v1452
    %v1575 = vunpack.c.l.b16 %v1453
    %v1576 = vunpack.c.h.b16 %v1453
    %v1577 = vunpack.c.l.b16 %v1454
    %v1578 = vunpack.c.l.b16 %v1455
    %v1579 = vunpack.c.h.b16 %v1455
    %v1580 = vunpack.c.l.b16 %v1456
    %v1581 = vunpack.c.l.b16 %v1457
    %v1582 = vunpack.c.h.b16 %v1457
    %v1583 = vunpack.c.l.b16 %v1458
    %v1584 = vunpack.c.l.b16 %v1459
    %v1585 = vunpack.c.h.b16 %v1459
    %v1586 = vunpack.c.l.b16 %v1460
    %v1587 = vunpack.c.l.b16 %v1461
    %v1588 = vunpack.c.h.b16 %v1461
    %v1589 = vunpack.c.l.b16 %v1462
    %v1590 = vunpack.c.l.b16 %v1463
    %v1591 = vunpack.c.h.b16 %v1463
    %v1592 = vunpack.c.l.b16 %v1464
    %v1593 = vunpack.c.l.b16 %v1465
    %v1594 = vunpack.c.h.b16 %v1465
    %v1595 = vunpack.c.l.b16 %v1466
    %v1596 = vunpack.c.l.b16 %v1467
    %v1597 = vunpack.c.h.b16 %v1467
    %v1598 = vunpack.c.l.b16 %v1468
    %v1599 = vunpack.c.l.b16 %v1469
    %v1600 = vunpack.c.h.b16 %v1469
    %v1601 = vunpack.c.l.b16 %v1470
    %v1602 = vunpack.c.l.b16 %v1471
    %v1603 = vunpack.c.h.b16 %v1471
    %v1604 = vunpack.c.l.b16 %v1472
    %v1605 = vunpack.c.l.b16 %v1473
    %v1606 = vunpack.c.h.b16 %v1473
    %v1607 = vunpack.c.l.b16 %v1474
    %v1608 = vunpack.c.l.b16 %v1475
    %v1609 = vunpack.c.h.b16 %v1475
    %v1610 = vunpack.c.l.b16 %v1476
    %v1611 = vpack.c.b16 %v1566, %v1563
    %v1612 = vpack.c.b16 %v1567, %v1564
    %v1613 = vpack.c.b16 %v1568, %v1565
    %v1614 = vpack.c.b16 %v1572, %v1569
    %v1615 = vpack.c.b16 %v1573, %v1570
    %v1616 = vpack.c.b16 %v1574, %v1571
    %v1617 = vpack.c.b16 %v1578, %v1575
    %v1618 = vpack.c.b16 %v1579, %v1576
    %v1619 = vpack.c.b16 %v1580, %v1577
    %v1620 = vpack.c.b16 %v1584, %v1581
    %v1621 = vpack.c.b16 %v1585, %v1582
    %v1622 = vpack.c.b16 %v1586, %v1583
    %v1623 = vpack.c.b16 %v1590, %v1587
    %v1624 = vpack.c.b16 %v1591, %v1588
    %v1625 = vpack.c.b16 %v1592, %v1589
    %v1626 = vpack.c.b16 %v1596, %v1593
    %v1627 = vpack.c.b16 %v1597, %v1594
    %v1628 = vpack.c.b16 %v1598, %v1595
    %v1629 = vpack.c.b16 %v1602, %v1599
    %v1630 = vpack.c.b16 %v1603, %v1600
    %v1631 = vpack.c.b16 %v1604, %v1601
    %v1632 = vpack.c.b16 %v1608, %v1605
    %v1633 = vpack.c.b16 %v1609, %v1606
    %v1634 = vpack.c.b16 %v1610, %v1607
    %1659 = vmatprep.subr.bf16.mxu0 %v1612
    %1660 = vmatpush1.bf16.msra.mxu0 %v1611
    %1661 = vmatprep.subr.bf16.mxu0 %v1615
    %1662 = vmatpush1.bf16.msra.mxu0 %v1614
    %1663 = vmatprep.subr.bf16.mxu0 %v1618
    %1664 = vmatpush1.bf16.msra.mxu0 %v1617
    %1665 = vmatprep.subr.bf16.mxu0 %v1621
    %1666 = vmatpush1.bf16.msra.mxu0 %v1620
    %1667 = vmatprep.subr.bf16.mxu0 %v1624
    %1668 = vmatpush1.bf16.msra.mxu0 %v1623
    %1669 = vmatprep.subr.bf16.mxu0 %v1627
    %1670 = vmatpush1.bf16.msra.mxu0 %v1626
    %1671 = vmatprep.subr.bf16.mxu0 %v1630
    %1672 = vmatpush1.bf16.msra.mxu0 %v1629
    %1673 = vmatprep.subr.bf16.mxu0 %v1633
    %1674 = vmatpush1.bf16.msra.mxu0 %v1632
    %1675 = vmatprep.subr.bf16.mxu0 0
    %1676 = vmatpush1.bf16.msra.mxu0 0
    %1677 = vmatprep.subr.bf16.mxu0 0
    %1678 = vmatpush1.bf16.msra.mxu0 0
    %1679 = vmatprep.subr.bf16.mxu0 0
    %1680 = vmatpush1.bf16.msra.mxu0 0
    %1681 = vmatprep.subr.bf16.mxu0 0
    %1682 = vmatpush1.bf16.msra.mxu0 0
    %1683 = vmatprep.subr.bf16.mxu0 0
    %1684 = vmatpush1.bf16.msra.mxu0 0
    %1685 = vmatprep.subr.bf16.mxu0 0
    %1686 = vmatpush1.bf16.msra.mxu0 0
    %1687 = vmatprep.subr.bf16.mxu0 0
    %1688 = vmatpush1.bf16.msra.mxu0 0
    %1689 = vmatprep.subr.bf16.mxu0 0
    %1690 = vmatpush1.bf16.msra.mxu0 0
    %1691 = vmatprep.mubr.bf16.mxu0 0
    %1692 = vmatmul.mubr.bf16.gmra.mrb[0].mxu0 %v1514
    %v1693 = vpop.f32.mrb[0].mxu0
    %v1694 = vadd.f32 %v1519, %v1693
    %v1695 = vpop.f32.mrb[0].mxu0
    %v1696 = vadd.f32 %v1523, %v1695
    %v1697 = vpop.f32.mrb[0].mxu0
    %v1698 = vpop.f32.mrb[0].mxu0
    %1699 = vdwg.mxu0
    %1700 = vmatprep.subr.bf16.mxu0 0
    %1701 = vmatpush1.bf16.msra.mxu0 %v1613
    %1702 = vmatprep.subr.bf16.mxu0 0
    %1703 = vmatpush1.bf16.msra.mxu0 %v1616
    %1704 = vmatprep.subr.bf16.mxu0 0
    %1705 = vmatpush1.bf16.msra.mxu0 %v1619
    %1706 = vmatprep.subr.bf16.mxu0 0
    %1707 = vmatpush1.bf16.msra.mxu0 %v1622
    %1708 = vmatprep.subr.bf16.mxu0 0
    %1709 = vmatpush1.bf16.msra.mxu0 %v1625
    %1710 = vmatprep.subr.bf16.mxu0 0
    %1711 = vmatpush1.bf16.msra.mxu0 %v1628
    %1712 = vmatprep.subr.bf16.mxu0 0
    %1713 = vmatpush1.bf16.msra.mxu0 %v1631
    %1714 = vmatprep.subr.bf16.mxu0 0
    %1715 = vmatpush1.bf16.msra.mxu0 %v1634
    %1716 = vmatprep.subr.bf16.mxu0 0
    %1717 = vmatpush1.bf16.msra.mxu0 0
    %1718 = vmatprep.subr.bf16.mxu0 0
    %1719 = vmatpush1.bf16.msra.mxu0 0
    %1720 = vmatprep.subr.bf16.mxu0 0
    %1721 = vmatpush1.bf16.msra.mxu0 0
    %1722 = vmatprep.subr.bf16.mxu0 0
    %1723 = vmatpush1.bf16.msra.mxu0 0
    %1724 = vmatprep.subr.bf16.mxu0 0
    %1725 = vmatpush1.bf16.msra.mxu0 0
    %1726 = vmatprep.subr.bf16.mxu0 0
    %1727 = vmatpush1.bf16.msra.mxu0 0
    %1728 = vmatprep.subr.bf16.mxu0 0
    %1729 = vmatpush1.bf16.msra.mxu0 0
    %1730 = vmatprep.subr.bf16.mxu0 0
    %1731 = vmatpush1.bf16.msra.mxu0 0
    %1732 = vmatprep.mubr.bf16.mxu0 0
    %1733 = vmatmul.mubr.bf16.gmra.mrb[0].mxu0 %v1514
    %v1734 = vpop.f32.mrb[0].mxu0
    %v1735 = vadd.f32 %v1527, %v1734
    %v1736 = vpop.f32.mrb[0].mxu0
    %v1737 = vpop.f32.mrb[0].mxu0
    %v1738 = vpop.f32.mrb[0].mxu0
    %1739 = vdwg.mxu0
    %1740 = vst [vmem:[#allocation3] sm:$0xff] %v1694
    %1741 = vst [vmem:[#allocation3 + $0x8] sm:$0xff] %v1696
    %1742 = vst [vmem:[#allocation3 + $0x10] sm:$0xff] %v1735
    %v1743 = vld [vmem:[%s358] sm:$0xff]
    %v1744 = vld [vmem:[%s358 + $0x8] sm:$0xff]
    %v1745 = vld [vmem:[%s358 + $0x10] sm:$0xff]
    %v1778 = vunpack.c.l.b16 %v1478
    %v1779 = vunpack.c.h.b16 %v1478
    %v1780 = vunpack.c.l.b16 %v1479
    %v1781 = vunpack.c.l.b16 %v1480
    %v1782 = vunpack.c.h.b16 %v1480
    %v1783 = vunpack.c.l.b16 %v1481
    %v1784 = vunpack.c.l.b16 %v1482
    %v1785 = vunpack.c.h.b16 %v1482
    %v1786 = vunpack.c.l.b16 %v1483
    %v1787 = vunpack.c.l.b16 %v1484
    %v1788 = vunpack.c.h.b16 %v1484
    %v1789 = vunpack.c.l.b16 %v1485
    %v1790 = vunpack.c.l.b16 %v1486
    %v1791 = vunpack.c.h.b16 %v1486
    %v1792 = vunpack.c.l.b16 %v1487
    %v1793 = vunpack.c.l.b16 %v1488
    %v1794 = vunpack.c.h.b16 %v1488
    %v1795 = vunpack.c.l.b16 %v1489
    %v1796 = vunpack.c.l.b16 %v1490
    %v1797 = vunpack.c.h.b16 %v1490
    %v1798 = vunpack.c.l.b16 %v1491
    %v1799 = vunpack.c.l.b16 %v1492
    %v1800 = vunpack.c.h.b16 %v1492
    %v1801 = vunpack.c.l.b16 %v1493
    %v1802 = vunpack.c.l.b16 %v1494
    %v1803 = vunpack.c.h.b16 %v1494
    %v1804 = vunpack.c.l.b16 %v1495
    %v1805 = vunpack.c.l.b16 %v1496
    %v1806 = vunpack.c.h.b16 %v1496
    %v1807 = vunpack.c.l.b16 %v1497
    %v1808 = vunpack.c.l.b16 %v1498
    %v1809 = vunpack.c.h.b16 %v1498
    %v1810 = vunpack.c.l.b16 %v1499
    %v1811 = vunpack.c.l.b16 %v1500
    %v1812 = vunpack.c.h.b16 %v1500
    %v1813 = vunpack.c.l.b16 %v1501
    %v1814 = vunpack.c.l.b16 %v1502
    %v1815 = vunpack.c.h.b16 %v1502
    %v1816 = vunpack.c.l.b16 %v1503
    %v1817 = vunpack.c.l.b16 %v1504
    %v1818 = vunpack.c.h.b16 %v1504
    %v1819 = vunpack.c.l.b16 %v1505
    %v1820 = vunpack.c.l.b16 %v1506
    %v1821 = vunpack.c.h.b16 %v1506
    %v1822 = vunpack.c.l.b16 %v1507
    %v1823 = vunpack.c.l.b16 %v1508
    %v1824 = vunpack.c.h.b16 %v1508
    %v1825 = vunpack.c.l.b16 %v1509
    %v1826 = vpack.c.b16 %v1781, %v1778
    %v1827 = vpack.c.b16 %v1782, %v1779
    %v1828 = vpack.c.b16 %v1783, %v1780
    %v1829 = vpack.c.b16 %v1787, %v1784
    %v1830 = vpack.c.b16 %v1788, %v1785
    %v1831 = vpack.c.b16 %v1789, %v1786
    %v1832 = vpack.c.b16 %v1793, %v1790
    %v1833 = vpack.c.b16 %v1794, %v1791
    %v1834 = vpack.c.b16 %v1795, %v1792
    %v1835 = vpack.c.b16 %v1799, %v1796
    %v1836 = vpack.c.b16 %v1800, %v1797
    %v1837 = vpack.c.b16 %v1801, %v1798
    %v1838 = vpack.c.b16 %v1805, %v1802
    %v1839 = vpack.c.b16 %v1806, %v1803
    %v1840 = vpack.c.b16 %v1807, %v1804
    %v1841 = vpack.c.b16 %v1811, %v1808
    %v1842 = vpack.c.b16 %v1812, %v1809
    %v1843 = vpack.c.b16 %v1813, %v1810
    %v1844 = vpack.c.b16 %v1817, %v1814
    %v1845 = vpack.c.b16 %v1818, %v1815
    %v1846 = vpack.c.b16 %v1819, %v1816
    %v1847 = vpack.c.b16 %v1823, %v1820
    %v1848 = vpack.c.b16 %v1824, %v1821
    %v1849 = vpack.c.b16 %v1825, %v1822
    %1874 = vmatprep.subr.bf16.mxu0 %v1827
    %1875 = vmatpush1.bf16.msra.mxu0 %v1826
    %1876 = vmatprep.subr.bf16.mxu0 %v1830
    %1877 = vmatpush1.bf16.msra.mxu0 %v1829
    %1878 = vmatprep.subr.bf16.mxu0 %v1833
    %1879 = vmatpush1.bf16.msra.mxu0 %v1832
    %1880 = vmatprep.subr.bf16.mxu0 %v1836
    %1881 = vmatpush1.bf16.msra.mxu0 %v1835
    %1882 = vmatprep.subr.bf16.mxu0 %v1839
    %1883 = vmatpush1.bf16.msra.mxu0 %v1838
    %1884 = vmatprep.subr.bf16.mxu0 %v1842
    %1885 = vmatpush1.bf16.msra.mxu0 %v1841
    %1886 = vmatprep.subr.bf16.mxu0 %v1845
    %1887 = vmatpush1.bf16.msra.mxu0 %v1844
    %1888 = vmatprep.subr.bf16.mxu0 %v1848
    %1889 = vmatpush1.bf16.msra.mxu0 %v1847
    %1890 = vmatprep.subr.bf16.mxu0 0
    %1891 = vmatpush1.bf16.msra.mxu0 0
    %1892 = vmatprep.subr.bf16.mxu0 0
    %1893 = vmatpush1.bf16.msra.mxu0 0
    %1894 = vmatprep.subr.bf16.mxu0 0
    %1895 = vmatpush1.bf16.msra.mxu0 0
    %1896 = vmatprep.subr.bf16.mxu0 0
    %1897 = vmatpush1.bf16.msra.mxu0 0
    %1898 = vmatprep.subr.bf16.mxu0 0
    %1899 = vmatpush1.bf16.msra.mxu0 0
    %1900 = vmatprep.subr.bf16.mxu0 0
    %1901 = vmatpush1.bf16.msra.mxu0 0
    %1902 = vmatprep.subr.bf16.mxu0 0
    %1903 = vmatpush1.bf16.msra.mxu0 0
    %1904 = vmatprep.subr.bf16.mxu0 0
    %1905 = vmatpush1.bf16.msra.mxu0 0
    %1906 = vmatprep.mubr.bf16.mxu0 0
    %1907 = vmatmul.mubr.bf16.gmra.mrb[0].mxu0 0
    %v1908 = vpop.f32.mrb[0].mxu0
    %v1909 = vadd.f32 0.0, %v1908
    %v1910 = vpop.f32.mrb[0].mxu0
    %v1911 = vadd.f32 0.0, %v1910
    %v1912 = vpop.f32.mrb[0].mxu0
    %v1913 = vpop.f32.mrb[0].mxu0
    %1914 = vdwg.mxu0
    %1915 = vmatprep.subr.bf16.mxu0 0
    %1916 = vmatpush1.bf16.msra.mxu0 %v1828
    %1917 = vmatprep.subr.bf16.mxu0 0
    %1918 = vmatpush1.bf16.msra.mxu0 %v1831
    %1919 = vmatprep.subr.bf16.mxu0 0
    %1920 = vmatpush1.bf16.msra.mxu0 %v1834
    %1921 = vmatprep.subr.bf16.mxu0 0
    %1922 = vmatpush1.bf16.msra.mxu0 %v1837
    %1923 = vmatprep.subr.bf16.mxu0 0
    %1924 = vmatpush1.bf16.msra.mxu0 %v1840
    %1925 = vmatprep.subr.bf16.mxu0 0
    %1926 = vmatpush1.bf16.msra.mxu0 %v1843
    %1927 = vmatprep.subr.bf16.mxu0 0
    %1928 = vmatpush1.bf16.msra.mxu0 %v1846
    %1929 = vmatprep.subr.bf16.mxu0 0
    %1930 = vmatpush1.bf16.msra.mxu0 %v1849
    %1931 = vmatprep.subr.bf16.mxu0 0
    %1932 = vmatpush1.bf16.msra.mxu0 0
    %1933 = vmatprep.subr.bf16.mxu0 0
    %1934 = vmatpush1.bf16.msra.mxu0 0
    %1935 = vmatprep.subr.bf16.mxu0 0
    %1936 = vmatpush1.bf16.msra.mxu0 0
    %1937 = vmatprep.subr.bf16.mxu0 0
    %1938 = vmatpush1.bf16.msra.mxu0 0
    %1939 = vmatprep.subr.bf16.mxu0 0
    %1940 = vmatpush1.bf16.msra.mxu0 0
    %1941 = vmatprep.subr.bf16.mxu0 0
    %1942 = vmatpush1.bf16.msra.mxu0 0
    %1943 = vmatprep.subr.bf16.mxu0 0
    %1944 = vmatpush1.bf16.msra.mxu0 0
    %1945 = vmatprep.subr.bf16.mxu0 0
    %1946 = vmatpush1.bf16.msra.mxu0 0
    %1947 = vmatprep.mubr.bf16.mxu0 0
    %1948 = vmatmul.mubr.bf16.gmra.mrb[0].mxu0 0
    %v1949 = vpop.f32.mrb[0].mxu0
    %v1950 = vadd.f32 0.0, %v1949
    %v1951 = vpop.f32.mrb[0].mxu0
    %v1952 = vpop.f32.mrb[0].mxu0
    %v1953 = vpop.f32.mrb[0].mxu0
    %1954 = vdwg.mxu0
    %v1955 = vadd.f32 %v1743, %v1909
    %v1956 = vxor.u32 %v1955, 2147483648
    %v1957 = vmul.f32 %v1956, 1.442695
    %v1958 = vpow.pop %v1957
    %v1959 = vadd.f32 %v1958, 1.0
    %v1960 = vrcp.pop %v1959
    %v1961 = vmul.f32 1.0, %v1960
    %v1962 = vadd.f32 %v1744, %v1911
    %v1963 = vxor.u32 %v1962, 2147483648
    %v1964 = vmul.f32 %v1963, 1.442695
    %v1965 = vpow.pop %v1964
    %v1966 = vadd.f32 %v1965, 1.0
    %v1967 = vrcp.pop %v1966
    %v1968 = vmul.f32 1.0, %v1967
    %v1969 = vadd.f32 %v1950, %v1513
    %v1970 = vmul.f32 %v1961, %v1969
    %v1971 = vadd.f32 %v1745, %v1970
    %v1972 = vtanh.pop %v1971
    %v1973 = vsub.f32 1.0, %v1968
    %v1974 = vmul.f32 %v1973, %v1972
    %v1975 = vmul.f32 %v1968, 0.0
    %v1976 = vadd.f32 %v1974, %v1975
    %v1977 = vpack.c.bf16 %v1976, %v1976
    %1978 = vmatprep.subr.bf16.mxu0 %v1827
    %1979 = vmatpush1.bf16.msra.mxu0 %v1826
    %1980 = vmatprep.subr.bf16.mxu0 %v1830
    %1981 = vmatpush1.bf16.msra.mxu0 %v1829
    %1982 = vmatprep.subr.bf16.mxu0 %v1833
    %1983 = vmatpush1.bf16.msra.mxu0 %v1832
    %1984 = vmatprep.subr.bf16.mxu0 %v1836
    %1985 = vmatpush1.bf16.msra.mxu0 %v1835
    %1986 = vmatprep.subr.bf16.mxu0 %v1839
    %1987 = vmatpush1.bf16.msra.mxu0 %v1838
    %1988 = vmatprep.subr.bf16.mxu0 %v1842
    %1989 = vmatpush1.bf16.msra.mxu0 %v1841
    %1990 = vmatprep.subr.bf16.mxu0 %v1845
    %1991 = vmatpush1.bf16.msra.mxu0 %v1844
    %1992 = vmatprep.subr.bf16.mxu0 %v1848
    %1993 = vmatpush1.bf16.msra.mxu0 %v1847
    %1994 = vmatprep.subr.bf16.mxu0 0
    %1995 = vmatpush1.bf16.msra.mxu0 0
    %1996 = vmatprep.subr.bf16.mxu0 0
    %1997 = vmatpush1.bf16.msra.mxu0 0
    %1998 = vmatprep.subr.bf16.mxu0 0
    %1999 = vmatpush1.bf16.msra.mxu0 0
    %2000 = vmatprep.subr.bf16.mxu0 0
    %2001 = vmatpush1.bf16.msra.mxu0 0
    %2002 = vmatprep.subr.bf16.mxu0 0
    %2003 = vmatpush1.bf16.msra.mxu0 0
    %2004 = vmatprep.subr.bf16.mxu0 0
    %2005 = vmatpush1.bf16.msra.mxu0 0
    %2006 = vmatprep.subr.bf16.mxu0 0
    %2007 = vmatpush1.bf16.msra.mxu0 0
    %2008 = vmatprep.subr.bf16.mxu0 0
    %2009 = vmatpush1.bf16.msra.mxu0 0
    %2010 = vmatprep.mubr.bf16.mxu0 0
    %2011 = vmatmul.mubr.bf16.gmra.mrb[0].mxu0 %v1977
    %v2012 = vpop.f32.mrb[0].mxu0
    %v2013 = vadd.f32 0.0, %v2012
    %v2014 = vpop.f32.mrb[0].mxu0
    %v2015 = vadd.f32 0.0, %v2014
    %v2016 = vpop.f32.mrb[0].mxu0
    %v2017 = vpop.f32.mrb[0].mxu0
    %2018 = vdwg.mxu0
    %2019 = vmatprep.subr.bf16.mxu0 0
    %2020 = vmatpush1.bf16.msra.mxu0 %v1828
    %2021 = vmatprep.subr.bf16.mxu0 0
    %2022 = vmatpush1.bf16.msra.mxu0 %v1831
    %2023 = vmatprep.subr.bf16.mxu0 0
    %2024 = vmatpush1.bf16.msra.mxu0 %v1834
    %2025 = vmatprep.subr.bf16.mxu0 0
    %2026 = vmatpush1.bf16.msra.mxu0 %v1837
    %2027 = vmatprep.subr.bf16.mxu0 0
    %2028 = vmatpush1.bf16.msra.mxu0 %v1840
    %2029 = vmatprep.subr.bf16.mxu0 0
    %2030 = vmatpush1.bf16.msra.mxu0 %v1843
    %2031 = vmatprep.subr.bf16.mxu0 0
    %2032 = vmatpush1.bf16.msra.mxu0 %v1846
    %2033 = vmatprep.subr.bf16.mxu0 0
    %2034 = vmatpush1.bf16.msra.mxu0 %v1849
    %2035 = vmatprep.subr.bf16.mxu0 0
    %2036 = vmatpush1.bf16.msra.mxu0 0
    %2037 = vmatprep.subr.bf16.mxu0 0
    %2038 = vmatpush1.bf16.msra.mxu0 0
    %2039 = vmatprep.subr.bf16.mxu0 0
    %2040 = vmatpush1.bf16.msra.mxu0 0
    %2041 = vmatprep.subr.bf16.mxu0 0
    %2042 = vmatpush1.bf16.msra.mxu0 0
    %2043 = vmatprep.subr.bf16.mxu0 0
    %2044 = vmatpush1.bf16.msra.mxu0 0
    %2045 = vmatprep.subr.bf16.mxu0 0
    %2046 = vmatpush1.bf16.msra.mxu0 0
    %2047 = vmatprep.subr.bf16.mxu0 0
    %2048 = vmatpush1.bf16.msra.mxu0 0
    %2049 = vmatprep.subr.bf16.mxu0 0
    %2050 = vmatpush1.bf16.msra.mxu0 0
    %2051 = vmatprep.mubr.bf16.mxu0 0
    %2052 = vmatmul.mubr.bf16.gmra.mrb[0].mxu0 %v1977
    %v2053 = vpop.f32.mrb[0].mxu0
    %v2054 = vadd.f32 0.0, %v2053
    %v2055 = vpop.f32.mrb[0].mxu0
    %v2056 = vpop.f32.mrb[0].mxu0
    %v2057 = vpop.f32.mrb[0].mxu0
    %2058 = vdwg.mxu0
    %v2060 = vrot.slane %v2013, 7
    %v2062 = vadd.f32 %v1743, %v2060
    %v2063 = vxor.u32 %v2062, 2147483648
    %v2064 = vmul.f32 %v2063, 1.442695
    %v2065 = vpow.pop %v2064
    %v2066 = vadd.f32 %v2065, 1.0
    %v2067 = vrcp.pop %v2066
    %v2068 = vmul.f32 1.0, %v2067
    %v2070 = vrot.slane %v2015, 7
    %v2072 = vadd.f32 %v1744, %v2070
    %v2073 = vxor.u32 %v2072, 2147483648
    %v2074 = vmul.f32 %v2073, 1.442695
    %v2075 = vpow.pop %v2074
    %v2076 = vadd.f32 %v2075, 1.0
    %v2077 = vrcp.pop %v2076
    %v2078 = vmul.f32 1.0, %v2077
    %v2079 = vadd.f32 %v2054, %v1513
    %v2081 = vrot.slane %v2079, 7
    %v2083 = vmul.f32 %v2068, %v2081
    %v2084 = vadd.f32 %v1745, %v2083
    %v2085 = vtanh.pop %v2084
    %v2086 = vsub.f32 1.0, %v2078
    %v2087 = vmul.f32 %v2086, %v2085
    %v2089 = vrot.slane %v1976, 7
    %v2091 = vmul.f32 %v2078, %v2089
    %v2092 = vadd.f32 %v2087, %v2091
    %v2093 = vpack.c.bf16 %v2092, %v2092
    %v2095 = vshrl.u32 %v2093, 16
    %2098 = vmatprep.subr.bf16.mxu0 %v1827
    %2099 = vmatpush1.bf16.msra.mxu0 %v1826
    %2100 = vmatprep.subr.bf16.mxu0 %v1830
    %2101 = vmatpush1.bf16.msra.mxu0 %v1829
    %2102 = vmatprep.subr.bf16.mxu0 %v1833
    %2103 = vmatpush1.bf16.msra.mxu0 %v1832
    %2104 = vmatprep.subr.bf16.mxu0 %v1836
    %2105 = vmatpush1.bf16.msra.mxu0 %v1835
    %2106 = vmatprep.subr.bf16.mxu0 %v1839
    %2107 = vmatpush1.bf16.msra.mxu0 %v1838
    %2108 = vmatprep.subr.bf16.mxu0 %v1842
    %2109 = vmatpush1.bf16.msra.mxu0 %v1841
    %2110 = vmatprep.subr.bf16.mxu0 %v1845
    %2111 = vmatpush1.bf16.msra.mxu0 %v1844
    %2112 = vmatprep.subr.bf16.mxu0 %v1848
    %2113 = vmatpush1.bf16.msra.mxu0 %v1847
    %2114 = vmatprep.subr.bf16.mxu0 0
    %2115 = vmatpush1.bf16.msra.mxu0 0
    %2116 = vmatprep.subr.bf16.mxu0 0
    %2117 = vmatpush1.bf16.msra.mxu0 0
    %2118 = vmatprep.subr.bf16.mxu0 0
    %2119 = vmatpush1.bf16.msra.mxu0 0
    %2120 = vmatprep.subr.bf16.mxu0 0
    %2121 = vmatpush1.bf16.msra.mxu0 0
    %2122 = vmatprep.subr.bf16.mxu0 0
    %2123 = vmatpush1.bf16.msra.mxu0 0
    %2124 = vmatprep.subr.bf16.mxu0 0
    %2125 = vmatpush1.bf16.msra.mxu0 0
    %2126 = vmatprep.subr.bf16.mxu0 0
    %2127 = vmatpush1.bf16.msra.mxu0 0
    %2128 = vmatprep.subr.bf16.mxu0 0
    %2129 = vmatpush1.bf16.msra.mxu0 0
    %2130 = vmatprep.mubr.bf16.mxu0 0
    %2131 = vmatmul.mubr.bf16.gmra.mrb[0].mxu0 %v2095
    %v2132 = vpop.f32.mrb[0].mxu0
    %v2133 = vadd.f32 0.0, %v2132
    %v2134 = vpop.f32.mrb[0].mxu0
    %v2135 = vadd.f32 0.0, %v2134
    %v2136 = vpop.f32.mrb[0].mxu0
    %v2137 = vpop.f32.mrb[0].mxu0
    %2138 = vdwg.mxu0
    %2139 = vmatprep.subr.bf16.mxu0 0
    %2140 = vmatpush1.bf16.msra.mxu0 %v1828
    %2141 = vmatprep.subr.bf16.mxu0 0
    %2142 = vmatpush1.bf16.msra.mxu0 %v1831
    %2143 = vmatprep.subr.bf16.mxu0 0
    %2144 = vmatpush1.bf16.msra.mxu0 %v1834
    %2145 = vmatprep.subr.bf16.mxu0 0
    %2146 = vmatpush1.bf16.msra.mxu0 %v1837
    %2147 = vmatprep.subr.bf16.mxu0 0
    %2148 = vmatpush1.bf16.msra.mxu0 %v1840
    %2149 = vmatprep.subr.bf16.mxu0 0
    %2150 = vmatpush1.bf16.msra.mxu0 %v1843
    %2151 = vmatprep.subr.bf16.mxu0 0
    %2152 = vmatpush1.bf16.msra.mxu0 %v1846
    %2153 = vmatprep.subr.bf16.mxu0 0
    %2154 = vmatpush1.bf16.msra.mxu0 %v1849
    %2155 = vmatprep.subr.bf16.mxu0 0
    %2156 = vmatpush1.bf16.msra.mxu0 0
    %2157 = vmatprep.subr.bf16.mxu0 0
    %2158 = vmatpush1.bf16.msra.mxu0 0
    %2159 = vmatprep.subr.bf16.mxu0 0
    %2160 = vmatpush1.bf16.msra.mxu0 0
    %2161 = vmatprep.subr.bf16.mxu0 0
    %2162 = vmatpush1.bf16.msra.mxu0 0
    %2163 = vmatprep.subr.bf16.mxu0 0
    %2164 = vmatpush1.bf16.msra.mxu0 0
    %2165 = vmatprep.subr.bf16.mxu0 0
    %2166 = vmatpush1.bf16.msra.mxu0 0
    %2167 = vmatprep.subr.bf16.mxu0 0
    %2168 = vmatpush1.bf16.msra.mxu0 0
    %2169 = vmatprep.subr.bf16.mxu0 0
    %2170 = vmatpush1.bf16.msra.mxu0 0
    %2171 = vmatprep.mubr.bf16.mxu0 0
    %2172 = vmatmul.mubr.bf16.gmra.mrb[0].mxu0 %v2095
    %v2173 = vpop.f32.mrb[0].mxu0
    %v2174 = vadd.f32 0.0, %v2173
    %v2175 = vpop.f32.mrb[0].mxu0
    %v2176 = vpop.f32.mrb[0].mxu0
    %v2177 = vpop.f32.mrb[0].mxu0
    %2178 = vdwg.mxu0
    %v2180 = vrot.slane %v2133, 6
    %v2182 = vadd.f32 %v1743, %v2180
    %v2183 = vxor.u32 %v2182, 2147483648
    %v2184 = vmul.f32 %v2183, 1.442695
    %v2185 = vpow.pop %v2184
    %v2186 = vadd.f32 %v2185, 1.0
    %v2187 = vrcp.pop %v2186
    %v2188 = vmul.f32 1.0, %v2187
    %v2190 = vrot.slane %v2135, 6
    %v2192 = vadd.f32 %v1744, %v2190
    %v2193 = vxor.u32 %v2192, 2147483648
    %v2194 = vmul.f32 %v2193, 1.442695
    %v2195 = vpow.pop %v2194
    %v2196 = vadd.f32 %v2195, 1.0
    %v2197 = vrcp.pop %v2196
    %v2198 = vmul.f32 1.0, %v2197
    %v2199 = vadd.f32 %v2174, %v1513
    %v2201 = vrot.slane %v2199, 6
    %v2203 = vmul.f32 %v2188, %v2201
    %v2204 = vadd.f32 %v1745, %v2203
    %v2205 = vtanh.pop %v2204
    %v2206 = vsub.f32 1.0, %v2198
    %v2207 = vmul.f32 %v2206, %v2205
    %v2209 = vrot.slane %v2092, 7
    %v2211 = vmul.f32 %v2198, %v2209
    %v2212 = vadd.f32 %v2207, %v2211
    %v2213 = vpack.c.bf16 %v2212, %v2212
    %v2215 = vrot.slane %v2213, 1
    %2217 = vmatprep.subr.bf16.mxu0 %v1827
    %2218 = vmatpush1.bf16.msra.mxu0 %v1826
    %2219 = vmatprep.subr.bf16.mxu0 %v1830
    %2220 = vmatpush1.bf16.msra.mxu0 %v1829
    %2221 = vmatprep.subr.bf16.mxu0 %v1833
    %2222 = vmatpush1.bf16.msra.mxu0 %v1832
    %2223 = vmatprep.subr.bf16.mxu0 %v1836
    %2224 = vmatpush1.bf16.msra.mxu0 %v1835
    %2225 = vmatprep.subr.bf16.mxu0 %v1839
    %2226 = vmatpush1.bf16.msra.mxu0 %v1838
    %2227 = vmatprep.subr.bf16.mxu0 %v1842
    %2228 = vmatpush1.bf16.msra.mxu0 %v1841
    %2229 = vmatprep.subr.bf16.mxu0 %v1845
    %2230 = vmatpush1.bf16.msra.mxu0 %v1844
    %2231 = vmatprep.subr.bf16.mxu0 %v1848
    %2232 = vmatpush1.bf16.msra.mxu0 %v1847
    %2233 = vmatprep.subr.bf16.mxu0 0
    %2234 = vmatpush1.bf16.msra.mxu0 0
    %2235 = vmatprep.subr.bf16.mxu0 0
    %2236 = vmatpush1.bf16.msra.mxu0 0
    %2237 = vmatprep.subr.bf16.mxu0 0
    %2238 = vmatpush1.bf16.msra.mxu0 0
    %2239 = vmatprep.subr.bf16.mxu0 0
    %2240 = vmatpush1.bf16.msra.mxu0 0
    %2241 = vmatprep.subr.bf16.mxu0 0
    %2242 = vmatpush1.bf16.msra.mxu0 0
    %2243 = vmatprep.subr.bf16.mxu0 0
    %2244 = vmatpush1.bf16.msra.mxu0 0
    %2245 = vmatprep.subr.bf16.mxu0 0
    %2246 = vmatpush1.bf16.msra.mxu0 0
    %2247 = vmatprep.subr.bf16.mxu0 0
    %2248 = vmatpush1.bf16.msra.mxu0 0
    %2249 = vmatprep.mubr.bf16.mxu0 0
    %2250 = vmatmul.mubr.bf16.gmra.mrb[0].mxu0 %v2215
    %v2251 = vpop.f32.mrb[0].mxu0
    %v2252 = vadd.f32 0.0, %v2251
    %v2253 = vpop.f32.mrb[0].mxu0
    %v2254 = vadd.f32 0.0, %v2253
    %v2255 = vpop.f32.mrb[0].mxu0
    %v2256 = vpop.f32.mrb[0].mxu0
    %2257 = vdwg.mxu0
    %2258 = vmatprep.subr.bf16.mxu0 0
    %2259 = vmatpush1.bf16.msra.mxu0 %v1828
    %2260 = vmatprep.subr.bf16.mxu0 0
    %2261 = vmatpush1.bf16.msra.mxu0 %v1831
    %2262 = vmatprep.subr.bf16.mxu0 0
    %2263 = vmatpush1.bf16.msra.mxu0 %v1834
    %2264 = vmatprep.subr.bf16.mxu0 0
    %2265 = vmatpush1.bf16.msra.mxu0 %v1837
    %2266 = vmatprep.subr.bf16.mxu0 0
    %2267 = vmatpush1.bf16.msra.mxu0 %v1840
    %2268 = vmatprep.subr.bf16.mxu0 0
    %2269 = vmatpush1.bf16.msra.mxu0 %v1843
    %2270 = vmatprep.subr.bf16.mxu0 0
    %2271 = vmatpush1.bf16.msra.mxu0 %v1846
    %2272 = vmatprep.subr.bf16.mxu0 0
    %2273 = vmatpush1.bf16.msra.mxu0 %v1849
    %2274 = vmatprep.subr.bf16.mxu0 0
    %2275 = vmatpush1.bf16.msra.mxu0 0
    %2276 = vmatprep.subr.bf16.mxu0 0
    %2277 = vmatpush1.bf16.msra.mxu0 0
    %2278 = vmatprep.subr.bf16.mxu0 0
    %2279 = vmatpush1.bf16.msra.mxu0 0
    %2280 = vmatprep.subr.bf16.mxu0 0
    %2281 = vmatpush1.bf16.msra.mxu0 0
    %2282 = vmatprep.subr.bf16.mxu0 0
    %2283 = vmatpush1.bf16.msra.mxu0 0
    %2284 = vmatprep.subr.bf16.mxu0 0
    %2285 = vmatpush1.bf16.msra.mxu0 0
    %2286 = vmatprep.subr.bf16.mxu0 0
    %2287 = vmatpush1.bf16.msra.mxu0 0
    %2288 = vmatprep.subr.bf16.mxu0 0
    %2289 = vmatpush1.bf16.msra.mxu0 0
    %2290 = vmatprep.mubr.bf16.mxu0 0
    %2291 = vmatmul.mubr.bf16.gmra.mrb[0].mxu0 %v2215
    %v2292 = vpop.f32.mrb[0].mxu0
    %v2293 = vadd.f32 0.0, %v2292
    %v2294 = vpop.f32.mrb[0].mxu0
    %v2295 = vpop.f32.mrb[0].mxu0
    %v2296 = vpop.f32.mrb[0].mxu0
    %2297 = vdwg.mxu0
    %v2299 = vrot.slane %v2252, 5
    %v2301 = vadd.f32 %v1743, %v2299
    %v2302 = vxor.u32 %v2301, 2147483648
    %v2303 = vmul.f32 %v2302, 1.442695
    %v2304 = vpow.pop %v2303
    %v2305 = vadd.f32 %v2304, 1.0
    %v2306 = vrcp.pop %v2305
    %v2307 = vmul.f32 1.0, %v2306
    %v2309 = vrot.slane %v2254, 5
    %v2311 = vadd.f32 %v1744, %v2309
    %v2312 = vxor.u32 %v2311, 2147483648
    %v2313 = vmul.f32 %v2312, 1.442695
    %v2314 = vpow.pop %v2313
    %v2315 = vadd.f32 %v2314, 1.0
    %v2316 = vrcp.pop %v2315
    %v2317 = vmul.f32 1.0, %v2316
    %v2318 = vadd.f32 %v2293, %v1513
    %v2320 = vrot.slane %v2318, 5
    %v2322 = vmul.f32 %v2307, %v2320
    %v2323 = vadd.f32 %v1745, %v2322
    %v2324 = vtanh.pop %v2323
    %v2325 = vsub.f32 1.0, %v2317
    %v2326 = vmul.f32 %v2325, %v2324
    %v2328 = vrot.slane %v2212, 7
    %v2330 = vmul.f32 %v2317, %v2328
    %v2331 = vadd.f32 %v2326, %v2330
    %v2332 = vpack.c.bf16 %v2331, %v2331
    %v2334 = vshrl.u32 %v2332, 16
    %v2336 = vrot.slane %v2334, 1
    %2338 = vmatprep.subr.bf16.mxu0 %v1827
    %2339 = vmatpush1.bf16.msra.mxu0 %v1826
    %2340 = vmatprep.subr.bf16.mxu0 %v1830
    %2341 = vmatpush1.bf16.msra.mxu0 %v1829
    %2342 = vmatprep.subr.bf16.mxu0 %v1833
    %2343 = vmatpush1.bf16.msra.mxu0 %v1832
    %2344 = vmatprep.subr.bf16.mxu0 %v1836
    %2345 = vmatpush1.bf16.msra.mxu0 %v1835
    %2346 = vmatprep.subr.bf16.mxu0 %v1839
    %2347 = vmatpush1.bf16.msra.mxu0 %v1838
    %2348 = vmatprep.subr.bf16.mxu0 %v1842
    %2349 = vmatpush1.bf16.msra.mxu0 %v1841
    %2350 = vmatprep.subr.bf16.mxu0 %v1845
    %2351 = vmatpush1.bf16.msra.mxu0 %v1844
    %2352 = vmatprep.subr.bf16.mxu0 %v1848
    %2353 = vmatpush1.bf16.msra.mxu0 %v1847
    %2354 = vmatprep.subr.bf16.mxu0 0
    %2355 = vmatpush1.bf16.msra.mxu0 0
    %2356 = vmatprep.subr.bf16.mxu0 0
    %2357 = vmatpush1.bf16.msra.mxu0 0
    %2358 = vmatprep.subr.bf16.mxu0 0
    %2359 = vmatpush1.bf16.msra.mxu0 0
    %2360 = vmatprep.subr.bf16.mxu0 0
    %2361 = vmatpush1.bf16.msra.mxu0 0
    %2362 = vmatprep.subr.bf16.mxu0 0
    %2363 = vmatpush1.bf16.msra.mxu0 0
    %2364 = vmatprep.subr.bf16.mxu0 0
    %2365 = vmatpush1.bf16.msra.mxu0 0
    %2366 = vmatprep.subr.bf16.mxu0 0
    %2367 = vmatpush1.bf16.msra.mxu0 0
    %2368 = vmatprep.subr.bf16.mxu0 0
    %2369 = vmatpush1.bf16.msra.mxu0 0
    %2370 = vmatprep.mubr.bf16.mxu0 0
    %2371 = vmatmul.mubr.bf16.gmra.mrb[0].mxu0 %v2336
    %v2372 = vpop.f32.mrb[0].mxu0
    %v2373 = vadd.f32 0.0, %v2372
    %v2374 = vpop.f32.mrb[0].mxu0
    %v2375 = vadd.f32 0.0, %v2374
    %v2376 = vpop.f32.mrb[0].mxu0
    %v2377 = vpop.f32.mrb[0].mxu0
    %2378 = vdwg.mxu0
    %2379 = vmatprep.subr.bf16.mxu0 0
    %2380 = vmatpush1.bf16.msra.mxu0 %v1828
    %2381 = vmatprep.subr.bf16.mxu0 0
    %2382 = vmatpush1.bf16.msra.mxu0 %v1831
    %2383 = vmatprep.subr.bf16.mxu0 0
    %2384 = vmatpush1.bf16.msra.mxu0 %v1834
    %2385 = vmatprep.subr.bf16.mxu0 0
    %2386 = vmatpush1.bf16.msra.mxu0 %v1837
    %2387 = vmatprep.subr.bf16.mxu0 0
    %2388 = vmatpush1.bf16.msra.mxu0 %v1840
    %2389 = vmatprep.subr.bf16.mxu0 0
    %2390 = vmatpush1.bf16.msra.mxu0 %v1843
    %2391 = vmatprep.subr.bf16.mxu0 0
    %2392 = vmatpush1.bf16.msra.mxu0 %v1846
    %2393 = vmatprep.subr.bf16.mxu0 0
    %2394 = vmatpush1.bf16.msra.mxu0 %v1849
    %2395 = vmatprep.subr.bf16.mxu0 0
    %2396 = vmatpush1.bf16.msra.mxu0 0
    %2397 = vmatprep.subr.bf16.mxu0 0
    %2398 = vmatpush1.bf16.msra.mxu0 0
    %2399 = vmatprep.subr.bf16.mxu0 0
    %2400 = vmatpush1.bf16.msra.mxu0 0
    %2401 = vmatprep.subr.bf16.mxu0 0
    %2402 = vmatpush1.bf16.msra.mxu0 0
    %2403 = vmatprep.subr.bf16.mxu0 0
    %2404 = vmatpush1.bf16.msra.mxu0 0
    %2405 = vmatprep.subr.bf16.mxu0 0
    %2406 = vmatpush1.bf16.msra.mxu0 0
    %2407 = vmatprep.subr.bf16.mxu0 0
    %2408 = vmatpush1.bf16.msra.mxu0 0
    %2409 = vmatprep.subr.bf16.mxu0 0
    %2410 = vmatpush1.bf16.msra.mxu0 0
    %2411 = vmatprep.mubr.bf16.mxu0 0
    %2412 = vmatmul.mubr.bf16.gmra.mrb[0].mxu0 %v2336
    %v2413 = vpop.f32.mrb[0].mxu0
    %v2414 = vadd.f32 0.0, %v2413
    %v2415 = vpop.f32.mrb[0].mxu0
    %v2416 = vpop.f32.mrb[0].mxu0
    %v2417 = vpop.f32.mrb[0].mxu0
    %2418 = vdwg.mxu0
    %v2420 = vrot.slane %v2373, 4
    %v2422 = vadd.f32 %v1743, %v2420
    %v2423 = vxor.u32 %v2422, 2147483648
    %v2424 = vmul.f32 %v2423, 1.442695
    %v2425 = vpow.pop %v2424
    %v2426 = vadd.f32 %v2425, 1.0
    %v2427 = vrcp.pop %v2426
    %v2428 = vmul.f32 1.0, %v2427
    %v2430 = vrot.slane %v2375, 4
    %v2432 = vadd.f32 %v1744, %v2430
    %v2433 = vxor.u32 %v2432, 2147483648
    %v2434 = vmul.f32 %v2433, 1.442695
    %v2435 = vpow.pop %v2434
    %v2436 = vadd.f32 %v2435, 1.0
    %v2437 = vrcp.pop %v2436
    %v2438 = vmul.f32 1.0, %v2437
    %v2439 = vadd.f32 %v2414, %v1513
    %v2441 = vrot.slane %v2439, 4
    %v2443 = vmul.f32 %v2428, %v2441
    %v2444 = vadd.f32 %v1745, %v2443
    %v2445 = vtanh.pop %v2444
    %v2446 = vsub.f32 1.0, %v2438
    %v2447 = vmul.f32 %v2446, %v2445
    %v2449 = vrot.slane %v2331, 7
    %v2451 = vmul.f32 %v2438, %v2449
    %v2452 = vadd.f32 %v2447, %v2451
    %v2453 = vpack.c.bf16 %v2452, %v2452
    %v2455 = vrot.slane %v2453, 2
    %2457 = vmatprep.subr.bf16.mxu0 %v1827
    %2458 = vmatpush1.bf16.msra.mxu0 %v1826
    %2459 = vmatprep.subr.bf16.mxu0 %v1830
    %2460 = vmatpush1.bf16.msra.mxu0 %v1829
    %2461 = vmatprep.subr.bf16.mxu0 %v1833
    %2462 = vmatpush1.bf16.msra.mxu0 %v1832
    %2463 = vmatprep.subr.bf16.mxu0 %v1836
    %2464 = vmatpush1.bf16.msra.mxu0 %v1835
    %2465 = vmatprep.subr.bf16.mxu0 %v1839
    %2466 = vmatpush1.bf16.msra.mxu0 %v1838
    %2467 = vmatprep.subr.bf16.mxu0 %v1842
    %2468 = vmatpush1.bf16.msra.mxu0 %v1841
    %2469 = vmatprep.subr.bf16.mxu0 %v1845
    %2470 = vmatpush1.bf16.msra.mxu0 %v1844
    %2471 = vmatprep.subr.bf16.mxu0 %v1848
    %2472 = vmatpush1.bf16.msra.mxu0 %v1847
    %2473 = vmatprep.subr.bf16.mxu0 0
    %2474 = vmatpush1.bf16.msra.mxu0 0
    %2475 = vmatprep.subr.bf16.mxu0 0
    %2476 = vmatpush1.bf16.msra.mxu0 0
    %2477 = vmatprep.subr.bf16.mxu0 0
    %2478 = vmatpush1.bf16.msra.mxu0 0
    %2479 = vmatprep.subr.bf16.mxu0 0
    %2480 = vmatpush1.bf16.msra.mxu0 0
    %2481 = vmatprep.subr.bf16.mxu0 0
    %2482 = vmatpush1.bf16.msra.mxu0 0
    %2483 = vmatprep.subr.bf16.mxu0 0
    %2484 = vmatpush1.bf16.msra.mxu0 0
    %2485 = vmatprep.subr.bf16.mxu0 0
    %2486 = vmatpush1.bf16.msra.mxu0 0
    %2487 = vmatprep.subr.bf16.mxu0 0
    %2488 = vmatpush1.bf16.msra.mxu0 0
    %2489 = vmatprep.mubr.bf16.mxu0 0
    %2490 = vmatmul.mubr.bf16.gmra.mrb[0].mxu0 %v2455
    %v2491 = vpop.f32.mrb[0].mxu0
    %v2492 = vadd.f32 0.0, %v2491
    %v2493 = vpop.f32.mrb[0].mxu0
    %v2494 = vadd.f32 0.0, %v2493
    %v2495 = vpop.f32.mrb[0].mxu0
    %v2496 = vpop.f32.mrb[0].mxu0
    %2497 = vdwg.mxu0
    %2498 = vmatprep.subr.bf16.mxu0 0
    %2499 = vmatpush1.bf16.msra.mxu0 %v1828
    %2500 = vmatprep.subr.bf16.mxu0 0
    %2501 = vmatpush1.bf16.msra.mxu0 %v1831
    %2502 = vmatprep.subr.bf16.mxu0 0
    %2503 = vmatpush1.bf16.msra.mxu0 %v1834
    %2504 = vmatprep.subr.bf16.mxu0 0
    %2505 = vmatpush1.bf16.msra.mxu0 %v1837
    %2506 = vmatprep.subr.bf16.mxu0 0
    %2507 = vmatpush1.bf16.msra.mxu0 %v1840
    %2508 = vmatprep.subr.bf16.mxu0 0
    %2509 = vmatpush1.bf16.msra.mxu0 %v1843
    %2510 = vmatprep.subr.bf16.mxu0 0
    %2511 = vmatpush1.bf16.msra.mxu0 %v1846
    %2512 = vmatprep.subr.bf16.mxu0 0
    %2513 = vmatpush1.bf16.msra.mxu0 %v1849
    %2514 = vmatprep.subr.bf16.mxu0 0
    %2515 = vmatpush1.bf16.msra.mxu0 0
    %2516 = vmatprep.subr.bf16.mxu0 0
    %2517 = vmatpush1.bf16.msra.mxu0 0
    %2518 = vmatprep.subr.bf16.mxu0 0
    %2519 = vmatpush1.bf16.msra.mxu0 0
    %2520 = vmatprep.subr.bf16.mxu0 0
    %2521 = vmatpush1.bf16.msra.mxu0 0
    %2522 = vmatprep.subr.bf16.mxu0 0
    %2523 = vmatpush1.bf16.msra.mxu0 0
    %2524 = vmatprep.subr.bf16.mxu0 0
    %2525 = vmatpush1.bf16.msra.mxu0 0
    %2526 = vmatprep.subr.bf16.mxu0 0
    %2527 = vmatpush1.bf16.msra.mxu0 0
    %2528 = vmatprep.subr.bf16.mxu0 0
    %2529 = vmatpush1.bf16.msra.mxu0 0
    %2530 = vmatprep.mubr.bf16.mxu0 0
    %2531 = vmatmul.mubr.bf16.gmra.mrb[0].mxu0 %v2455
    %v2532 = vpop.f32.mrb[0].mxu0
    %v2533 = vadd.f32 0.0, %v2532
    %v2534 = vpop.f32.mrb[0].mxu0
    %v2535 = vpop.f32.mrb[0].mxu0
    %v2536 = vpop.f32.mrb[0].mxu0
    %2537 = vdwg.mxu0
    %v2539 = vrot.slane %v2492, 3
    %v2541 = vadd.f32 %v1743, %v2539
    %v2542 = vxor.u32 %v2541, 2147483648
    %v2543 = vmul.f32 %v2542, 1.442695
    %v2544 = vpow.pop %v2543
    %v2545 = vadd.f32 %v2544, 1.0
    %v2546 = vrcp.pop %v2545
    %v2547 = vmul.f32 1.0, %v2546
    %v2549 = vrot.slane %v2494, 3
    %v2551 = vadd.f32 %v1744, %v2549
    %v2552 = vxor.u32 %v2551, 2147483648
    %v2553 = vmul.f32 %v2552, 1.442695
    %v2554 = vpow.pop %v2553
    %v2555 = vadd.f32 %v2554, 1.0
    %v2556 = vrcp.pop %v2555
    %v2557 = vmul.f32 1.0, %v2556
    %v2558 = vadd.f32 %v2533, %v1513
    %v2560 = vrot.slane %v2558, 3
    %v2562 = vmul.f32 %v2547, %v2560
    %v2563 = vadd.f32 %v1745, %v2562
    %v2564 = vtanh.pop %v2563
    %v2565 = vsub.f32 1.0, %v2557
    %v2566 = vmul.f32 %v2565, %v2564
    %v2568 = vrot.slane %v2452, 7
    %v2570 = vmul.f32 %v2557, %v2568
    %v2571 = vadd.f32 %v2566, %v2570
    %v2572 = vpack.c.bf16 %v2571, %v2571
    %v2574 = vshrl.u32 %v2572, 16
    %v2576 = vrot.slane %v2574, 2
    %2578 = vmatprep.subr.bf16.mxu0 %v1827
    %2579 = vmatpush1.bf16.msra.mxu0 %v1826
    %2580 = vmatprep.subr.bf16.mxu0 %v1830
    %2581 = vmatpush1.bf16.msra.mxu0 %v1829
    %2582 = vmatprep.subr.bf16.mxu0 %v1833
    %2583 = vmatpush1.bf16.msra.mxu0 %v1832
    %2584 = vmatprep.subr.bf16.mxu0 %v1836
    %2585 = vmatpush1.bf16.msra.mxu0 %v1835
    %2586 = vmatprep.subr.bf16.mxu0 %v1839
    %2587 = vmatpush1.bf16.msra.mxu0 %v1838
    %2588 = vmatprep.subr.bf16.mxu0 %v1842
    %2589 = vmatpush1.bf16.msra.mxu0 %v1841
    %2590 = vmatprep.subr.bf16.mxu0 %v1845
    %2591 = vmatpush1.bf16.msra.mxu0 %v1844
    %2592 = vmatprep.subr.bf16.mxu0 %v1848
    %2593 = vmatpush1.bf16.msra.mxu0 %v1847
    %2594 = vmatprep.subr.bf16.mxu0 0
    %2595 = vmatpush1.bf16.msra.mxu0 0
    %2596 = vmatprep.subr.bf16.mxu0 0
    %2597 = vmatpush1.bf16.msra.mxu0 0
    %2598 = vmatprep.subr.bf16.mxu0 0
    %2599 = vmatpush1.bf16.msra.mxu0 0
    %2600 = vmatprep.subr.bf16.mxu0 0
    %2601 = vmatpush1.bf16.msra.mxu0 0
    %2602 = vmatprep.subr.bf16.mxu0 0
    %2603 = vmatpush1.bf16.msra.mxu0 0
    %2604 = vmatprep.subr.bf16.mxu0 0
    %2605 = vmatpush1.bf16.msra.mxu0 0
    %2606 = vmatprep.subr.bf16.mxu0 0
    %2607 = vmatpush1.bf16.msra.mxu0 0
    %2608 = vmatprep.subr.bf16.mxu0 0
    %2609 = vmatpush1.bf16.msra.mxu0 0
    %2610 = vmatprep.mubr.bf16.mxu0 0
    %2611 = vmatmul.mubr.bf16.gmra.mrb[0].mxu0 %v2576
    %v2612 = vpop.f32.mrb[0].mxu0
    %v2613 = vadd.f32 0.0, %v2612
    %v2614 = vpop.f32.mrb[0].mxu0
    %v2615 = vadd.f32 0.0, %v2614
    %v2616 = vpop.f32.mrb[0].mxu0
    %v2617 = vpop.f32.mrb[0].mxu0
    %2618 = vdwg.mxu0
    %2619 = vmatprep.subr.bf16.mxu0 0
    %2620 = vmatpush1.bf16.msra.mxu0 %v1828
    %2621 = vmatprep.subr.bf16.mxu0 0
    %2622 = vmatpush1.bf16.msra.mxu0 %v1831
    %2623 = vmatprep.subr.bf16.mxu0 0
    %2624 = vmatpush1.bf16.msra.mxu0 %v1834
    %2625 = vmatprep.subr.bf16.mxu0 0
    %2626 = vmatpush1.bf16.msra.mxu0 %v1837
    %2627 = vmatprep.subr.bf16.mxu0 0
    %2628 = vmatpush1.bf16.msra.mxu0 %v1840
    %2629 = vmatprep.subr.bf16.mxu0 0
    %2630 = vmatpush1.bf16.msra.mxu0 %v1843
    %2631 = vmatprep.subr.bf16.mxu0 0
    %2632 = vmatpush1.bf16.msra.mxu0 %v1846
    %2633 = vmatprep.subr.bf16.mxu0 0
    %2634 = vmatpush1.bf16.msra.mxu0 %v1849
    %2635 = vmatprep.subr.bf16.mxu0 0
    %2636 = vmatpush1.bf16.msra.mxu0 0
    %2637 = vmatprep.subr.bf16.mxu0 0
    %2638 = vmatpush1.bf16.msra.mxu0 0
    %2639 = vmatprep.subr.bf16.mxu0 0
    %2640 = vmatpush1.bf16.msra.mxu0 0
    %2641 = vmatprep.subr.bf16.mxu0 0
    %2642 = vmatpush1.bf16.msra.mxu0 0
    %2643 = vmatprep.subr.bf16.mxu0 0
    %2644 = vmatpush1.bf16.msra.mxu0 0
    %2645 = vmatprep.subr.bf16.mxu0 0
    %2646 = vmatpush1.bf16.msra.mxu0 0
    %2647 = vmatprep.subr.bf16.mxu0 0
    %2648 = vmatpush1.bf16.msra.mxu0 0
    %2649 = vmatprep.subr.bf16.mxu0 0
    %2650 = vmatpush1.bf16.msra.mxu0 0
    %2651 = vmatprep.mubr.bf16.mxu0 0
    %2652 = vmatmul.mubr.bf16.gmra.mrb[0].mxu0 %v2576
    %v2653 = vpop.f32.mrb[0].mxu0
    %v2654 = vadd.f32 0.0, %v2653
    %v2655 = vpop.f32.mrb[0].mxu0
    %v2656 = vpop.f32.mrb[0].mxu0
    %v2657 = vpop.f32.mrb[0].mxu0
    %2658 = vdwg.mxu0
    %v2660 = vrot.slane %v2613, 2
    %v2662 = vadd.f32 %v1743, %v2660
    %v2663 = vxor.u32 %v2662, 2147483648
    %v2664 = vmul.f32 %v2663, 1.442695
    %v2665 = vpow.pop %v2664
    %v2666 = vadd.f32 %v2665, 1.0
    %v2667 = vrcp.pop %v2666
    %v2668 = vmul.f32 1.0, %v2667
    %v2670 = vrot.slane %v2615, 2
    %v2672 = vadd.f32 %v1744, %v2670
    %v2673 = vxor.u32 %v2672, 2147483648
    %v2674 = vmul.f32 %v2673, 1.442695
    %v2675 = vpow.pop %v2674
    %v2676 = vadd.f32 %v2675, 1.0
    %v2677 = vrcp.pop %v2676
    %v2678 = vmul.f32 1.0, %v2677
    %v2679 = vadd.f32 %v2654, %v1513
    %v2681 = vrot.slane %v2679, 2
    %v2683 = vmul.f32 %v2668, %v2681
    %v2684 = vadd.f32 %v1745, %v2683
    %v2685 = vtanh.pop %v2684
    %v2686 = vsub.f32 1.0, %v2678
    %v2687 = vmul.f32 %v2686, %v2685
    %v2689 = vrot.slane %v2571, 7
    %v2691 = vmul.f32 %v2678, %v2689
    %v2692 = vadd.f32 %v2687, %v2691
    %v2693 = vpack.c.bf16 %v2692, %v2692
    %v2695 = vrot.slane %v2693, 3
    %2697 = vmatprep.subr.bf16.mxu0 %v1827
    %2698 = vmatpush1.bf16.msra.mxu0 %v1826
    %2699 = vmatprep.subr.bf16.mxu0 %v1830
    %2700 = vmatpush1.bf16.msra.mxu0 %v1829
    %2701 = vmatprep.subr.bf16.mxu0 %v1833
    %2702 = vmatpush1.bf16.msra.mxu0 %v1832
    %2703 = vmatprep.subr.bf16.mxu0 %v1836
    %2704 = vmatpush1.bf16.msra.mxu0 %v1835
    %2705 = vmatprep.subr.bf16.mxu0 %v1839
    %2706 = vmatpush1.bf16.msra.mxu0 %v1838
    %2707 = vmatprep.subr.bf16.mxu0 %v1842
    %2708 = vmatpush1.bf16.msra.mxu0 %v1841
    %2709 = vmatprep.subr.bf16.mxu0 %v1845
    %2710 = vmatpush1.bf16.msra.mxu0 %v1844
    %2711 = vmatprep.subr.bf16.mxu0 %v1848
    %2712 = vmatpush1.bf16.msra.mxu0 %v1847
    %2713 = vmatprep.subr.bf16.mxu0 0
    %2714 = vmatpush1.bf16.msra.mxu0 0
    %2715 = vmatprep.subr.bf16.mxu0 0
    %2716 = vmatpush1.bf16.msra.mxu0 0
    %2717 = vmatprep.subr.bf16.mxu0 0
    %2718 = vmatpush1.bf16.msra.mxu0 0
    %2719 = vmatprep.subr.bf16.mxu0 0
    %2720 = vmatpush1.bf16.msra.mxu0 0
    %2721 = vmatprep.subr.bf16.mxu0 0
    %2722 = vmatpush1.bf16.msra.mxu0 0
    %2723 = vmatprep.subr.bf16.mxu0 0
    %2724 = vmatpush1.bf16.msra.mxu0 0
    %2725 = vmatprep.subr.bf16.mxu0 0
    %2726 = vmatpush1.bf16.msra.mxu0 0
    %2727 = vmatprep.subr.bf16.mxu0 0
    %2728 = vmatpush1.bf16.msra.mxu0 0
    %2729 = vmatprep.mubr.bf16.mxu0 0
    %2730 = vmatmul.mubr.bf16.gmra.mrb[0].mxu0 %v2695
    %v2731 = vpop.f32.mrb[0].mxu0
    %v2732 = vadd.f32 0.0, %v2731
    %v2733 = vpop.f32.mrb[0].mxu0
    %v2734 = vadd.f32 0.0, %v2733
    %v2735 = vpop.f32.mrb[0].mxu0
    %v2736 = vpop.f32.mrb[0].mxu0
    %2737 = vdwg.mxu0
    %2738 = vmatprep.subr.bf16.mxu0 0
    %2739 = vmatpush1.bf16.msra.mxu0 %v1828
    %2740 = vmatprep.subr.bf16.mxu0 0
    %2741 = vmatpush1.bf16.msra.mxu0 %v1831
    %2742 = vmatprep.subr.bf16.mxu0 0
    %2743 = vmatpush1.bf16.msra.mxu0 %v1834
    %2744 = vmatprep.subr.bf16.mxu0 0
    %2745 = vmatpush1.bf16.msra.mxu0 %v1837
    %2746 = vmatprep.subr.bf16.mxu0 0
    %2747 = vmatpush1.bf16.msra.mxu0 %v1840
    %2748 = vmatprep.subr.bf16.mxu0 0
    %2749 = vmatpush1.bf16.msra.mxu0 %v1843
    %2750 = vmatprep.subr.bf16.mxu0 0
    %2751 = vmatpush1.bf16.msra.mxu0 %v1846
    %2752 = vmatprep.subr.bf16.mxu0 0
    %2753 = vmatpush1.bf16.msra.mxu0 %v1849
    %2754 = vmatprep.subr.bf16.mxu0 0
    %2755 = vmatpush1.bf16.msra.mxu0 0
    %2756 = vmatprep.subr.bf16.mxu0 0
    %2757 = vmatpush1.bf16.msra.mxu0 0
    %2758 = vmatprep.subr.bf16.mxu0 0
    %2759 = vmatpush1.bf16.msra.mxu0 0
    %2760 = vmatprep.subr.bf16.mxu0 0
    %2761 = vmatpush1.bf16.msra.mxu0 0
    %2762 = vmatprep.subr.bf16.mxu0 0
    %2763 = vmatpush1.bf16.msra.mxu0 0
    %2764 = vmatprep.subr.bf16.mxu0 0
    %2765 = vmatpush1.bf16.msra.mxu0 0
    %2766 = vmatprep.subr.bf16.mxu0 0
    %2767 = vmatpush1.bf16.msra.mxu0 0
    %2768 = vmatprep.subr.bf16.mxu0 0
    %2769 = vmatpush1.bf16.msra.mxu0 0
    %2770 = vmatprep.mubr.bf16.mxu0 0
    %2771 = vmatmul.mubr.bf16.gmra.mrb[0].mxu0 %v2695
    %v2772 = vpop.f32.mrb[0].mxu0
    %v2773 = vadd.f32 0.0, %v2772
    %v2774 = vpop.f32.mrb[0].mxu0
    %v2775 = vpop.f32.mrb[0].mxu0
    %v2776 = vpop.f32.mrb[0].mxu0
    %2777 = vdwg.mxu0
    %v2779 = vrot.slane %v2732, 1
    %v2781 = vadd.f32 %v1743, %v2779
    %v2782 = vxor.u32 %v2781, 2147483648
    %v2783 = vmul.f32 %v2782, 1.442695
    %v2784 = vpow.pop %v2783
    %v2785 = vadd.f32 %v2784, 1.0
    %v2786 = vrcp.pop %v2785
    %v2787 = vmul.f32 1.0, %v2786
    %v2789 = vrot.slane %v2734, 1
    %v2791 = vadd.f32 %v1744, %v2789
    %v2792 = vxor.u32 %v2791, 2147483648
    %v2793 = vmul.f32 %v2792, 1.442695
    %v2794 = vpow.pop %v2793
    %v2795 = vadd.f32 %v2794, 1.0
    %v2796 = vrcp.pop %v2795
    %v2797 = vmul.f32 1.0, %v2796
    %v2798 = vadd.f32 %v2773, %v1513
    %v2800 = vrot.slane %v2798, 1
    %v2802 = vmul.f32 %v2787, %v2800
    %v2803 = vadd.f32 %v1745, %v2802
    %v2804 = vtanh.pop %v2803
    %v2805 = vsub.f32 1.0, %v2797
    %v2806 = vmul.f32 %v2805, %v2804
    %v2808 = vrot.slane %v2692, 7
    %v2810 = vmul.f32 %v2797, %v2808
    %v2811 = vadd.f32 %v2806, %v2810
    %2812 = vst [vmem:[#allocation10 - $0x7] sm:$0x80] %v1427
    %2813 = vst [vmem:[#allocation10 - $0x6] sm:$0x80] %v2811
    // Predicated region
    $region34: #{tpu_custom_call.1} parent=1 // pred_check
      _
    $region35: #{tpu_custom_call.1} parent=1 // pred_check_branch
      %2815 = sbr.rel (0) target = $region37
    $region36: #{tpu_custom_call.1} parent=1 // pred_region
      %s2817 = ssub.s32 32, 32
      %2818 = vsyncadd [#allocation6], %s2817
      %s2819 = sshll.u32 [#allocation10], 4
      %s2820 = int_to_ptr.vmem [resolvable:$true] %s2819
      %2825 = dma.vmem_to_hbm [thread:$0]  %s2820, 32, %s5, [#allocation6], 16, 16, 1
    $region37: #{tpu_custom_call.1} parent=1 // pred_fallthru
      _
    // Predicated region
    $region38: #{tpu_custom_call.1} parent=1 // pred_check
      _
    $region39: #{tpu_custom_call.1} parent=1 // pred_check_branch
      %2827 = sbr.rel (0) target = $region41
    $region40: #{tpu_custom_call.1} parent=1 // pred_region
      %2828 = dma.done [#allocation6], 32
    $region41: #{tpu_custom_call.1} parent=1 // pred_fallthru
      _
    %2829 = vsyncpa [#allocation5], 1
    %2830 = vsyncpa [#allocation8], 1
    %2831 = vsyncpa [#allocation6], 1

</llo_original>
